<compile_context>
chip_gen: v7x
topology: tpu7x:2x2x1
jax: 0.10.0
libtpu: 0.0.40
codegen_flags: <defaults>
</compile_context>

<pallas_src>
import functools

import jax
import jax.numpy as jnp
import numpy as np
from jax.experimental import pallas as pl
from jax.experimental.pallas import tpu as pltpu

LN_EPS = 1e-5      # torch.nn.LayerNorm default
AUX_ROWS = 16      # 13 packed rows padded to a sublane multiple


# ----------------------------------------------------------------------------
# Fused decoder kernel: one grid step == one full decoder layer (whole batch)
# ----------------------------------------------------------------------------
def _decoder_kernel(emb_ref, ctx_ref,
                    s_wqkv_ref, s_wo_ref, e_wq_ref, e_wkv_ref, e_wo_ref,
                    w1_ref, w2_ref, aux_ref,
                    out_ref, att_ref,
                    *, B, S, Skv, n_heads, scale):
    l = pl.program_id(0)
    BS, D = out_ref.shape
    F = w1_ref.shape[-1]
    dh = D // n_heads
    wdt = s_wqkv_ref.dtype            # MXU input dtype (bf16 by default)

    # ---- layer input --------------------------------------------------------
    @pl.when(l == 0)
    def _():
        # scaled embedding + positional encoding pos[s, d] = s  (rows are b*S+s)
        row = jax.lax.broadcasted_iota(jnp.int32, (BS, D), 0)
        pos = (row % S).astype(jnp.float32)
        out_ref[...] = emb_ref[...] * scale + pos

    x = out_ref[...]                  # (B*S, D)  f32, VMEM-resident carry
    ctx = ctx_ref[...]                # (B*Skv, D) f32, VMEM-resident

    # ---- per-layer scalars: biases + LayerNorm params, one f32 slab ---------
    aux = aux_ref[0]                  # (AUX_ROWS, W)
    s_bqkv = aux[0:1, :3 * D]
    s_bo   = aux[1:2, :D]
    e_bq   = aux[2:3, :D]
    e_bkv  = aux[3:4, :2 * D]
    e_bo   = aux[4:5, :D]
    b1     = aux[5:6, :F]
    b2     = aux[6:7, :D]
    ln_g1, ln_b1 = aux[7:8, :D],   aux[8:9, :D]
    ln_g2, ln_b2 = aux[9:10, :D],  aux[10:11, :D]
    ln_g3, ln_b3 = aux[11:12, :D], aux[12:13, :D]

    def layer_norm(v, g, b):
        mu = jnp.mean(v, axis=-1, keepdims=True)
        c = v - mu                                        # centered two-pass var
        var = jnp.mean(c * c, axis=-1, keepdims=True)
        return c * jax.lax.rsqrt(var + LN_EPS) * g + b

    def mm(a, w_ref):
        # bf16 MXU inputs, f32 accumulation.
        return jnp.dot(a.astype(wdt), w_ref[0], preferred_element_type=jnp.float32)

    def attention(q, k, v, kv_len):
        # Per-(batch, head) attention (B, H small & static -> unrolled).
        # 1/scale is already folded into the packed Q weights/biases.
        # Concatenated head outputs are assembled in-place in the att_ref
        # VMEM scratch (no jnp.concatenate copies).
        for b in range(B):
            qr = slice(b * S, (b + 1) * S)
            kr = slice(b * kv_len, (b + 1) * kv_len)
            for h in range(n_heads):
                hc = slice(h * dh, (h + 1) * dh)
                energy = jax.lax.dot_general(             # q @ k^T
                    q[qr, hc].astype(wdt), k[kr, hc].astype(wdt),
                    (((1,), (1,)), ((), ())),
                    preferred_element_type=jnp.float32)   # (S, kv_len), f32
                m = jnp.max(energy, axis=-1, keepdims=True)
                p = jnp.exp(energy - m)
                p = p / jnp.sum(p, axis=-1, keepdims=True)   # exact reciprocal
                att_ref[qr, hc] = jnp.dot(
                    p.astype(wdt), v[kr, hc].astype(wdt),
                    preferred_element_type=jnp.float32)
        return att_ref[...]                               # (B*S, D) f32

    # ---- self-attention + residual + LayerNorm 1 ----------------------------
    qkv = mm(x, s_wqkv_ref) + s_bqkv                      # (B*S, 3D)
    w = attention(qkv[:, :D], qkv[:, D:2 * D], qkv[:, 2 * D:], S)
    sa = mm(w, s_wo_ref) + s_bo
    x1 = layer_norm(x + sa, ln_g1, ln_b1)

    # ---- encoder-decoder attention + residual + LayerNorm 2 -----------------
    q = mm(x1, e_wq_ref) + e_bq                           # (B*S, D)
    kv = mm(ctx, e_wkv_ref) + e_bkv                       # (B*Skv, 2D)
    w = attention(q, kv[:, :D], kv[:, D:], Skv)
    ea = mm(w, e_wo_ref) + e_bo
    x2 = layer_norm(x1 + ea, ln_g2, ln_b2)

    # ---- position-wise FFN (ReLU) + final LayerNorm (NO residual) -----------
    h = jnp.maximum(mm(x2, w1_ref) + b1, 0.0)
    y = mm(h, w2_ref) + b2
    out_ref[...] = layer_norm(y, ln_g3, ln_b3)


def decoder_forward(y_tokens, context, packed, *, n_heads):
    B, S = y_tokens.shape
    Skv, D = context.shape[1], context.shape[2]
    L = packed["s_wqkv"].shape[0]
    F = packed["w1"].shape[-1]
    R, W = packed["aux"].shape[1], packed["aux"].shape[2]
    scale = float(D) ** 0.5

    # TODO(synk): embedding gather is data-dependent; kept in plain JAX. Could
    # be moved in-kernel with PrefetchScalarGridSpec + pl.Element row indexing.
    emb = jnp.take(packed["embed"], y_tokens, axis=0).reshape(B * S, D)
    ctx = context.reshape(B * Skv, D)

    def resident2d(shape):            # constant block index -> fetched once
        return pl.BlockSpec(shape, lambda l: (0, 0))

    def w_spec(shape):                # fetched once per layer
        return pl.BlockSpec(shape, lambda l: (l, 0, 0))

    # Explicit VMEM budget (review: v7x has 64 MiB physical / 32 MiB scoped).
    w_bytes = sum(int(np.prod(packed[k].shape[1:])) * packed[k].dtype.itemsize
                  for k in ("s_wqkv", "s_wo", "e_wq", "e_wkv", "e_wo",
                            "w1", "w2", "aux"))
    act_bytes = (emb.size + ctx.size + 2 * B * S * D) * 4
    vmem_limit = int(min(64 * 1024 * 1024,
                         max(16 * 1024 * 1024, 2 * (2 * w_bytes + act_bytes))))

    out = pl.pallas_call(
        functools.partial(_decoder_kernel, B=B, S=S, Skv=Skv,
                          n_heads=n_heads, scale=scale),
        out_shape=jax.ShapeDtypeStruct((B * S, D), jnp.float32),
        grid=(L,),
        in_specs=[
            resident2d((B * S, D)),        # embedding (used at l==0)
            resident2d((B * Skv, D)),      # encoder context
            w_spec((1, D, 3 * D)),         # self Wqkv  (bf16, scale folded in Q)
            w_spec((1, D, D)),             # self Wo
            w_spec((1, D, D)),             # enc  Wq    (scale folded)
            w_spec((1, D, 2 * D)),         # enc  Wkv
            w_spec((1, D, D)),             # enc  Wo
            w_spec((1, D, F)),             # FFN  W1
            w_spec((1, F, D)),             # FFN  W2
            w_spec((1, R, W)),             # biases + LayerNorm params (f32)
        ],
        out_specs=pl.BlockSpec((B * S, D), lambda l: (0, 0)),
        scratch_shapes=[pltpu.VMEM((B * S, D), jnp.float32)],   # head assembly
        compiler_params=pltpu.CompilerParams(
            dimension_semantics=("arbitrary",),     # layers are sequential
            vmem_limit_bytes=vmem_limit),
    )(emb, ctx,
      packed["s_wqkv"], packed["s_wo"], packed["e_wq"], packed["e_wkv"],
      packed["e_wo"], packed["w1"], packed["w2"], packed["aux"])
    return out.reshape(B, S, D)


# ----------------------------------------------------------------------------
# One-time parameter packing (fused QKV / KV, bf16 weights, one f32 aux slab)
# ----------------------------------------------------------------------------
def pack_params(params, *, w_dtype=jnp.bfloat16):
    layers = params["layers"]
    D = params["embed"].shape[1]
    F = layers[0]["w1"].shape[1]
    inv_scale = 1.0 / (float(D) ** 0.5)
    W = max(3 * D, F)

    def row(v):
        return jnp.pad(v.astype(jnp.float32), (0, W - v.shape[0]))

    def aux_one(lp):
        rows = [
            row(jnp.concatenate([lp["self"]["bq"] * inv_scale,
                                 lp["self"]["bk"], lp["self"]["bv"]])),
            row(lp["self"]["bo"]),
            row(lp["enc"]["bq"] * inv_scale),
            row(jnp.concatenate([lp["enc"]["bk"], lp["enc"]["bv"]])),
            row(lp["enc"]["bo"]),
            row(lp["b1"]),
            row(lp["b2"]),
            row(lp["ln1_g"]), row(lp["ln1_b"]),
            row(lp["ln2_g"]), row(lp["ln2_b"]),
            row(lp["ln3_g"]), row(lp["ln3_b"]),
        ]
        rows += [jnp.zeros((W,), jnp.float32)] * (AUX_ROWS - len(rows))
        return jnp.stack(rows, axis=0)

    def stack(fn, dtype):
        return jnp.stack([fn(lp) for lp in layers], axis=0).astype(dtype)

    return dict(
        embed=params["embed"],                                   # f32 (VPU path)
        s_wqkv=stack(lambda lp: jnp.concatenate(
            [lp["self"]["wq"] * inv_scale, lp["self"]["wk"], lp["self"]["wv"]],
            axis=1), w_dtype),
        s_wo=stack(lambda lp: lp["self"]["wo"], w_dtype),
        e_wq=stack(lambda lp: lp["enc"]["wq"] * inv_scale, w_dtype),
        e_wkv=stack(lambda lp: jnp.concatenate(
            [lp["enc"]["wk"], lp["enc"]["wv"]], axis=1), w_dtype),
        e_wo=stack(lambda lp: lp["enc"]["wo"], w_dtype),
        w1=stack(lambda lp: lp["w1"], w_dtype),
        w2=stack(lambda lp: lp["w2"], w_dtype),
        aux=stack(aux_one, jnp.float32),
    )


# ----------------------------------------------------------------------------
# Pure-JAX reference (module math); mxu_dtype mirrors the kernel's MXU inputs
# ----------------------------------------------------------------------------
def decoder_ref(y_tokens, context, params, *, n_heads, mxu_dtype=jnp.float32):
    D = context.shape[-1]
    H = n_heads
    Dh = D // H
    scale = float(D) ** 0.5
    inv_scale = 1.0 / scale
    dt = mxu_dtype

    def mm(a, b):
        return jnp.dot(a.astype(dt), b.astype(dt),
                       preferred_element_type=jnp.float32)

    def ln(x, g, b):
        mu = x.mean(-1, keepdims=True)
        var = ((x - mu) ** 2).mean(-1, keepdims=True)
        return (x - mu) * jax.lax.rsqrt(var + LN_EPS) * g + b

    def mha(qin, kvin, p):
        Bq, Sq, _ = qin.shape
        Skv = kvin.shape[1]
        # 1/scale folded into the Q projection (== dividing energy by scale,
        # exactly as ScaledDotProductAttention does).
        Q = mm(qin, p["wq"] * inv_scale) + p["bq"] * inv_scale
        K = mm(kvin, p["wk"]) + p["bk"]
        V = mm(kvin, p["wv"]) + p["bv"]
        Qh = Q.reshape(Bq, Sq, H, Dh).transpose(0, 2, 1, 3)
        Kh = K.reshape(Bq, Skv, H, Dh).transpose(0, 2, 1, 3)
        Vh = V.reshape(Bq, Skv, H, Dh).transpose(0, 2, 1, 3)
        e = jnp.einsum("bhqd,bhkd->bhqk", Qh.astype(dt), Kh.astype(dt),
                       preferred_element_type=jnp.float32)
        a = jax.nn.softmax(e, axis=-1)
        w = jnp.einsum("bhqk,bhkd->bhqd", a.astype(dt), Vh.astype(dt),
                       preferred_element_type=jnp.float32)
        w = w.transpose(0, 2, 1, 3).reshape(Bq, Sq, D)
        return mm(w, p["wo"]) + p["bo"]

    emb = jnp.take(params["embed"], y_tokens, axis=0) * scale
    S = y_tokens.shape[1]
    pos = jnp.arange(S, dtype=jnp.float32)[:, None] * jnp.ones((1, D), jnp.float32)
    x = emb + pos
    for lp in params["layers"]:
        x1 = ln(x + mha(x, x, lp["self"]), lp["ln1_g"], lp["ln1_b"])
        x2 = ln(x1 + mha(x1, context, lp["enc"]), lp["ln2_g"], lp["ln2_b"])
        ff = jax.nn.relu(mm(x2, lp["w1"]) + lp["b1"])
        y = mm(ff, lp["w2"]) + lp["b2"]
        x = ln(y, lp["ln3_g"], lp["ln3_b"])     # no residual (as in reference)
    return x


# ----------------------------------------------------------------------------
# Deterministic parameter init
# ----------------------------------------------------------------------------
def init_params(key, vocab, D, H, F, n_layers):
    keys = jax.random.split(key, 1 + n_layers)
    params = {"embed": jax.random.normal(keys[0], (vocab, D), jnp.float32) * 0.05,
              "layers": []}

    def linear(k, din, dout):
        k1, k2 = jax.random.split(k)
        return (jax.random.normal(k1, (din, dout), jnp.float32) * 0.05,
                jax.random.normal(k2, (dout,), jnp.float32) * 0.05)

    for i in range(n_layers):
        lk = jax.random.split(keys[1 + i], 16)

        def att(ks):
            wq, bq = linear(ks[0], D, D)
            wk, bk = linear(ks[1], D, D)
            wv, bv = linear(ks[2], D, D)
            wo, bo = linear(ks[3], D, D)
            return dict(wq=wq, bq=bq, wk=wk, bk=bk, wv=wv, bv=bv, wo=wo, bo=bo)

        w1, b1 = linear(lk[8], D, F)
        w2, b2 = linear(lk[9], F, D)
        params["layers"].append(dict(
            self=att(lk[0:4]), enc=att(lk[4:8]),
            w1=w1, b1=b1, w2=w2, b2=b2,
            ln1_g=1.0 + 0.1 * jax.random.normal(lk[10], (D,), jnp.float32),
            ln1_b=0.1 * jax.random.normal(lk[11], (D,), jnp.float32),
            ln2_g=1.0 + 0.1 * jax.random.normal(lk[12], (D,), jnp.float32),
            ln2_b=0.1 * jax.random.normal(lk[13], (D,), jnp.float32),
            ln3_g=1.0 + 0.1 * jax.random.normal(lk[14], (D,), jnp.float32),
            ln3_b=0.1 * jax.random.normal(lk[15], (D,), jnp.float32),
        ))
    return params


if __name__ == "__main__":
    B, S_DEC, S_ENC = 2, 8, 16
    VOCAB, D, H, F, N_LAYERS = 50, 32, 4, 64, 2

    key = jax.random.PRNGKey(0)
    k_tok, k_ctx, k_par = jax.random.split(key, 3)
    y = jax.random.randint(k_tok, (B, S_DEC), 0, VOCAB, dtype=jnp.int32)
    context = jax.random.normal(k_ctx, (B, S_ENC, D), jnp.float32)
    params = init_params(k_par, VOCAB, D, H, F, N_LAYERS)

    packed = pack_params(params, w_dtype=jnp.bfloat16)   # one-time weight prep
    out = decoder_forward(y, context, packed, n_heads=H)
    out = jax.block_until_ready(out)

    # The reference mirrors the kernel's MXU precision (bf16 matmul inputs,
    # f32 accumulation, f32 element-wise math) so the check isolates kernel
    # implementation errors; vs. the strict f32 torch module the deviation is
    # O(1e-2), entirely from the bf16 weight storage recommended by the
    # performance review.
    ref = decoder_ref(y, context, params, n_heads=H, mxu_dtype=jnp.bfloat16)
    np.testing.assert_allclose(np.asarray(out), np.asarray(ref),
                               rtol=1e-2, atol=1e-2)
    print("KERNEL_OK")
</pallas_src>

<mosaic_0001>
module attributes {stable_mosaic.version = 11 : i64} {
  func.func @_decoder_kernel(%arg0: i32, %arg1: memref<16x32xf32, #tpu.memory_space<vmem>>, %arg2: memref<32x32xf32, #tpu.memory_space<vmem>>, %arg3: memref<1x32x96xbf16, #tpu.memory_space<vmem>>, %arg4: memref<1x32x32xbf16, #tpu.memory_space<vmem>>, %arg5: memref<1x32x32xbf16, #tpu.memory_space<vmem>>, %arg6: memref<1x32x64xbf16, #tpu.memory_space<vmem>>, %arg7: memref<1x32x32xbf16, #tpu.memory_space<vmem>>, %arg8: memref<1x32x64xbf16, #tpu.memory_space<vmem>>, %arg9: memref<1x64x32xbf16, #tpu.memory_space<vmem>>, %arg10: memref<1x16x96xf32, #tpu.memory_space<vmem>>, %arg11: memref<16x32xf32, #tpu.memory_space<vmem>>, %arg12: memref<16x32xf32, #tpu.memory_space<vmem>>) attributes {dimension_semantics = [#tpu.dimension_semantics<arbitrary>], iteration_bounds = array<i64: 2>, scalar_prefetch = 0 : i64, scratch_operands = 1 : i64, tpu.core_type = #tpu.core_type<tc>, window_params = [{pipeline_mode = #tpu.pipeline_mode<synchronous>, transform_indices = @transform_0, window_bounds = array<i64: 16, 32>}, {pipeline_mode = #tpu.pipeline_mode<synchronous>, transform_indices = @transform_1, window_bounds = array<i64: 32, 32>}, {transform_indices = @transform_2, window_bounds = array<i64: 1, 32, 96>}, {transform_indices = @transform_3, window_bounds = array<i64: 1, 32, 32>}, {transform_indices = @transform_4, window_bounds = array<i64: 1, 32, 32>}, {transform_indices = @transform_5, window_bounds = array<i64: 1, 32, 64>}, {transform_indices = @transform_6, window_bounds = array<i64: 1, 32, 32>}, {transform_indices = @transform_7, window_bounds = array<i64: 1, 32, 64>}, {transform_indices = @transform_8, window_bounds = array<i64: 1, 64, 32>}, {transform_indices = @transform_9, window_bounds = array<i64: 1, 16, 96>}, {pipeline_mode = #tpu.pipeline_mode<synchronous>, transform_indices = @transform_10, window_bounds = array<i64: 16, 32>}]} {
    %c0_i32 = arith.constant 0 : i32
    %0 = arith.cmpi eq, %arg0, %c0_i32 : i32
    %1 = arith.extui %0 : i1 to i32
    %c0_i32_0 = arith.constant 0 : i32
    %2 = arith.cmpi ne, %1, %c0_i32_0 : i32
    scf.if %2 {
      %438 = tpu.iota {dimensions = array<i32: 0>} : vector<16x32xi32>
      %c8_i32 = arith.constant 8 : i32
      %c0_i32_149 = arith.constant 0 : i32
      %439 = arith.cmpi eq, %c8_i32, %c0_i32_149 : i32
      %c1_i32 = arith.constant 1 : i32
      %440 = arith.select %439, %c1_i32, %c8_i32 : i32
      %441 = vector.broadcast %440 : i32 to vector<16x32xi32>
      %442 = arith.remsi %438, %441 : vector<16x32xi32>
      %c0_i32_150 = arith.constant 0 : i32
      %443 = vector.broadcast %c0_i32_150 : i32 to vector<16x32xi32>
      %444 = arith.cmpi ne, %442, %443 : vector<16x32xi32>
      %c0_i32_151 = arith.constant 0 : i32
      %445 = vector.broadcast %c0_i32_151 : i32 to vector<16x32xi32>
      %446 = arith.cmpi slt, %442, %445 : vector<16x32xi32>
      %c0_i32_152 = arith.constant 0 : i32
      %447 = arith.cmpi slt, %440, %c0_i32_152 : i32
      %448 = vector.broadcast %447 : i1 to vector<16x32xi1>
      %449 = vector.broadcast %448 : vector<16x32xi1> to vector<16x32xi1>
      %450 = arith.xori %446, %449 : vector<16x32xi1>
      %451 = arith.andi %450, %444 : vector<16x32xi1>
      %452 = vector.broadcast %440 : i32 to vector<16x32xi32>
      %453 = arith.addi %442, %452 : vector<16x32xi32>
      %454 = arith.select %451, %453, %442 : vector<16x32xi1>, vector<16x32xi32>
      %455 = arith.sitofp %454 : vector<16x32xi32> to vector<16x32xf32>
      %c0_153 = arith.constant 0 : index
      %c0_154 = arith.constant 0 : index
      %456 = vector.load %arg1[%c0_153, %c0_154] : memref<16x32xf32, #tpu.memory_space<vmem>>, vector<16x32xf32>
      %cst_155 = arith.constant 5.65685415 : f32
      %457 = vector.broadcast %cst_155 : f32 to vector<16x32xf32>
      %458 = arith.mulf %456, %457 : vector<16x32xf32>
      %459 = arith.addf %458, %455 : vector<16x32xf32>
      %c0_156 = arith.constant 0 : index
      %c0_157 = arith.constant 0 : index
      %460 = vector.load %arg11[%c0_156, %c0_157] : memref<16x32xf32, #tpu.memory_space<vmem>>, vector<16x32xf32>
      tpu.vector_store %arg11[%c0_156, %c0_157], %459 {strides = array<i32>} : memref<16x32xf32, #tpu.memory_space<vmem>>, vector<16x32xf32>,
    } else {
    }
    %c0 = arith.constant 0 : index
    %c0_1 = arith.constant 0 : index
    %3 = vector.load %arg11[%c0, %c0_1] : memref<16x32xf32, #tpu.memory_space<vmem>>, vector<16x32xf32>
    %c0_2 = arith.constant 0 : index
    %c0_3 = arith.constant 0 : index
    %4 = vector.load %arg2[%c0_2, %c0_3] : memref<32x32xf32, #tpu.memory_space<vmem>>, vector<32x32xf32>
    %c0_4 = arith.constant 0 : index
    %c0_5 = arith.constant 0 : index
    %c0_6 = arith.constant 0 : index
    %5 = vector.load %arg10[%c0_4, %c0_5, %c0_6] : memref<1x16x96xf32, #tpu.memory_space<vmem>>, vector<1x16x96xf32>
    %6 = vector.shape_cast %5 : vector<1x16x96xf32> to vector<16x96xf32>
    %7 = vector.extract_strided_slice %6 {offsets = [0, 0], sizes = [1, 96], strides = [1, 1]} : vector<16x96xf32> to vector<1x96xf32>
    %8 = vector.extract_strided_slice %6 {offsets = [1, 0], sizes = [1, 32], strides = [1, 1]} : vector<16x96xf32> to vector<1x32xf32>
    %9 = vector.extract_strided_slice %6 {offsets = [2, 0], sizes = [1, 32], strides = [1, 1]} : vector<16x96xf32> to vector<1x32xf32>
    %10 = vector.extract_strided_slice %6 {offsets = [3, 0], sizes = [1, 64], strides = [1, 1]} : vector<16x96xf32> to vector<1x64xf32>
    %11 = vector.extract_strided_slice %6 {offsets = [4, 0], sizes = [1, 32], strides = [1, 1]} : vector<16x96xf32> to vector<1x32xf32>
    %12 = vector.extract_strided_slice %6 {offsets = [5, 0], sizes = [1, 64], strides = [1, 1]} : vector<16x96xf32> to vector<1x64xf32>
    %13 = vector.extract_strided_slice %6 {offsets = [6, 0], sizes = [1, 32], strides = [1, 1]} : vector<16x96xf32> to vector<1x32xf32>
    %14 = vector.extract_strided_slice %6 {offsets = [7, 0], sizes = [1, 32], strides = [1, 1]} : vector<16x96xf32> to vector<1x32xf32>
    %15 = vector.extract_strided_slice %6 {offsets = [8, 0], sizes = [1, 32], strides = [1, 1]} : vector<16x96xf32> to vector<1x32xf32>
    %16 = vector.extract_strided_slice %6 {offsets = [9, 0], sizes = [1, 32], strides = [1, 1]} : vector<16x96xf32> to vector<1x32xf32>
    %17 = vector.extract_strided_slice %6 {offsets = [10, 0], sizes = [1, 32], strides = [1, 1]} : vector<16x96xf32> to vector<1x32xf32>
    %18 = vector.extract_strided_slice %6 {offsets = [11, 0], sizes = [1, 32], strides = [1, 1]} : vector<16x96xf32> to vector<1x32xf32>
    %19 = vector.extract_strided_slice %6 {offsets = [12, 0], sizes = [1, 32], strides = [1, 1]} : vector<16x96xf32> to vector<1x32xf32>
    %20 = arith.truncf %3 : vector<16x32xf32> to vector<16x32xbf16>
    %c0_7 = arith.constant 0 : index
    %c0_8 = arith.constant 0 : index
    %c0_9 = arith.constant 0 : index
    %21 = vector.load %arg3[%c0_7, %c0_8, %c0_9] : memref<1x32x96xbf16, #tpu.memory_space<vmem>>, vector<1x32x96xbf16>
    %22 = vector.shape_cast %21 : vector<1x32x96xbf16> to vector<32x96xbf16>
    %cst = arith.constant dense<0.000000e+00> : vector<16x96xf32>
    %23 = tpu.matmul %20, %22, %cst {dimension_numbers = #tpu.dot_dimension_numbers<[1], [0], [0], [1], [0, 0, 1, 1], [], []>} : vector<16x32xbf16>, vector<32x96xbf16>, vector<16x96xf32> -> vector<16x96xf32>
    %24 = vector.broadcast %7 : vector<1x96xf32> to vector<16x96xf32>
    %25 = arith.addf %23, %24 : vector<16x96xf32>
    %26 = vector.extract_strided_slice %25 {offsets = [0, 0], sizes = [16, 32], strides = [1, 1]} : vector<16x96xf32> to vector<16x32xf32>
    %27 = vector.extract_strided_slice %25 {offsets = [0, 32], sizes = [16, 32], strides = [1, 1]} : vector<16x96xf32> to vector<16x32xf32>
    %28 = vector.extract_strided_slice %25 {offsets = [0, 64], sizes = [16, 32], strides = [1, 1]} : vector<16x96xf32> to vector<16x32xf32>
    %29 = vector.extract_strided_slice %26 {offsets = [0, 0], sizes = [8, 8], strides = [1, 1]} : vector<16x32xf32> to vector<8x8xf32>
    %30 = arith.truncf %29 : vector<8x8xf32> to vector<8x8xbf16>
    %31 = vector.extract_strided_slice %27 {offsets = [0, 0], sizes = [8, 8], strides = [1, 1]} : vector<16x32xf32> to vector<8x8xf32>
    %32 = arith.truncf %31 : vector<8x8xf32> to vector<8x8xbf16>
    %cst_10 = arith.constant dense<0.000000e+00> : vector<8x8xf32>
    %33 = tpu.matmul %30, %32, %cst_10 {dimension_numbers = #tpu.dot_dimension_numbers<[1], [1], [0], [0], [0, 0, 1, 0], [], []>} : vector<8x8xbf16>, vector<8x8xbf16>, vector<8x8xf32> -> vector<8x8xf32>
    %cst_11 = arith.constant dense<0xFF800000> : vector<8xf32>
    %34 = vector.multi_reduction <maximumf>, %33, %cst_11 [1] : vector<8x8xf32> to vector<8xf32>
    %35 = vector.shape_cast %34 : vector<8xf32> to vector<8x1xf32>
    %36 = vector.broadcast %35 : vector<8x1xf32> to vector<8x8xf32>
    %37 = arith.subf %33, %36 : vector<8x8xf32>
    %38 = math.exp %37 : vector<8x8xf32>
    %cst_12 = arith.constant dense<0.000000e+00> : vector<8xf32>
    %39 = vector.multi_reduction <add>, %38, %cst_12 [1] : vector<8x8xf32> to vector<8xf32>
    %40 = vector.shape_cast %39 : vector<8xf32> to vector<8x1xf32>
    %41 = vector.broadcast %40 : vector<8x1xf32> to vector<8x8xf32>
    %42 = arith.divf %38, %41 : vector<8x8xf32>
    %43 = arith.truncf %42 : vector<8x8xf32> to vector<8x8xbf16>
    %44 = vector.extract_strided_slice %28 {offsets = [0, 0], sizes = [8, 8], strides = [1, 1]} : vector<16x32xf32> to vector<8x8xf32>
    %45 = arith.truncf %44 : vector<8x8xf32> to vector<8x8xbf16>
    %cst_13 = arith.constant dense<0.000000e+00> : vector<8x8xf32>
    %46 = tpu.matmul %43, %45, %cst_13 {dimension_numbers = #tpu.dot_dimension_numbers<[1], [0], [0], [1], [0, 0, 1, 1], [], []>} : vector<8x8xbf16>, vector<8x8xbf16>, vector<8x8xf32> -> vector<8x8xf32>
    %c0_14 = arith.constant 0 : index
    %c0_15 = arith.constant 0 : index
    %47 = vector.load %arg12[%c0_14, %c0_15] : memref<16x32xf32, #tpu.memory_space<vmem>>, vector<8x8xf32>
    tpu.vector_store %arg12[%c0_14, %c0_15], %46 {strides = array<i32>} : memref<16x32xf32, #tpu.memory_space<vmem>>, vector<8x8xf32>,
    %48 = vector.extract_strided_slice %26 {offsets = [0, 8], sizes = [8, 8], strides = [1, 1]} : vector<16x32xf32> to vector<8x8xf32>
    %49 = arith.truncf %48 : vector<8x8xf32> to vector<8x8xbf16>
    %50 = vector.extract_strided_slice %27 {offsets = [0, 8], sizes = [8, 8], strides = [1, 1]} : vector<16x32xf32> to vector<8x8xf32>
    %51 = arith.truncf %50 : vector<8x8xf32> to vector<8x8xbf16>
    %cst_16 = arith.constant dense<0.000000e+00> : vector<8x8xf32>
    %52 = tpu.matmul %49, %51, %cst_16 {dimension_numbers = #tpu.dot_dimension_numbers<[1], [1], [0], [0], [0, 0, 1, 0], [], []>} : vector<8x8xbf16>, vector<8x8xbf16>, vector<8x8xf32> -> vector<8x8xf32>
    %cst_17 = arith.constant dense<0xFF800000> : vector<8xf32>
    %53 = vector.multi_reduction <maximumf>, %52, %cst_17 [1] : vector<8x8xf32> to vector<8xf32>
    %54 = vector.shape_cast %53 : vector<8xf32> to vector<8x1xf32>
    %55 = vector.broadcast %54 : vector<8x1xf32> to vector<8x8xf32>
    %56 = arith.subf %52, %55 : vector<8x8xf32>
    %57 = math.exp %56 : vector<8x8xf32>
    %cst_18 = arith.constant dense<0.000000e+00> : vector<8xf32>
    %58 = vector.multi_reduction <add>, %57, %cst_18 [1] : vector<8x8xf32> to vector<8xf32>
    %59 = vector.shape_cast %58 : vector<8xf32> to vector<8x1xf32>
    %60 = vector.broadcast %59 : vector<8x1xf32> to vector<8x8xf32>
    %61 = arith.divf %57, %60 : vector<8x8xf32>
    %62 = arith.truncf %61 : vector<8x8xf32> to vector<8x8xbf16>
    %63 = vector.extract_strided_slice %28 {offsets = [0, 8], sizes = [8, 8], strides = [1, 1]} : vector<16x32xf32> to vector<8x8xf32>
    %64 = arith.truncf %63 : vector<8x8xf32> to vector<8x8xbf16>
    %cst_19 = arith.constant dense<0.000000e+00> : vector<8x8xf32>
    %65 = tpu.matmul %62, %64, %cst_19 {dimension_numbers = #tpu.dot_dimension_numbers<[1], [0], [0], [1], [0, 0, 1, 1], [], []>} : vector<8x8xbf16>, vector<8x8xbf16>, vector<8x8xf32> -> vector<8x8xf32>
    %c0_20 = arith.constant 0 : index
    %c8 = arith.constant 8 : index
    %66 = vector.load %arg12[%c0_20, %c8] : memref<16x32xf32, #tpu.memory_space<vmem>>, vector<8x8xf32>
    tpu.vector_store %arg12[%c0_20, %c8], %65 {strides = array<i32>} : memref<16x32xf32, #tpu.memory_space<vmem>>, vector<8x8xf32>,
    %67 = vector.extract_strided_slice %26 {offsets = [0, 16], sizes = [8, 8], strides = [1, 1]} : vector<16x32xf32> to vector<8x8xf32>
    %68 = arith.truncf %67 : vector<8x8xf32> to vector<8x8xbf16>
    %69 = vector.extract_strided_slice %27 {offsets = [0, 16], sizes = [8, 8], strides = [1, 1]} : vector<16x32xf32> to vector<8x8xf32>
    %70 = arith.truncf %69 : vector<8x8xf32> to vector<8x8xbf16>
    %cst_21 = arith.constant dense<0.000000e+00> : vector<8x8xf32>
    %71 = tpu.matmul %68, %70, %cst_21 {dimension_numbers = #tpu.dot_dimension_numbers<[1], [1], [0], [0], [0, 0, 1, 0], [], []>} : vector<8x8xbf16>, vector<8x8xbf16>, vector<8x8xf32> -> vector<8x8xf32>
    %cst_22 = arith.constant dense<0xFF800000> : vector<8xf32>
    %72 = vector.multi_reduction <maximumf>, %71, %cst_22 [1] : vector<8x8xf32> to vector<8xf32>
    %73 = vector.shape_cast %72 : vector<8xf32> to vector<8x1xf32>
    %74 = vector.broadcast %73 : vector<8x1xf32> to vector<8x8xf32>
    %75 = arith.subf %71, %74 : vector<8x8xf32>
    %76 = math.exp %75 : vector<8x8xf32>
    %cst_23 = arith.constant dense<0.000000e+00> : vector<8xf32>
    %77 = vector.multi_reduction <add>, %76, %cst_23 [1] : vector<8x8xf32> to vector<8xf32>
    %78 = vector.shape_cast %77 : vector<8xf32> to vector<8x1xf32>
    %79 = vector.broadcast %78 : vector<8x1xf32> to vector<8x8xf32>
    %80 = arith.divf %76, %79 : vector<8x8xf32>
    %81 = arith.truncf %80 : vector<8x8xf32> to vector<8x8xbf16>
    %82 = vector.extract_strided_slice %28 {offsets = [0, 16], sizes = [8, 8], strides = [1, 1]} : vector<16x32xf32> to vector<8x8xf32>
    %83 = arith.truncf %82 : vector<8x8xf32> to vector<8x8xbf16>
    %cst_24 = arith.constant dense<0.000000e+00> : vector<8x8xf32>
    %84 = tpu.matmul %81, %83, %cst_24 {dimension_numbers = #tpu.dot_dimension_numbers<[1], [0], [0], [1], [0, 0, 1, 1], [], []>} : vector<8x8xbf16>, vector<8x8xbf16>, vector<8x8xf32> -> vector<8x8xf32>
    %c0_25 = arith.constant 0 : index
    %c16 = arith.constant 16 : index
    %85 = vector.load %arg12[%c0_25, %c16] : memref<16x32xf32, #tpu.memory_space<vmem>>, vector<8x8xf32>
    tpu.vector_store %arg12[%c0_25, %c16], %84 {strides = array<i32>} : memref<16x32xf32, #tpu.memory_space<vmem>>, vector<8x8xf32>,
    %86 = vector.extract_strided_slice %26 {offsets = [0, 24], sizes = [8, 8], strides = [1, 1]} : vector<16x32xf32> to vector<8x8xf32>
    %87 = arith.truncf %86 : vector<8x8xf32> to vector<8x8xbf16>
    %88 = vector.extract_strided_slice %27 {offsets = [0, 24], sizes = [8, 8], strides = [1, 1]} : vector<16x32xf32> to vector<8x8xf32>
    %89 = arith.truncf %88 : vector<8x8xf32> to vector<8x8xbf16>
    %cst_26 = arith.constant dense<0.000000e+00> : vector<8x8xf32>
    %90 = tpu.matmul %87, %89, %cst_26 {dimension_numbers = #tpu.dot_dimension_numbers<[1], [1], [0], [0], [0, 0, 1, 0], [], []>} : vector<8x8xbf16>, vector<8x8xbf16>, vector<8x8xf32> -> vector<8x8xf32>
    %cst_27 = arith.constant dense<0xFF800000> : vector<8xf32>
    %91 = vector.multi_reduction <maximumf>, %90, %cst_27 [1] : vector<8x8xf32> to vector<8xf32>
    %92 = vector.shape_cast %91 : vector<8xf32> to vector<8x1xf32>
    %93 = vector.broadcast %92 : vector<8x1xf32> to vector<8x8xf32>
    %94 = arith.subf %90, %93 : vector<8x8xf32>
    %95 = math.exp %94 : vector<8x8xf32>
    %cst_28 = arith.constant dense<0.000000e+00> : vector<8xf32>
    %96 = vector.multi_reduction <add>, %95, %cst_28 [1] : vector<8x8xf32> to vector<8xf32>
    %97 = vector.shape_cast %96 : vector<8xf32> to vector<8x1xf32>
    %98 = vector.broadcast %97 : vector<8x1xf32> to vector<8x8xf32>
    %99 = arith.divf %95, %98 : vector<8x8xf32>
    %100 = arith.truncf %99 : vector<8x8xf32> to vector<8x8xbf16>
    %101 = vector.extract_strided_slice %28 {offsets = [0, 24], sizes = [8, 8], strides = [1, 1]} : vector<16x32xf32> to vector<8x8xf32>
    %102 = arith.truncf %101 : vector<8x8xf32> to vector<8x8xbf16>
    %cst_29 = arith.constant dense<0.000000e+00> : vector<8x8xf32>
    %103 = tpu.matmul %100, %102, %cst_29 {dimension_numbers = #tpu.dot_dimension_numbers<[1], [0], [0], [1], [0, 0, 1, 1], [], []>} : vector<8x8xbf16>, vector<8x8xbf16>, vector<8x8xf32> -> vector<8x8xf32>
    %c0_30 = arith.constant 0 : index
    %c24 = arith.constant 24 : index
    %104 = vector.load %arg12[%c0_30, %c24] : memref<16x32xf32, #tpu.memory_space<vmem>>, vector<8x8xf32>
    tpu.vector_store %arg12[%c0_30, %c24], %103 {strides = array<i32>} : memref<16x32xf32, #tpu.memory_space<vmem>>, vector<8x8xf32>,
    %105 = vector.extract_strided_slice %26 {offsets = [8, 0], sizes = [8, 8], strides = [1, 1]} : vector<16x32xf32> to vector<8x8xf32>
    %106 = arith.truncf %105 : vector<8x8xf32> to vector<8x8xbf16>
    %107 = vector.extract_strided_slice %27 {offsets = [8, 0], sizes = [8, 8], strides = [1, 1]} : vector<16x32xf32> to vector<8x8xf32>
    %108 = arith.truncf %107 : vector<8x8xf32> to vector<8x8xbf16>
    %cst_31 = arith.constant dense<0.000000e+00> : vector<8x8xf32>
    %109 = tpu.matmul %106, %108, %cst_31 {dimension_numbers = #tpu.dot_dimension_numbers<[1], [1], [0], [0], [0, 0, 1, 0], [], []>} : vector<8x8xbf16>, vector<8x8xbf16>, vector<8x8xf32> -> vector<8x8xf32>
    %cst_32 = arith.constant dense<0xFF800000> : vector<8xf32>
    %110 = vector.multi_reduction <maximumf>, %109, %cst_32 [1] : vector<8x8xf32> to vector<8xf32>
    %111 = vector.shape_cast %110 : vector<8xf32> to vector<8x1xf32>
    %112 = vector.broadcast %111 : vector<8x1xf32> to vector<8x8xf32>
    %113 = arith.subf %109, %112 : vector<8x8xf32>
    %114 = math.exp %113 : vector<8x8xf32>
    %cst_33 = arith.constant dense<0.000000e+00> : vector<8xf32>
    %115 = vector.multi_reduction <add>, %114, %cst_33 [1] : vector<8x8xf32> to vector<8xf32>
    %116 = vector.shape_cast %115 : vector<8xf32> to vector<8x1xf32>
    %117 = vector.broadcast %116 : vector<8x1xf32> to vector<8x8xf32>
    %118 = arith.divf %114, %117 : vector<8x8xf32>
    %119 = arith.truncf %118 : vector<8x8xf32> to vector<8x8xbf16>
    %120 = vector.extract_strided_slice %28 {offsets = [8, 0], sizes = [8, 8], strides = [1, 1]} : vector<16x32xf32> to vector<8x8xf32>
    %121 = arith.truncf %120 : vector<8x8xf32> to vector<8x8xbf16>
    %cst_34 = arith.constant dense<0.000000e+00> : vector<8x8xf32>
    %122 = tpu.matmul %119, %121, %cst_34 {dimension_numbers = #tpu.dot_dimension_numbers<[1], [0], [0], [1], [0, 0, 1, 1], [], []>} : vector<8x8xbf16>, vector<8x8xbf16>, vector<8x8xf32> -> vector<8x8xf32>
    %c8_35 = arith.constant 8 : index
    %c0_36 = arith.constant 0 : index
    %123 = vector.load %arg12[%c8_35, %c0_36] : memref<16x32xf32, #tpu.memory_space<vmem>>, vector<8x8xf32>
    tpu.vector_store %arg12[%c8_35, %c0_36], %122 {strides = array<i32>} : memref<16x32xf32, #tpu.memory_space<vmem>>, vector<8x8xf32>,
    %124 = vector.extract_strided_slice %26 {offsets = [8, 8], sizes = [8, 8], strides = [1, 1]} : vector<16x32xf32> to vector<8x8xf32>
    %125 = arith.truncf %124 : vector<8x8xf32> to vector<8x8xbf16>
    %126 = vector.extract_strided_slice %27 {offsets = [8, 8], sizes = [8, 8], strides = [1, 1]} : vector<16x32xf32> to vector<8x8xf32>
    %127 = arith.truncf %126 : vector<8x8xf32> to vector<8x8xbf16>
    %cst_37 = arith.constant dense<0.000000e+00> : vector<8x8xf32>
    %128 = tpu.matmul %125, %127, %cst_37 {dimension_numbers = #tpu.dot_dimension_numbers<[1], [1], [0], [0], [0, 0, 1, 0], [], []>} : vector<8x8xbf16>, vector<8x8xbf16>, vector<8x8xf32> -> vector<8x8xf32>
    %cst_38 = arith.constant dense<0xFF800000> : vector<8xf32>
    %129 = vector.multi_reduction <maximumf>, %128, %cst_38 [1] : vector<8x8xf32> to vector<8xf32>
    %130 = vector.shape_cast %129 : vector<8xf32> to vector<8x1xf32>
    %131 = vector.broadcast %130 : vector<8x1xf32> to vector<8x8xf32>
    %132 = arith.subf %128, %131 : vector<8x8xf32>
    %133 = math.exp %132 : vector<8x8xf32>
    %cst_39 = arith.constant dense<0.000000e+00> : vector<8xf32>
    %134 = vector.multi_reduction <add>, %133, %cst_39 [1] : vector<8x8xf32> to vector<8xf32>
    %135 = vector.shape_cast %134 : vector<8xf32> to vector<8x1xf32>
    %136 = vector.broadcast %135 : vector<8x1xf32> to vector<8x8xf32>
    %137 = arith.divf %133, %136 : vector<8x8xf32>
    %138 = arith.truncf %137 : vector<8x8xf32> to vector<8x8xbf16>
    %139 = vector.extract_strided_slice %28 {offsets = [8, 8], sizes = [8, 8], strides = [1, 1]} : vector<16x32xf32> to vector<8x8xf32>
    %140 = arith.truncf %139 : vector<8x8xf32> to vector<8x8xbf16>
    %cst_40 = arith.constant dense<0.000000e+00> : vector<8x8xf32>
    %141 = tpu.matmul %138, %140, %cst_40 {dimension_numbers = #tpu.dot_dimension_numbers<[1], [0], [0], [1], [0, 0, 1, 1], [], []>} : vector<8x8xbf16>, vector<8x8xbf16>, vector<8x8xf32> -> vector<8x8xf32>
    %c8_41 = arith.constant 8 : index
    %c8_42 = arith.constant 8 : index
    %142 = vector.load %arg12[%c8_41, %c8_42] : memref<16x32xf32, #tpu.memory_space<vmem>>, vector<8x8xf32>
    tpu.vector_store %arg12[%c8_41, %c8_42], %141 {strides = array<i32>} : memref<16x32xf32, #tpu.memory_space<vmem>>, vector<8x8xf32>,
    %143 = vector.extract_strided_slice %26 {offsets = [8, 16], sizes = [8, 8], strides = [1, 1]} : vector<16x32xf32> to vector<8x8xf32>
    %144 = arith.truncf %143 : vector<8x8xf32> to vector<8x8xbf16>
    %145 = vector.extract_strided_slice %27 {offsets = [8, 16], sizes = [8, 8], strides = [1, 1]} : vector<16x32xf32> to vector<8x8xf32>
    %146 = arith.truncf %145 : vector<8x8xf32> to vector<8x8xbf16>
    %cst_43 = arith.constant dense<0.000000e+00> : vector<8x8xf32>
    %147 = tpu.matmul %144, %146, %cst_43 {dimension_numbers = #tpu.dot_dimension_numbers<[1], [1], [0], [0], [0, 0, 1, 0], [], []>} : vector<8x8xbf16>, vector<8x8xbf16>, vector<8x8xf32> -> vector<8x8xf32>
    %cst_44 = arith.constant dense<0xFF800000> : vector<8xf32>
    %148 = vector.multi_reduction <maximumf>, %147, %cst_44 [1] : vector<8x8xf32> to vector<8xf32>
    %149 = vector.shape_cast %148 : vector<8xf32> to vector<8x1xf32>
    %150 = vector.broadcast %149 : vector<8x1xf32> to vector<8x8xf32>
    %151 = arith.subf %147, %150 : vector<8x8xf32>
    %152 = math.exp %151 : vector<8x8xf32>
    %cst_45 = arith.constant dense<0.000000e+00> : vector<8xf32>
    %153 = vector.multi_reduction <add>, %152, %cst_45 [1] : vector<8x8xf32> to vector<8xf32>
    %154 = vector.shape_cast %153 : vector<8xf32> to vector<8x1xf32>
    %155 = vector.broadcast %154 : vector<8x1xf32> to vector<8x8xf32>
    %156 = arith.divf %152, %155 : vector<8x8xf32>
    %157 = arith.truncf %156 : vector<8x8xf32> to vector<8x8xbf16>
    %158 = vector.extract_strided_slice %28 {offsets = [8, 16], sizes = [8, 8], strides = [1, 1]} : vector<16x32xf32> to vector<8x8xf32>
    %159 = arith.truncf %158 : vector<8x8xf32> to vector<8x8xbf16>
    %cst_46 = arith.constant dense<0.000000e+00> : vector<8x8xf32>
    %160 = tpu.matmul %157, %159, %cst_46 {dimension_numbers = #tpu.dot_dimension_numbers<[1], [0], [0], [1], [0, 0, 1, 1], [], []>} : vector<8x8xbf16>, vector<8x8xbf16>, vector<8x8xf32> -> vector<8x8xf32>
    %c8_47 = arith.constant 8 : index
    %c16_48 = arith.constant 16 : index
    %161 = vector.load %arg12[%c8_47, %c16_48] : memref<16x32xf32, #tpu.memory_space<vmem>>, vector<8x8xf32>
    tpu.vector_store %arg12[%c8_47, %c16_48], %160 {strides = array<i32>} : memref<16x32xf32, #tpu.memory_space<vmem>>, vector<8x8xf32>,
    %162 = vector.extract_strided_slice %26 {offsets = [8, 24], sizes = [8, 8], strides = [1, 1]} : vector<16x32xf32> to vector<8x8xf32>
    %163 = arith.truncf %162 : vector<8x8xf32> to vector<8x8xbf16>
    %164 = vector.extract_strided_slice %27 {offsets = [8, 24], sizes = [8, 8], strides = [1, 1]} : vector<16x32xf32> to vector<8x8xf32>
    %165 = arith.truncf %164 : vector<8x8xf32> to vector<8x8xbf16>
    %cst_49 = arith.constant dense<0.000000e+00> : vector<8x8xf32>
    %166 = tpu.matmul %163, %165, %cst_49 {dimension_numbers = #tpu.dot_dimension_numbers<[1], [1], [0], [0], [0, 0, 1, 0], [], []>} : vector<8x8xbf16>, vector<8x8xbf16>, vector<8x8xf32> -> vector<8x8xf32>
    %cst_50 = arith.constant dense<0xFF800000> : vector<8xf32>
    %167 = vector.multi_reduction <maximumf>, %166, %cst_50 [1] : vector<8x8xf32> to vector<8xf32>
    %168 = vector.shape_cast %167 : vector<8xf32> to vector<8x1xf32>
    %169 = vector.broadcast %168 : vector<8x1xf32> to vector<8x8xf32>
    %170 = arith.subf %166, %169 : vector<8x8xf32>
    %171 = math.exp %170 : vector<8x8xf32>
    %cst_51 = arith.constant dense<0.000000e+00> : vector<8xf32>
    %172 = vector.multi_reduction <add>, %171, %cst_51 [1] : vector<8x8xf32> to vector<8xf32>
    %173 = vector.shape_cast %172 : vector<8xf32> to vector<8x1xf32>
    %174 = vector.broadcast %173 : vector<8x1xf32> to vector<8x8xf32>
    %175 = arith.divf %171, %174 : vector<8x8xf32>
    %176 = arith.truncf %175 : vector<8x8xf32> to vector<8x8xbf16>
    %177 = vector.extract_strided_slice %28 {offsets = [8, 24], sizes = [8, 8], strides = [1, 1]} : vector<16x32xf32> to vector<8x8xf32>
    %178 = arith.truncf %177 : vector<8x8xf32> to vector<8x8xbf16>
    %cst_52 = arith.constant dense<0.000000e+00> : vector<8x8xf32>
    %179 = tpu.matmul %176, %178, %cst_52 {dimension_numbers = #tpu.dot_dimension_numbers<[1], [0], [0], [1], [0, 0, 1, 1], [], []>} : vector<8x8xbf16>, vector<8x8xbf16>, vector<8x8xf32> -> vector<8x8xf32>
    %c8_53 = arith.constant 8 : index
    %c24_54 = arith.constant 24 : index
    %180 = vector.load %arg12[%c8_53, %c24_54] : memref<16x32xf32, #tpu.memory_space<vmem>>, vector<8x8xf32>
    tpu.vector_store %arg12[%c8_53, %c24_54], %179 {strides = array<i32>} : memref<16x32xf32, #tpu.memory_space<vmem>>, vector<8x8xf32>,
    %c0_55 = arith.constant 0 : index
    %c0_56 = arith.constant 0 : index
    %181 = vector.load %arg12[%c0_55, %c0_56] : memref<16x32xf32, #tpu.memory_space<vmem>>, vector<16x32xf32>
    %182 = arith.truncf %181 : vector<16x32xf32> to vector<16x32xbf16>
    %c0_57 = arith.constant 0 : index
    %c0_58 = arith.constant 0 : index
    %c0_59 = arith.constant 0 : index
    %183 = vector.load %arg4[%c0_57, %c0_58, %c0_59] : memref<1x32x32xbf16, #tpu.memory_space<vmem>>, vector<1x32x32xbf16>
    %184 = vector.shape_cast %183 : vector<1x32x32xbf16> to vector<32x32xbf16>
    %cst_60 = arith.constant dense<0.000000e+00> : vector<16x32xf32>
    %185 = tpu.matmul %182, %184, %cst_60 {dimension_numbers = #tpu.dot_dimension_numbers<[1], [0], [0], [1], [0, 0, 1, 1], [], []>} : vector<16x32xbf16>, vector<32x32xbf16>, vector<16x32xf32> -> vector<16x32xf32>
    %186 = vector.broadcast %8 : vector<1x32xf32> to vector<16x32xf32>
    %187 = arith.addf %185, %186 : vector<16x32xf32>
    %188 = arith.addf %3, %187 : vector<16x32xf32>
    %cst_61 = arith.constant dense<0.000000e+00> : vector<16xf32>
    %189 = vector.multi_reduction <add>, %188, %cst_61 [1] : vector<16x32xf32> to vector<16xf32>
    %190 = vector.shape_cast %189 : vector<16xf32> to vector<16x1xf32>
    %cst_62 = arith.constant 3.200000e+01 : f32
    %191 = vector.broadcast %cst_62 : f32 to vector<16x1xf32>
    %192 = arith.divf %190, %191 : vector<16x1xf32>
    %193 = vector.broadcast %192 : vector<16x1xf32> to vector<16x32xf32>
    %194 = arith.subf %188, %193 : vector<16x32xf32>
    %195 = arith.mulf %194, %194 : vector<16x32xf32>
    %cst_63 = arith.constant dense<0.000000e+00> : vector<16xf32>
    %196 = vector.multi_reduction <add>, %195, %cst_63 [1] : vector<16x32xf32> to vector<16xf32>
    %197 = vector.shape_cast %196 : vector<16xf32> to vector<16x1xf32>
    %cst_64 = arith.constant 3.200000e+01 : f32
    %198 = vector.broadcast %cst_64 : f32 to vector<16x1xf32>
    %199 = arith.divf %197, %198 : vector<16x1xf32>
    %cst_65 = arith.constant 9.99999974E-6 : f32
    %200 = vector.broadcast %cst_65 : f32 to vector<16x1xf32>
    %201 = arith.addf %199, %200 : vector<16x1xf32>
    %202 = math.rsqrt %201 : vector<16x1xf32>
    %203 = vector.broadcast %202 : vector<16x1xf32> to vector<16x32xf32>
    %204 = arith.mulf %194, %203 : vector<16x32xf32>
    %205 = vector.broadcast %14 : vector<1x32xf32> to vector<16x32xf32>
    %206 = arith.mulf %204, %205 : vector<16x32xf32>
    %207 = vector.broadcast %15 : vector<1x32xf32> to vector<16x32xf32>
    %208 = arith.addf %206, %207 : vector<16x32xf32>
    %209 = arith.truncf %208 : vector<16x32xf32> to vector<16x32xbf16>
    %c0_66 = arith.constant 0 : index
    %c0_67 = arith.constant 0 : index
    %c0_68 = arith.constant 0 : index
    %210 = vector.load %arg5[%c0_66, %c0_67, %c0_68] : memref<1x32x32xbf16, #tpu.memory_space<vmem>>, vector<1x32x32xbf16>
    %211 = vector.shape_cast %210 : vector<1x32x32xbf16> to vector<32x32xbf16>
    %cst_69 = arith.constant dense<0.000000e+00> : vector<16x32xf32>
    %212 = tpu.matmul %209, %211, %cst_69 {dimension_numbers = #tpu.dot_dimension_numbers<[1], [0], [0], [1], [0, 0, 1, 1], [], []>} : vector<16x32xbf16>, vector<32x32xbf16>, vector<16x32xf32> -> vector<16x32xf32>
    %213 = vector.broadcast %9 : vector<1x32xf32> to vector<16x32xf32>
    %214 = arith.addf %212, %213 : vector<16x32xf32>
    %215 = arith.truncf %4 : vector<32x32xf32> to vector<32x32xbf16>
    %c0_70 = arith.constant 0 : index
    %c0_71 = arith.constant 0 : index
    %c0_72 = arith.constant 0 : index
    %216 = vector.load %arg6[%c0_70, %c0_71, %c0_72] : memref<1x32x64xbf16, #tpu.memory_space<vmem>>, vector<1x32x64xbf16>
    %217 = vector.shape_cast %216 : vector<1x32x64xbf16> to vector<32x64xbf16>
    %cst_73 = arith.constant dense<0.000000e+00> : vector<32x64xf32>
    %218 = tpu.matmul %215, %217, %cst_73 {dimension_numbers = #tpu.dot_dimension_numbers<[1], [0], [0], [1], [0, 0, 1, 1], [], []>} : vector<32x32xbf16>, vector<32x64xbf16>, vector<32x64xf32> -> vector<32x64xf32>
    %219 = vector.broadcast %10 : vector<1x64xf32> to vector<32x64xf32>
    %220 = arith.addf %218, %219 : vector<32x64xf32>
    %221 = vector.extract_strided_slice %220 {offsets = [0, 0], sizes = [32, 32], strides = [1, 1]} : vector<32x64xf32> to vector<32x32xf32>
    %222 = vector.extract_strided_slice %220 {offsets = [0, 32], sizes = [32, 32], strides = [1, 1]} : vector<32x64xf32> to vector<32x32xf32>
    %223 = vector.extract_strided_slice %214 {offsets = [0, 0], sizes = [8, 8], strides = [1, 1]} : vector<16x32xf32> to vector<8x8xf32>
    %224 = arith.truncf %223 : vector<8x8xf32> to vector<8x8xbf16>
    %225 = vector.extract_strided_slice %221 {offsets = [0, 0], sizes = [16, 8], strides = [1, 1]} : vector<32x32xf32> to vector<16x8xf32>
    %226 = arith.truncf %225 : vector<16x8xf32> to vector<16x8xbf16>
    %cst_74 = arith.constant dense<0.000000e+00> : vector<8x16xf32>
    %227 = tpu.matmul %224, %226, %cst_74 {dimension_numbers = #tpu.dot_dimension_numbers<[1], [1], [0], [0], [0, 0, 1, 0], [], []>} : vector<8x8xbf16>, vector<16x8xbf16>, vector<8x16xf32> -> vector<8x16xf32>
    %cst_75 = arith.constant dense<0xFF800000> : vector<8xf32>
    %228 = vector.multi_reduction <maximumf>, %227, %cst_75 [1] : vector<8x16xf32> to vector<8xf32>
    %229 = vector.shape_cast %228 : vector<8xf32> to vector<8x1xf32>
    %230 = vector.broadcast %229 : vector<8x1xf32> to vector<8x16xf32>
    %231 = arith.subf %227, %230 : vector<8x16xf32>
    %232 = math.exp %231 : vector<8x16xf32>
    %cst_76 = arith.constant dense<0.000000e+00> : vector<8xf32>
    %233 = vector.multi_reduction <add>, %232, %cst_76 [1] : vector<8x16xf32> to vector<8xf32>
    %234 = vector.shape_cast %233 : vector<8xf32> to vector<8x1xf32>
    %235 = vector.broadcast %234 : vector<8x1xf32> to vector<8x16xf32>
    %236 = arith.divf %232, %235 : vector<8x16xf32>
    %237 = arith.truncf %236 : vector<8x16xf32> to vector<8x16xbf16>
    %238 = vector.extract_strided_slice %222 {offsets = [0, 0], sizes = [16, 8], strides = [1, 1]} : vector<32x32xf32> to vector<16x8xf32>
    %239 = arith.truncf %238 : vector<16x8xf32> to vector<16x8xbf16>
    %cst_77 = arith.constant dense<0.000000e+00> : vector<8x8xf32>
    %240 = tpu.matmul %237, %239, %cst_77 {dimension_numbers = #tpu.dot_dimension_numbers<[1], [0], [0], [1], [0, 0, 1, 1], [], []>} : vector<8x16xbf16>, vector<16x8xbf16>, vector<8x8xf32> -> vector<8x8xf32>
    %c0_78 = arith.constant 0 : index
    %c0_79 = arith.constant 0 : index
    %241 = vector.load %arg12[%c0_78, %c0_79] : memref<16x32xf32, #tpu.memory_space<vmem>>, vector<8x8xf32>
    tpu.vector_store %arg12[%c0_78, %c0_79], %240 {strides = array<i32>} : memref<16x32xf32, #tpu.memory_space<vmem>>, vector<8x8xf32>,
    %242 = vector.extract_strided_slice %214 {offsets = [0, 8], sizes = [8, 8], strides = [1, 1]} : vector<16x32xf32> to vector<8x8xf32>
    %243 = arith.truncf %242 : vector<8x8xf32> to vector<8x8xbf16>
    %244 = vector.extract_strided_slice %221 {offsets = [0, 8], sizes = [16, 8], strides = [1, 1]} : vector<32x32xf32> to vector<16x8xf32>
    %245 = arith.truncf %244 : vector<16x8xf32> to vector<16x8xbf16>
    %cst_80 = arith.constant dense<0.000000e+00> : vector<8x16xf32>
    %246 = tpu.matmul %243, %245, %cst_80 {dimension_numbers = #tpu.dot_dimension_numbers<[1], [1], [0], [0], [0, 0, 1, 0], [], []>} : vector<8x8xbf16>, vector<16x8xbf16>, vector<8x16xf32> -> vector<8x16xf32>
    %cst_81 = arith.constant dense<0xFF800000> : vector<8xf32>
    %247 = vector.multi_reduction <maximumf>, %246, %cst_81 [1] : vector<8x16xf32> to vector<8xf32>
    %248 = vector.shape_cast %247 : vector<8xf32> to vector<8x1xf32>
    %249 = vector.broadcast %248 : vector<8x1xf32> to vector<8x16xf32>
    %250 = arith.subf %246, %249 : vector<8x16xf32>
    %251 = math.exp %250 : vector<8x16xf32>
    %cst_82 = arith.constant dense<0.000000e+00> : vector<8xf32>
    %252 = vector.multi_reduction <add>, %251, %cst_82 [1] : vector<8x16xf32> to vector<8xf32>
    %253 = vector.shape_cast %252 : vector<8xf32> to vector<8x1xf32>
    %254 = vector.broadcast %253 : vector<8x1xf32> to vector<8x16xf32>
    %255 = arith.divf %251, %254 : vector<8x16xf32>
    %256 = arith.truncf %255 : vector<8x16xf32> to vector<8x16xbf16>
    %257 = vector.extract_strided_slice %222 {offsets = [0, 8], sizes = [16, 8], strides = [1, 1]} : vector<32x32xf32> to vector<16x8xf32>
    %258 = arith.truncf %257 : vector<16x8xf32> to vector<16x8xbf16>
    %cst_83 = arith.constant dense<0.000000e+00> : vector<8x8xf32>
    %259 = tpu.matmul %256, %258, %cst_83 {dimension_numbers = #tpu.dot_dimension_numbers<[1], [0], [0], [1], [0, 0, 1, 1], [], []>} : vector<8x16xbf16>, vector<16x8xbf16>, vector<8x8xf32> -> vector<8x8xf32>
    %c0_84 = arith.constant 0 : index
    %c8_85 = arith.constant 8 : index
    %260 = vector.load %arg12[%c0_84, %c8_85] : memref<16x32xf32, #tpu.memory_space<vmem>>, vector<8x8xf32>
    tpu.vector_store %arg12[%c0_84, %c8_85], %259 {strides = array<i32>} : memref<16x32xf32, #tpu.memory_space<vmem>>, vector<8x8xf32>,
    %261 = vector.extract_strided_slice %214 {offsets = [0, 16], sizes = [8, 8], strides = [1, 1]} : vector<16x32xf32> to vector<8x8xf32>
    %262 = arith.truncf %261 : vector<8x8xf32> to vector<8x8xbf16>
    %263 = vector.extract_strided_slice %221 {offsets = [0, 16], sizes = [16, 8], strides = [1, 1]} : vector<32x32xf32> to vector<16x8xf32>
    %264 = arith.truncf %263 : vector<16x8xf32> to vector<16x8xbf16>
    %cst_86 = arith.constant dense<0.000000e+00> : vector<8x16xf32>
    %265 = tpu.matmul %262, %264, %cst_86 {dimension_numbers = #tpu.dot_dimension_numbers<[1], [1], [0], [0], [0, 0, 1, 0], [], []>} : vector<8x8xbf16>, vector<16x8xbf16>, vector<8x16xf32> -> vector<8x16xf32>
    %cst_87 = arith.constant dense<0xFF800000> : vector<8xf32>
    %266 = vector.multi_reduction <maximumf>, %265, %cst_87 [1] : vector<8x16xf32> to vector<8xf32>
    %267 = vector.shape_cast %266 : vector<8xf32> to vector<8x1xf32>
    %268 = vector.broadcast %267 : vector<8x1xf32> to vector<8x16xf32>
    %269 = arith.subf %265, %268 : vector<8x16xf32>
    %270 = math.exp %269 : vector<8x16xf32>
    %cst_88 = arith.constant dense<0.000000e+00> : vector<8xf32>
    %271 = vector.multi_reduction <add>, %270, %cst_88 [1] : vector<8x16xf32> to vector<8xf32>
    %272 = vector.shape_cast %271 : vector<8xf32> to vector<8x1xf32>
    %273 = vector.broadcast %272 : vector<8x1xf32> to vector<8x16xf32>
    %274 = arith.divf %270, %273 : vector<8x16xf32>
    %275 = arith.truncf %274 : vector<8x16xf32> to vector<8x16xbf16>
    %276 = vector.extract_strided_slice %222 {offsets = [0, 16], sizes = [16, 8], strides = [1, 1]} : vector<32x32xf32> to vector<16x8xf32>
    %277 = arith.truncf %276 : vector<16x8xf32> to vector<16x8xbf16>
    %cst_89 = arith.constant dense<0.000000e+00> : vector<8x8xf32>
    %278 = tpu.matmul %275, %277, %cst_89 {dimension_numbers = #tpu.dot_dimension_numbers<[1], [0], [0], [1], [0, 0, 1, 1], [], []>} : vector<8x16xbf16>, vector<16x8xbf16>, vector<8x8xf32> -> vector<8x8xf32>
    %c0_90 = arith.constant 0 : index
    %c16_91 = arith.constant 16 : index
    %279 = vector.load %arg12[%c0_90, %c16_91] : memref<16x32xf32, #tpu.memory_space<vmem>>, vector<8x8xf32>
    tpu.vector_store %arg12[%c0_90, %c16_91], %278 {strides = array<i32>} : memref<16x32xf32, #tpu.memory_space<vmem>>, vector<8x8xf32>,
    %280 = vector.extract_strided_slice %214 {offsets = [0, 24], sizes = [8, 8], strides = [1, 1]} : vector<16x32xf32> to vector<8x8xf32>
    %281 = arith.truncf %280 : vector<8x8xf32> to vector<8x8xbf16>
    %282 = vector.extract_strided_slice %221 {offsets = [0, 24], sizes = [16, 8], strides = [1, 1]} : vector<32x32xf32> to vector<16x8xf32>
    %283 = arith.truncf %282 : vector<16x8xf32> to vector<16x8xbf16>
    %cst_92 = arith.constant dense<0.000000e+00> : vector<8x16xf32>
    %284 = tpu.matmul %281, %283, %cst_92 {dimension_numbers = #tpu.dot_dimension_numbers<[1], [1], [0], [0], [0, 0, 1, 0], [], []>} : vector<8x8xbf16>, vector<16x8xbf16>, vector<8x16xf32> -> vector<8x16xf32>
    %cst_93 = arith.constant dense<0xFF800000> : vector<8xf32>
    %285 = vector.multi_reduction <maximumf>, %284, %cst_93 [1] : vector<8x16xf32> to vector<8xf32>
    %286 = vector.shape_cast %285 : vector<8xf32> to vector<8x1xf32>
    %287 = vector.broadcast %286 : vector<8x1xf32> to vector<8x16xf32>
    %288 = arith.subf %284, %287 : vector<8x16xf32>
    %289 = math.exp %288 : vector<8x16xf32>
    %cst_94 = arith.constant dense<0.000000e+00> : vector<8xf32>
    %290 = vector.multi_reduction <add>, %289, %cst_94 [1] : vector<8x16xf32> to vector<8xf32>
    %291 = vector.shape_cast %290 : vector<8xf32> to vector<8x1xf32>
    %292 = vector.broadcast %291 : vector<8x1xf32> to vector<8x16xf32>
    %293 = arith.divf %289, %292 : vector<8x16xf32>
    %294 = arith.truncf %293 : vector<8x16xf32> to vector<8x16xbf16>
    %295 = vector.extract_strided_slice %222 {offsets = [0, 24], sizes = [16, 8], strides = [1, 1]} : vector<32x32xf32> to vector<16x8xf32>
    %296 = arith.truncf %295 : vector<16x8xf32> to vector<16x8xbf16>
    %cst_95 = arith.constant dense<0.000000e+00> : vector<8x8xf32>
    %297 = tpu.matmul %294, %296, %cst_95 {dimension_numbers = #tpu.dot_dimension_numbers<[1], [0], [0], [1], [0, 0, 1, 1], [], []>} : vector<8x16xbf16>, vector<16x8xbf16>, vector<8x8xf32> -> vector<8x8xf32>
    %c0_96 = arith.constant 0 : index
    %c24_97 = arith.constant 24 : index
    %298 = vector.load %arg12[%c0_96, %c24_97] : memref<16x32xf32, #tpu.memory_space<vmem>>, vector<8x8xf32>
    tpu.vector_store %arg12[%c0_96, %c24_97], %297 {strides = array<i32>} : memref<16x32xf32, #tpu.memory_space<vmem>>, vector<8x8xf32>,
    %299 = vector.extract_strided_slice %214 {offsets = [8, 0], sizes = [8, 8], strides = [1, 1]} : vector<16x32xf32> to vector<8x8xf32>
    %300 = arith.truncf %299 : vector<8x8xf32> to vector<8x8xbf16>
    %301 = vector.extract_strided_slice %221 {offsets = [16, 0], sizes = [16, 8], strides = [1, 1]} : vector<32x32xf32> to vector<16x8xf32>
    %302 = arith.truncf %301 : vector<16x8xf32> to vector<16x8xbf16>
    %cst_98 = arith.constant dense<0.000000e+00> : vector<8x16xf32>
    %303 = tpu.matmul %300, %302, %cst_98 {dimension_numbers = #tpu.dot_dimension_numbers<[1], [1], [0], [0], [0, 0, 1, 0], [], []>} : vector<8x8xbf16>, vector<16x8xbf16>, vector<8x16xf32> -> vector<8x16xf32>
    %cst_99 = arith.constant dense<0xFF800000> : vector<8xf32>
    %304 = vector.multi_reduction <maximumf>, %303, %cst_99 [1] : vector<8x16xf32> to vector<8xf32>
    %305 = vector.shape_cast %304 : vector<8xf32> to vector<8x1xf32>
    %306 = vector.broadcast %305 : vector<8x1xf32> to vector<8x16xf32>
    %307 = arith.subf %303, %306 : vector<8x16xf32>
    %308 = math.exp %307 : vector<8x16xf32>
    %cst_100 = arith.constant dense<0.000000e+00> : vector<8xf32>
    %309 = vector.multi_reduction <add>, %308, %cst_100 [1] : vector<8x16xf32> to vector<8xf32>
    %310 = vector.shape_cast %309 : vector<8xf32> to vector<8x1xf32>
    %311 = vector.broadcast %310 : vector<8x1xf32> to vector<8x16xf32>
    %312 = arith.divf %308, %311 : vector<8x16xf32>
    %313 = arith.truncf %312 : vector<8x16xf32> to vector<8x16xbf16>
    %314 = vector.extract_strided_slice %222 {offsets = [16, 0], sizes = [16, 8], strides = [1, 1]} : vector<32x32xf32> to vector<16x8xf32>
    %315 = arith.truncf %314 : vector<16x8xf32> to vector<16x8xbf16>
    %cst_101 = arith.constant dense<0.000000e+00> : vector<8x8xf32>
    %316 = tpu.matmul %313, %315, %cst_101 {dimension_numbers = #tpu.dot_dimension_numbers<[1], [0], [0], [1], [0, 0, 1, 1], [], []>} : vector<8x16xbf16>, vector<16x8xbf16>, vector<8x8xf32> -> vector<8x8xf32>
    %c8_102 = arith.constant 8 : index
    %c0_103 = arith.constant 0 : index
    %317 = vector.load %arg12[%c8_102, %c0_103] : memref<16x32xf32, #tpu.memory_space<vmem>>, vector<8x8xf32>
    tpu.vector_store %arg12[%c8_102, %c0_103], %316 {strides = array<i32>} : memref<16x32xf32, #tpu.memory_space<vmem>>, vector<8x8xf32>,
    %318 = vector.extract_strided_slice %214 {offsets = [8, 8], sizes = [8, 8], strides = [1, 1]} : vector<16x32xf32> to vector<8x8xf32>
    %319 = arith.truncf %318 : vector<8x8xf32> to vector<8x8xbf16>
    %320 = vector.extract_strided_slice %221 {offsets = [16, 8], sizes = [16, 8], strides = [1, 1]} : vector<32x32xf32> to vector<16x8xf32>
    %321 = arith.truncf %320 : vector<16x8xf32> to vector<16x8xbf16>
    %cst_104 = arith.constant dense<0.000000e+00> : vector<8x16xf32>
    %322 = tpu.matmul %319, %321, %cst_104 {dimension_numbers = #tpu.dot_dimension_numbers<[1], [1], [0], [0], [0, 0, 1, 0], [], []>} : vector<8x8xbf16>, vector<16x8xbf16>, vector<8x16xf32> -> vector<8x16xf32>
    %cst_105 = arith.constant dense<0xFF800000> : vector<8xf32>
    %323 = vector.multi_reduction <maximumf>, %322, %cst_105 [1] : vector<8x16xf32> to vector<8xf32>
    %324 = vector.shape_cast %323 : vector<8xf32> to vector<8x1xf32>
    %325 = vector.broadcast %324 : vector<8x1xf32> to vector<8x16xf32>
    %326 = arith.subf %322, %325 : vector<8x16xf32>
    %327 = math.exp %326 : vector<8x16xf32>
    %cst_106 = arith.constant dense<0.000000e+00> : vector<8xf32>
    %328 = vector.multi_reduction <add>, %327, %cst_106 [1] : vector<8x16xf32> to vector<8xf32>
    %329 = vector.shape_cast %328 : vector<8xf32> to vector<8x1xf32>
    %330 = vector.broadcast %329 : vector<8x1xf32> to vector<8x16xf32>
    %331 = arith.divf %327, %330 : vector<8x16xf32>
    %332 = arith.truncf %331 : vector<8x16xf32> to vector<8x16xbf16>
    %333 = vector.extract_strided_slice %222 {offsets = [16, 8], sizes = [16, 8], strides = [1, 1]} : vector<32x32xf32> to vector<16x8xf32>
    %334 = arith.truncf %333 : vector<16x8xf32> to vector<16x8xbf16>
    %cst_107 = arith.constant dense<0.000000e+00> : vector<8x8xf32>
    %335 = tpu.matmul %332, %334, %cst_107 {dimension_numbers = #tpu.dot_dimension_numbers<[1], [0], [0], [1], [0, 0, 1, 1], [], []>} : vector<8x16xbf16>, vector<16x8xbf16>, vector<8x8xf32> -> vector<8x8xf32>
    %c8_108 = arith.constant 8 : index
    %c8_109 = arith.constant 8 : index
    %336 = vector.load %arg12[%c8_108, %c8_109] : memref<16x32xf32, #tpu.memory_space<vmem>>, vector<8x8xf32>
    tpu.vector_store %arg12[%c8_108, %c8_109], %335 {strides = array<i32>} : memref<16x32xf32, #tpu.memory_space<vmem>>, vector<8x8xf32>,
    %337 = vector.extract_strided_slice %214 {offsets = [8, 16], sizes = [8, 8], strides = [1, 1]} : vector<16x32xf32> to vector<8x8xf32>
    %338 = arith.truncf %337 : vector<8x8xf32> to vector<8x8xbf16>
    %339 = vector.extract_strided_slice %221 {offsets = [16, 16], sizes = [16, 8], strides = [1, 1]} : vector<32x32xf32> to vector<16x8xf32>
    %340 = arith.truncf %339 : vector<16x8xf32> to vector<16x8xbf16>
    %cst_110 = arith.constant dense<0.000000e+00> : vector<8x16xf32>
    %341 = tpu.matmul %338, %340, %cst_110 {dimension_numbers = #tpu.dot_dimension_numbers<[1], [1], [0], [0], [0, 0, 1, 0], [], []>} : vector<8x8xbf16>, vector<16x8xbf16>, vector<8x16xf32> -> vector<8x16xf32>
    %cst_111 = arith.constant dense<0xFF800000> : vector<8xf32>
    %342 = vector.multi_reduction <maximumf>, %341, %cst_111 [1] : vector<8x16xf32> to vector<8xf32>
    %343 = vector.shape_cast %342 : vector<8xf32> to vector<8x1xf32>
    %344 = vector.broadcast %343 : vector<8x1xf32> to vector<8x16xf32>
    %345 = arith.subf %341, %344 : vector<8x16xf32>
    %346 = math.exp %345 : vector<8x16xf32>
    %cst_112 = arith.constant dense<0.000000e+00> : vector<8xf32>
    %347 = vector.multi_reduction <add>, %346, %cst_112 [1] : vector<8x16xf32> to vector<8xf32>
    %348 = vector.shape_cast %347 : vector<8xf32> to vector<8x1xf32>
    %349 = vector.broadcast %348 : vector<8x1xf32> to vector<8x16xf32>
    %350 = arith.divf %346, %349 : vector<8x16xf32>
    %351 = arith.truncf %350 : vector<8x16xf32> to vector<8x16xbf16>
    %352 = vector.extract_strided_slice %222 {offsets = [16, 16], sizes = [16, 8], strides = [1, 1]} : vector<32x32xf32> to vector<16x8xf32>
    %353 = arith.truncf %352 : vector<16x8xf32> to vector<16x8xbf16>
    %cst_113 = arith.constant dense<0.000000e+00> : vector<8x8xf32>
    %354 = tpu.matmul %351, %353, %cst_113 {dimension_numbers = #tpu.dot_dimension_numbers<[1], [0], [0], [1], [0, 0, 1, 1], [], []>} : vector<8x16xbf16>, vector<16x8xbf16>, vector<8x8xf32> -> vector<8x8xf32>
    %c8_114 = arith.constant 8 : index
    %c16_115 = arith.constant 16 : index
    %355 = vector.load %arg12[%c8_114, %c16_115] : memref<16x32xf32, #tpu.memory_space<vmem>>, vector<8x8xf32>
    tpu.vector_store %arg12[%c8_114, %c16_115], %354 {strides = array<i32>} : memref<16x32xf32, #tpu.memory_space<vmem>>, vector<8x8xf32>,
    %356 = vector.extract_strided_slice %214 {offsets = [8, 24], sizes = [8, 8], strides = [1, 1]} : vector<16x32xf32> to vector<8x8xf32>
    %357 = arith.truncf %356 : vector<8x8xf32> to vector<8x8xbf16>
    %358 = vector.extract_strided_slice %221 {offsets = [16, 24], sizes = [16, 8], strides = [1, 1]} : vector<32x32xf32> to vector<16x8xf32>
    %359 = arith.truncf %358 : vector<16x8xf32> to vector<16x8xbf16>
    %cst_116 = arith.constant dense<0.000000e+00> : vector<8x16xf32>
    %360 = tpu.matmul %357, %359, %cst_116 {dimension_numbers = #tpu.dot_dimension_numbers<[1], [1], [0], [0], [0, 0, 1, 0], [], []>} : vector<8x8xbf16>, vector<16x8xbf16>, vector<8x16xf32> -> vector<8x16xf32>
    %cst_117 = arith.constant dense<0xFF800000> : vector<8xf32>
    %361 = vector.multi_reduction <maximumf>, %360, %cst_117 [1] : vector<8x16xf32> to vector<8xf32>
    %362 = vector.shape_cast %361 : vector<8xf32> to vector<8x1xf32>
    %363 = vector.broadcast %362 : vector<8x1xf32> to vector<8x16xf32>
    %364 = arith.subf %360, %363 : vector<8x16xf32>
    %365 = math.exp %364 : vector<8x16xf32>
    %cst_118 = arith.constant dense<0.000000e+00> : vector<8xf32>
    %366 = vector.multi_reduction <add>, %365, %cst_118 [1] : vector<8x16xf32> to vector<8xf32>
    %367 = vector.shape_cast %366 : vector<8xf32> to vector<8x1xf32>
    %368 = vector.broadcast %367 : vector<8x1xf32> to vector<8x16xf32>
    %369 = arith.divf %365, %368 : vector<8x16xf32>
    %370 = arith.truncf %369 : vector<8x16xf32> to vector<8x16xbf16>
    %371 = vector.extract_strided_slice %222 {offsets = [16, 24], sizes = [16, 8], strides = [1, 1]} : vector<32x32xf32> to vector<16x8xf32>
    %372 = arith.truncf %371 : vector<16x8xf32> to vector<16x8xbf16>
    %cst_119 = arith.constant dense<0.000000e+00> : vector<8x8xf32>
    %373 = tpu.matmul %370, %372, %cst_119 {dimension_numbers = #tpu.dot_dimension_numbers<[1], [0], [0], [1], [0, 0, 1, 1], [], []>} : vector<8x16xbf16>, vector<16x8xbf16>, vector<8x8xf32> -> vector<8x8xf32>
    %c8_120 = arith.constant 8 : index
    %c24_121 = arith.constant 24 : index
    %374 = vector.load %arg12[%c8_120, %c24_121] : memref<16x32xf32, #tpu.memory_space<vmem>>, vector<8x8xf32>
    tpu.vector_store %arg12[%c8_120, %c24_121], %373 {strides = array<i32>} : memref<16x32xf32, #tpu.memory_space<vmem>>, vector<8x8xf32>,
    %c0_122 = arith.constant 0 : index
    %c0_123 = arith.constant 0 : index
    %375 = vector.load %arg12[%c0_122, %c0_123] : memref<16x32xf32, #tpu.memory_space<vmem>>, vector<16x32xf32>
    %376 = arith.truncf %375 : vector<16x32xf32> to vector<16x32xbf16>
    %c0_124 = arith.constant 0 : index
    %c0_125 = arith.constant 0 : index
    %c0_126 = arith.constant 0 : index
    %377 = vector.load %arg7[%c0_124, %c0_125, %c0_126] : memref<1x32x32xbf16, #tpu.memory_space<vmem>>, vector<1x32x32xbf16>
    %378 = vector.shape_cast %377 : vector<1x32x32xbf16> to vector<32x32xbf16>
    %cst_127 = arith.constant dense<0.000000e+00> : vector<16x32xf32>
    %379 = tpu.matmul %376, %378, %cst_127 {dimension_numbers = #tpu.dot_dimension_numbers<[1], [0], [0], [1], [0, 0, 1, 1], [], []>} : vector<16x32xbf16>, vector<32x32xbf16>, vector<16x32xf32> -> vector<16x32xf32>
    %380 = vector.broadcast %11 : vector<1x32xf32> to vector<16x32xf32>
    %381 = arith.addf %379, %380 : vector<16x32xf32>
    %382 = arith.addf %208, %381 : vector<16x32xf32>
    %cst_128 = arith.constant dense<0.000000e+00> : vector<16xf32>
    %383 = vector.multi_reduction <add>, %382, %cst_128 [1] : vector<16x32xf32> to vector<16xf32>
    %384 = vector.shape_cast %383 : vector<16xf32> to vector<16x1xf32>
    %cst_129 = arith.constant 3.200000e+01 : f32
    %385 = vector.broadcast %cst_129 : f32 to vector<16x1xf32>
    %386 = arith.divf %384, %385 : vector<16x1xf32>
    %387 = vector.broadcast %386 : vector<16x1xf32> to vector<16x32xf32>
    %388 = arith.subf %382, %387 : vector<16x32xf32>
    %389 = arith.mulf %388, %388 : vector<16x32xf32>
    %cst_130 = arith.constant dense<0.000000e+00> : vector<16xf32>
    %390 = vector.multi_reduction <add>, %389, %cst_130 [1] : vector<16x32xf32> to vector<16xf32>
    %391 = vector.shape_cast %390 : vector<16xf32> to vector<16x1xf32>
    %cst_131 = arith.constant 3.200000e+01 : f32
    %392 = vector.broadcast %cst_131 : f32 to vector<16x1xf32>
    %393 = arith.divf %391, %392 : vector<16x1xf32>
    %cst_132 = arith.constant 9.99999974E-6 : f32
    %394 = vector.broadcast %cst_132 : f32 to vector<16x1xf32>
    %395 = arith.addf %393, %394 : vector<16x1xf32>
    %396 = math.rsqrt %395 : vector<16x1xf32>
    %397 = vector.broadcast %396 : vector<16x1xf32> to vector<16x32xf32>
    %398 = arith.mulf %388, %397 : vector<16x32xf32>
    %399 = vector.broadcast %16 : vector<1x32xf32> to vector<16x32xf32>
    %400 = arith.mulf %398, %399 : vector<16x32xf32>
    %401 = vector.broadcast %17 : vector<1x32xf32> to vector<16x32xf32>
    %402 = arith.addf %400, %401 : vector<16x32xf32>
    %403 = arith.truncf %402 : vector<16x32xf32> to vector<16x32xbf16>
    %c0_133 = arith.constant 0 : index
    %c0_134 = arith.constant 0 : index
    %c0_135 = arith.constant 0 : index
    %404 = vector.load %arg8[%c0_133, %c0_134, %c0_135] : memref<1x32x64xbf16, #tpu.memory_space<vmem>>, vector<1x32x64xbf16>
    %405 = vector.shape_cast %404 : vector<1x32x64xbf16> to vector<32x64xbf16>
    %cst_136 = arith.constant dense<0.000000e+00> : vector<16x64xf32>
    %406 = tpu.matmul %403, %405, %cst_136 {dimension_numbers = #tpu.dot_dimension_numbers<[1], [0], [0], [1], [0, 0, 1, 1], [], []>} : vector<16x32xbf16>, vector<32x64xbf16>, vector<16x64xf32> -> vector<16x64xf32>
    %407 = vector.broadcast %12 : vector<1x64xf32> to vector<16x64xf32>
    %408 = arith.addf %406, %407 : vector<16x64xf32>
    %cst_137 = arith.constant 0.000000e+00 : f32
    %409 = vector.broadcast %cst_137 : f32 to vector<16x64xf32>
    %410 = arith.maximumf %408, %409 : vector<16x64xf32>
    %411 = arith.truncf %410 : vector<16x64xf32> to vector<16x64xbf16>
    %c0_138 = arith.constant 0 : index
    %c0_139 = arith.constant 0 : index
    %c0_140 = arith.constant 0 : index
    %412 = vector.load %arg9[%c0_138, %c0_139, %c0_140] : memref<1x64x32xbf16, #tpu.memory_space<vmem>>, vector<1x64x32xbf16>
    %413 = vector.shape_cast %412 : vector<1x64x32xbf16> to vector<64x32xbf16>
    %cst_141 = arith.constant dense<0.000000e+00> : vector<16x32xf32>
    %414 = tpu.matmul %411, %413, %cst_141 {dimension_numbers = #tpu.dot_dimension_numbers<[1], [0], [0], [1], [0, 0, 1, 1], [], []>} : vector<16x64xbf16>, vector<64x32xbf16>, vector<16x32xf32> -> vector<16x32xf32>
    %415 = vector.broadcast %13 : vector<1x32xf32> to vector<16x32xf32>
    %416 = arith.addf %414, %415 : vector<16x32xf32>
    %cst_142 = arith.constant dense<0.000000e+00> : vector<16xf32>
    %417 = vector.multi_reduction <add>, %416, %cst_142 [1] : vector<16x32xf32> to vector<16xf32>
    %418 = vector.shape_cast %417 : vector<16xf32> to vector<16x1xf32>
    %cst_143 = arith.constant 3.200000e+01 : f32
    %419 = vector.broadcast %cst_143 : f32 to vector<16x1xf32>
    %420 = arith.divf %418, %419 : vector<16x1xf32>
    %421 = vector.broadcast %420 : vector<16x1xf32> to vector<16x32xf32>
    %422 = arith.subf %416, %421 : vector<16x32xf32>
    %423 = arith.mulf %422, %422 : vector<16x32xf32>
    %cst_144 = arith.constant dense<0.000000e+00> : vector<16xf32>
    %424 = vector.multi_reduction <add>, %423, %cst_144 [1] : vector<16x32xf32> to vector<16xf32>
    %425 = vector.shape_cast %424 : vector<16xf32> to vector<16x1xf32>
    %cst_145 = arith.constant 3.200000e+01 : f32
    %426 = vector.broadcast %cst_145 : f32 to vector<16x1xf32>
    %427 = arith.divf %425, %426 : vector<16x1xf32>
    %cst_146 = arith.constant 9.99999974E-6 : f32
    %428 = vector.broadcast %cst_146 : f32 to vector<16x1xf32>
    %429 = arith.addf %427, %428 : vector<16x1xf32>
    %430 = math.rsqrt %429 : vector<16x1xf32>
    %431 = vector.broadcast %430 : vector<16x1xf32> to vector<16x32xf32>
    %432 = arith.mulf %422, %431 : vector<16x32xf32>
    %433 = vector.broadcast %18 : vector<1x32xf32> to vector<16x32xf32>
    %434 = arith.mulf %432, %433 : vector<16x32xf32>
    %435 = vector.broadcast %19 : vector<1x32xf32> to vector<16x32xf32>
    %436 = arith.addf %434, %435 : vector<16x32xf32>
    %c0_147 = arith.constant 0 : index
    %c0_148 = arith.constant 0 : index
    %437 = vector.load %arg11[%c0_147, %c0_148] : memref<16x32xf32, #tpu.memory_space<vmem>>, vector<16x32xf32>
    tpu.vector_store %arg11[%c0_147, %c0_148], %436 {strides = array<i32>} : memref<16x32xf32, #tpu.memory_space<vmem>>, vector<16x32xf32>,
    return
  }
  func.func @transform_0(%arg0: i32) -> (i32, i32) {
    %c0_i32 = arith.constant 0 : i32
    %c0_i32_0 = arith.constant 0 : i32
    %c0_i32_1 = arith.constant 0 : i32
    return %c0_i32, %c0_i32_0 : i32, i32
  }
  func.func @transform_1(%arg0: i32) -> (i32, i32) {
    %c0_i32 = arith.constant 0 : i32
    %c0_i32_0 = arith.constant 0 : i32
    %c0_i32_1 = arith.constant 0 : i32
    return %c0_i32, %c0_i32_0 : i32, i32
  }
  func.func @transform_2(%arg0: i32) -> (i32, i32, i32) {
    %c0_i32 = arith.constant 0 : i32
    %c0_i32_0 = arith.constant 0 : i32
    %c0_i32_1 = arith.constant 0 : i32
    return %arg0, %c0_i32, %c0_i32_0 : i32, i32, i32
  }
  func.func @transform_3(%arg0: i32) -> (i32, i32, i32) {
    %c0_i32 = arith.constant 0 : i32
    %c0_i32_0 = arith.constant 0 : i32
    %c0_i32_1 = arith.constant 0 : i32
    return %arg0, %c0_i32, %c0_i32_0 : i32, i32, i32
  }
  func.func @transform_4(%arg0: i32) -> (i32, i32, i32) {
    %c0_i32 = arith.constant 0 : i32
    %c0_i32_0 = arith.constant 0 : i32
    %c0_i32_1 = arith.constant 0 : i32
    return %arg0, %c0_i32, %c0_i32_0 : i32, i32, i32
  }
  func.func @transform_5(%arg0: i32) -> (i32, i32, i32) {
    %c0_i32 = arith.constant 0 : i32
    %c0_i32_0 = arith.constant 0 : i32
    %c0_i32_1 = arith.constant 0 : i32
    return %arg0, %c0_i32, %c0_i32_0 : i32, i32, i32
  }
  func.func @transform_6(%arg0: i32) -> (i32, i32, i32) {
    %c0_i32 = arith.constant 0 : i32
    %c0_i32_0 = arith.constant 0 : i32
    %c0_i32_1 = arith.constant 0 : i32
    return %arg0, %c0_i32, %c0_i32_0 : i32, i32, i32
  }
  func.func @transform_7(%arg0: i32) -> (i32, i32, i32) {
    %c0_i32 = arith.constant 0 : i32
    %c0_i32_0 = arith.constant 0 : i32
    %c0_i32_1 = arith.constant 0 : i32
    return %arg0, %c0_i32, %c0_i32_0 : i32, i32, i32
  }
  func.func @transform_8(%arg0: i32) -> (i32, i32, i32) {
    %c0_i32 = arith.constant 0 : i32
    %c0_i32_0 = arith.constant 0 : i32
    %c0_i32_1 = arith.constant 0 : i32
    return %arg0, %c0_i32, %c0_i32_0 : i32, i32, i32
  }
  func.func @transform_9(%arg0: i32) -> (i32, i32, i32) {
    %c0_i32 = arith.constant 0 : i32
    %c0_i32_0 = arith.constant 0 : i32
    %c0_i32_1 = arith.constant 0 : i32
    return %arg0, %c0_i32, %c0_i32_0 : i32, i32, i32
  }
  func.func @transform_10(%arg0: i32) -> (i32, i32) {
    %c0_i32 = arith.constant 0 : i32
    %c0_i32_0 = arith.constant 0 : i32
    %c0_i32_1 = arith.constant 0 : i32
    return %c0_i32, %c0_i32_0 : i32, i32
  }
}

</mosaic_0001>

<llo_original>
// kernel: tpu_custom_call.1
$region0: #{tpu_custom_call.1}
  #allocation0 [shape = 'u32[]', space=smem, size = 0x4, offset = 0x4, fixed_abs, tag = 'smem constant byte address 0x4 - core index']
  #allocation1 [shape = 'u32[144,128]{1,0:T(1,128)}', space=vmem, size = 0x12000, scoped, tag = 'internal scratch']
  #allocation2 [shape = 'f32[16,32]{1,0:T(8,128)}', space=vmem, size = 0x2000, scoped, tag = 'scratch operand']
  %s0 = inlined_call_operand.hbm [shape: f32[16,32], index: 0, kind: input, shape index: {}]
  %s1 = inlined_call_operand.vmem [shape: f32[32,32], index: 1, kind: input, shape index: {}]
  %s2 = inlined_call_operand.vmem [shape: bf16[2,32,96], index: 2, kind: input, shape index: {}]
  %s3 = inlined_call_operand.vmem [shape: bf16[2,32,32], index: 3, kind: input, shape index: {}]
  %s4 = inlined_call_operand.hbm [shape: bf16[2,32,32], index: 4, kind: input, shape index: {}]
  %s5 = inlined_call_operand.hbm [shape: bf16[2,32,64], index: 5, kind: input, shape index: {}]
  %s6 = inlined_call_operand.hbm [shape: bf16[2,32,32], index: 6, kind: input, shape index: {}]
  %s7 = inlined_call_operand.hbm [shape: bf16[2,32,64], index: 7, kind: input, shape index: {}]
  %s8 = inlined_call_operand.vmem [shape: bf16[2,64,32], index: 8, kind: input, shape index: {}]
  %s9 = inlined_call_operand.vmem [shape: f32[2,16,96], index: 9, kind: input, shape index: {}]
  %s10 = inlined_call_operand.hbm [shape: f32[16,32], index: 10, kind: output, shape index: {}]
  %s11 = sld [smem:[#allocation0]]
  $region97: #{tpu_custom_call.1} parent=0
    _
  %s13 = ssub.s32 1, %s11
  %s14 = scalar_select 0, %s13, %s11
  $region1: #{tpu_custom_call.1} parent=0
    #allocation3 [shape = 'u8[8192]{0}', space=vmem, size = 0x2000, scoped, tag = 'input window, operand 0, single buffered']
    #allocation4 [shape = 's32[2]{0}', space=sflag, size = 0x8, scoped, tag = 'scoped memory for tpu_custom_call.1']
    #allocation5 [shape = 's32[2]{0}', space=sflag, size = 0x8, scoped, tag = 'scoped memory for tpu_custom_call.1']
    #allocation6 [shape = 'u8[16384]{0}', space=vmem, size = 0x4000, scoped, tag = 'input window, operand 4']
    #allocation7 [shape = 's32[2]{0}', space=sflag, size = 0x8, scoped, tag = 'scoped memory for tpu_custom_call.1']
    #allocation8 [shape = 'u8[16384]{0}', space=vmem, size = 0x4000, scoped, tag = 'input window, operand 5']
    #allocation9 [shape = 'u8[16384]{0}', space=vmem, size = 0x4000, scoped, tag = 'input window, operand 6']
    #allocation10 [shape = 's32[2]{0}', space=sflag, size = 0x8, scoped, tag = 'scoped memory for tpu_custom_call.1']
    #allocation11 [shape = 'u8[16384]{0}', space=vmem, size = 0x4000, scoped, tag = 'input window, operand 7']
    #allocation12 [shape = 'u8[8192]{0}', space=vmem, size = 0x2000, scoped, tag = 'output window, operand 0, single buffered']
    %15 = vsyncpa [#allocation4], 0
    %16 = vsyncpa [#allocation7], 0
    %s17 = scalar_lea.sflag [#allocation7], 1
    %18 = vsyncpa %s17, 0
    %19 = vsyncpa [#allocation10], 0
    %s20 = scalar_lea.sflag [#allocation10], 1
    %21 = vsyncpa %s20, 0
    %22 = vsyncpa [#allocation5], 0
    loop: start=0, step=1, limit=4
    $region2: #{tpu_custom_call.1} parent=1 // loop_pre_header
      _
    $region3: #{tpu_custom_call.1} parent=1 // loop_header
      %s24 = sphi 0, %s28
      %p25 = scmp.ge.s32.totalorder %s24, 4
      %s32 = sphi 0, %s32
      %s34 = sphi 0, %s32
      %s35 = sphi 0, %s34
      %s49 = sphi 0, %s35
      %s53 = sphi 0, %s53
      %s55 = sphi 0, %s53
      %s56 = sphi 0, %s55
      %s70 = sphi 0, %s56
      %s76 = sphi 0, %s78
      %s79 = sphi 0, %s76
      %s80 = sphi 0, %s79
      %s96 = sphi 0, %s80
      %s102 = sphi 0, %s104
      %s105 = sphi 0, %s102
      %s106 = sphi 0, %s105
      %s122 = sphi 0, %s106
      %s128 = sphi 0, %s130
      %s131 = sphi 0, %s128
      %s132 = sphi 0, %s131
      %s148 = sphi 0, %s132
      %s154 = sphi 0, %s156
      %s157 = sphi 0, %s154
      %s158 = sphi 0, %s157
      %s174 = sphi 0, %s158
      %s180 = sphi 0, %s182
      %s183 = sphi 0, %s180
      %s184 = sphi 0, %s183
      %s200 = sphi 0, %s184
      %s206 = sphi 0, %s208
      %s209 = sphi 0, %s206
      %s210 = sphi 0, %s209
      %s226 = sphi 0, %s210
      %s232 = sphi 0, %s234
      %s235 = sphi 0, %s232
      %s236 = sphi 0, %s235
      %s252 = sphi 0, %s236
      %s258 = sphi 0, %s260
      %s261 = sphi 0, %s258
      %s262 = sphi 0, %s261
      %s278 = sphi 0, %s262
      %s282 = sphi 0, %s282
      %s284 = sphi 0, %s282
      %s285 = sphi 0, %s284
      %s299 = sphi 0, %s285
    $region4: #{tpu_custom_call.1} parent=1 // loop_header_branch
      %27 = sbr.rel (%p25) target = $region8
    $region5: #{tpu_custom_call.1} parent=1 // loop_body
      %s29 = ssub.s32 %s24, 1
      %s30 = ssub.s32 %s24, 2
      %s31 = sadd.s32 %s24, 1
      %s33 = sadd.s32 %s32, 1
      %p36 = scmp.eq.s32.totalorder %s24, 1
      %p37 = scmp.ne.s32.totalorder %s32, %s34
      %p38 = scmp.eq.s32.totalorder %s24, 0
      %p39 = por %p37, %p38
      %p40 = scmp.ne.s32.totalorder %s32, %s34
      %p41 = scmp.eq.s32.totalorder %s29, 1
      %p42 = por %p40, %p41
      %p43 = scmp.ne.s32.totalorder %s34, %s35
      %p44 = scmp.eq.s32.totalorder %s29, 0
      %p45 = por %p43, %p44
      %p46 = scmp.ne.s32.totalorder %s34, %s35
      %p47 = scmp.eq.s32.totalorder %s30, 1
      %p48 = por %p46, %p47
      %p50 = scmp.ne.s32.totalorder %s35, %s49
      %p51 = scmp.eq.s32.totalorder %s30, 0
      %p52 = por %p50, %p51
      %s54 = sadd.s32 %s53, 1
      %p57 = scmp.eq.s32.totalorder %s24, 1
      %p58 = scmp.ne.s32.totalorder %s53, %s55
      %p59 = scmp.eq.s32.totalorder %s24, 0
      %p60 = por %p58, %p59
      %p61 = scmp.ne.s32.totalorder %s53, %s55
      %p62 = scmp.eq.s32.totalorder %s29, 1
      %p63 = por %p61, %p62
      %p64 = scmp.ne.s32.totalorder %s55, %s56
      %p65 = scmp.eq.s32.totalorder %s29, 0
      %p66 = por %p64, %p65
      %p67 = scmp.ne.s32.totalorder %s55, %s56
      %p68 = scmp.eq.s32.totalorder %s30, 1
      %p69 = por %p67, %p68
      %p71 = scmp.ne.s32.totalorder %s56, %s70
      %p72 = scmp.eq.s32.totalorder %s30, 0
      %p73 = por %p71, %p72
      %s74 = ssub.s32 %s24, %s31
      %p75 = scmp.eq.s32.totalorder %s74, 0
      %s77 = sadd.s32 %s76, 1
      %s78 = scalar_select %p75, %s76, %s77
      %p81 = pneg %p75
      %p82 = scmp.eq.s32.totalorder %s24, 1
      %p83 = por %p81, %p82
      %p84 = scmp.ne.s32.totalorder %s76, %s79
      %p85 = scmp.eq.s32.totalorder %s24, 0
      %p86 = por %p84, %p85
      %p87 = scmp.ne.s32.totalorder %s76, %s79
      %p88 = scmp.eq.s32.totalorder %s29, 1
      %p89 = por %p87, %p88
      %p90 = scmp.ne.s32.totalorder %s79, %s80
      %p91 = scmp.eq.s32.totalorder %s29, 0
      %p92 = por %p90, %p91
      %p93 = scmp.ne.s32.totalorder %s79, %s80
      %p94 = scmp.eq.s32.totalorder %s30, 1
      %p95 = por %p93, %p94
      %p97 = scmp.ne.s32.totalorder %s80, %s96
      %p98 = scmp.eq.s32.totalorder %s30, 0
      %p99 = por %p97, %p98
      %s100 = ssub.s32 %s24, %s31
      %p101 = scmp.eq.s32.totalorder %s100, 0
      %s103 = sadd.s32 %s102, 1
      %s104 = scalar_select %p101, %s102, %s103
      %p107 = pneg %p101
      %p108 = scmp.eq.s32.totalorder %s24, 1
      %p109 = por %p107, %p108
      %p110 = scmp.ne.s32.totalorder %s102, %s105
      %p111 = scmp.eq.s32.totalorder %s24, 0
      %p112 = por %p110, %p111
      %p113 = scmp.ne.s32.totalorder %s102, %s105
      %p114 = scmp.eq.s32.totalorder %s29, 1
      %p115 = por %p113, %p114
      %p116 = scmp.ne.s32.totalorder %s105, %s106
      %p117 = scmp.eq.s32.totalorder %s29, 0
      %p118 = por %p116, %p117
      %p119 = scmp.ne.s32.totalorder %s105, %s106
      %p120 = scmp.eq.s32.totalorder %s30, 1
      %p121 = por %p119, %p120
      %p123 = scmp.ne.s32.totalorder %s106, %s122
      %p124 = scmp.eq.s32.totalorder %s30, 0
      %p125 = por %p123, %p124
      %s126 = ssub.s32 %s24, %s31
      %p127 = scmp.eq.s32.totalorder %s126, 0
      %s129 = sadd.s32 %s128, 1
      %s130 = scalar_select %p127, %s128, %s129
      %p133 = pneg %p127
      %p134 = scmp.eq.s32.totalorder %s24, 1
      %p135 = por %p133, %p134
      %p136 = scmp.ne.s32.totalorder %s128, %s131
      %p137 = scmp.eq.s32.totalorder %s24, 0
      %p138 = por %p136, %p137
      %p139 = scmp.ne.s32.totalorder %s128, %s131
      %p140 = scmp.eq.s32.totalorder %s29, 1
      %p141 = por %p139, %p140
      %p142 = scmp.ne.s32.totalorder %s131, %s132
      %p143 = scmp.eq.s32.totalorder %s29, 0
      %p144 = por %p142, %p143
      %p145 = scmp.ne.s32.totalorder %s131, %s132
      %p146 = scmp.eq.s32.totalorder %s30, 1
      %p147 = por %p145, %p146
      %p149 = scmp.ne.s32.totalorder %s132, %s148
      %p150 = scmp.eq.s32.totalorder %s30, 0
      %p151 = por %p149, %p150
      %s152 = ssub.s32 %s24, %s31
      %p153 = scmp.eq.s32.totalorder %s152, 0
      %s155 = sadd.s32 %s154, 1
      %s156 = scalar_select %p153, %s154, %s155
      %p159 = pneg %p153
      %p160 = scmp.eq.s32.totalorder %s24, 1
      %p161 = por %p159, %p160
      %p162 = scmp.ne.s32.totalorder %s154, %s157
      %p163 = scmp.eq.s32.totalorder %s24, 0
      %p164 = por %p162, %p163
      %p165 = scmp.ne.s32.totalorder %s154, %s157
      %p166 = scmp.eq.s32.totalorder %s29, 1
      %p167 = por %p165, %p166
      %p168 = scmp.ne.s32.totalorder %s157, %s158
      %p169 = scmp.eq.s32.totalorder %s29, 0
      %p170 = por %p168, %p169
      %p171 = scmp.ne.s32.totalorder %s157, %s158
      %p172 = scmp.eq.s32.totalorder %s30, 1
      %p173 = por %p171, %p172
      %p175 = scmp.ne.s32.totalorder %s158, %s174
      %p176 = scmp.eq.s32.totalorder %s30, 0
      %p177 = por %p175, %p176
      %s178 = ssub.s32 %s24, %s31
      %p179 = scmp.eq.s32.totalorder %s178, 0
      %s181 = sadd.s32 %s180, 1
      %s182 = scalar_select %p179, %s180, %s181
      %p185 = pneg %p179
      %p186 = scmp.eq.s32.totalorder %s24, 1
      %p187 = por %p185, %p186
      %p188 = scmp.ne.s32.totalorder %s180, %s183
      %p189 = scmp.eq.s32.totalorder %s24, 0
      %p190 = por %p188, %p189
      %p191 = scmp.ne.s32.totalorder %s180, %s183
      %p192 = scmp.eq.s32.totalorder %s29, 1
      %p193 = por %p191, %p192
      %p194 = scmp.ne.s32.totalorder %s183, %s184
      %p195 = scmp.eq.s32.totalorder %s29, 0
      %p196 = por %p194, %p195
      %p197 = scmp.ne.s32.totalorder %s183, %s184
      %p198 = scmp.eq.s32.totalorder %s30, 1
      %p199 = por %p197, %p198
      %p201 = scmp.ne.s32.totalorder %s184, %s200
      %p202 = scmp.eq.s32.totalorder %s30, 0
      %p203 = por %p201, %p202
      %s204 = ssub.s32 %s24, %s31
      %p205 = scmp.eq.s32.totalorder %s204, 0
      %s207 = sadd.s32 %s206, 1
      %s208 = scalar_select %p205, %s206, %s207
      %p211 = pneg %p205
      %p212 = scmp.eq.s32.totalorder %s24, 1
      %p213 = por %p211, %p212
      %p214 = scmp.ne.s32.totalorder %s206, %s209
      %p215 = scmp.eq.s32.totalorder %s24, 0
      %p216 = por %p214, %p215
      %p217 = scmp.ne.s32.totalorder %s206, %s209
      %p218 = scmp.eq.s32.totalorder %s29, 1
      %p219 = por %p217, %p218
      %p220 = scmp.ne.s32.totalorder %s209, %s210
      %p221 = scmp.eq.s32.totalorder %s29, 0
      %p222 = por %p220, %p221
      %p223 = scmp.ne.s32.totalorder %s209, %s210
      %p224 = scmp.eq.s32.totalorder %s30, 1
      %p225 = por %p223, %p224
      %p227 = scmp.ne.s32.totalorder %s210, %s226
      %p228 = scmp.eq.s32.totalorder %s30, 0
      %p229 = por %p227, %p228
      %s230 = ssub.s32 %s24, %s31
      %p231 = scmp.eq.s32.totalorder %s230, 0
      %s233 = sadd.s32 %s232, 1
      %s234 = scalar_select %p231, %s232, %s233
      %p237 = pneg %p231
      %p238 = scmp.eq.s32.totalorder %s24, 1
      %p239 = por %p237, %p238
      %p240 = scmp.ne.s32.totalorder %s232, %s235
      %p241 = scmp.eq.s32.totalorder %s24, 0
      %p242 = por %p240, %p241
      %p243 = scmp.ne.s32.totalorder %s232, %s235
      %p244 = scmp.eq.s32.totalorder %s29, 1
      %p245 = por %p243, %p244
      %p246 = scmp.ne.s32.totalorder %s235, %s236
      %p247 = scmp.eq.s32.totalorder %s29, 0
      %p248 = por %p246, %p247
      %p249 = scmp.ne.s32.totalorder %s235, %s236
      %p250 = scmp.eq.s32.totalorder %s30, 1
      %p251 = por %p249, %p250
      %p253 = scmp.ne.s32.totalorder %s236, %s252
      %p254 = scmp.eq.s32.totalorder %s30, 0
      %p255 = por %p253, %p254
      %s256 = ssub.s32 %s24, %s31
      %p257 = scmp.eq.s32.totalorder %s256, 0
      %s259 = sadd.s32 %s258, 1
      %s260 = scalar_select %p257, %s258, %s259
      %p263 = pneg %p257
      %p264 = scmp.eq.s32.totalorder %s24, 1
      %p265 = por %p263, %p264
      %p266 = scmp.ne.s32.totalorder %s258, %s261
      %p267 = scmp.eq.s32.totalorder %s24, 0
      %p268 = por %p266, %p267
      %p269 = scmp.ne.s32.totalorder %s258, %s261
      %p270 = scmp.eq.s32.totalorder %s29, 1
      %p271 = por %p269, %p270
      %p272 = scmp.ne.s32.totalorder %s261, %s262
      %p273 = scmp.eq.s32.totalorder %s29, 0
      %p274 = por %p272, %p273
      %p275 = scmp.ne.s32.totalorder %s261, %s262
      %p276 = scmp.eq.s32.totalorder %s30, 1
      %p277 = por %p275, %p276
      %p279 = scmp.ne.s32.totalorder %s262, %s278
      %p280 = scmp.eq.s32.totalorder %s30, 0
      %p281 = por %p279, %p280
      %s283 = sadd.s32 %s282, 1
      %p286 = scmp.eq.s32.totalorder %s24, 1
      %p287 = scmp.ne.s32.totalorder %s282, %s284
      %p288 = scmp.eq.s32.totalorder %s24, 0
      %p289 = por %p287, %p288
      %p290 = scmp.ne.s32.totalorder %s282, %s284
      %p291 = scmp.eq.s32.totalorder %s29, 1
      %p292 = por %p290, %p291
      %p293 = scmp.ne.s32.totalorder %s284, %s285
      %p294 = scmp.eq.s32.totalorder %s29, 0
      %p295 = por %p293, %p294
      %p296 = scmp.ne.s32.totalorder %s284, %s285
      %p297 = scmp.eq.s32.totalorder %s30, 1
      %p298 = por %p296, %p297
      %p300 = scmp.ne.s32.totalorder %s285, %s299
      %p301 = scmp.eq.s32.totalorder %s30, 0
      %p302 = por %p300, %p301
      %p303 = scmp.le.s32.totalorder 1, %s24
      %p304 = scmp.lt.s32.totalorder %s24, 3
      %p305 = pnand %p303, %p304
      %p306 = pneg %p305
      // Predicated region
      $region9: #{tpu_custom_call.1} parent=5 // pred_check
        _
      $region10: #{tpu_custom_call.1} parent=5 // pred_check_branch
        %308 = sbr.rel (%p305) target = $region12
      $region11: #{tpu_custom_call.1} parent=5 // pred_region
        %s309 = ssub.s32 %s24, 1
        // Predicated region
        $region13: #{tpu_custom_call.1} parent=11 // pred_check
          %p310 = pneg %p45
        $region14: #{tpu_custom_call.1} parent=11 // pred_check_branch
          %312 = sbr.rel (%p310) target = $region16
        $region15: #{tpu_custom_call.1} parent=11 // pred_region
          %s314 = ssub.s32 256, 256
          %315 = vsyncadd [#allocation4], %s314
          %s316 = sshll.u32 [#allocation3], 4
          %s317 = int_to_ptr.vmem [resolvable:$true] %s316
          %322 = dma.hbm_to_vmem [thread:$0]  %s0, 256, %s317, [#allocation4], 128, 128, 8
        $region16: #{tpu_custom_call.1} parent=11 // pred_fallthru
          _
        // Predicated region
        $region17: #{tpu_custom_call.1} parent=11 // pred_check
          %p323 = pneg %p66
        $region18: #{tpu_custom_call.1} parent=11 // pred_check_branch
          %325 = sbr.rel (%p323) target = $region20
        $region19: #{tpu_custom_call.1} parent=11 // pred_region
          _
        $region20: #{tpu_custom_call.1} parent=11 // pred_fallthru
          _
      $region12: #{tpu_custom_call.1} parent=5 // pred_fallthru
        _
      %p326 = scmp.lt.s32.totalorder %s24, 2
      // Predicated region
      $region21: #{tpu_custom_call.1} parent=5 // pred_check
        %p327 = pneg %p326
      $region22: #{tpu_custom_call.1} parent=5 // pred_check_branch
        %329 = sbr.rel (%p327) target = $region24
      $region23: #{tpu_custom_call.1} parent=5 // pred_region
        // Predicated region
        $region25: #{tpu_custom_call.1} parent=23 // pred_check
          %p330 = pneg %p86
        $region26: #{tpu_custom_call.1} parent=23 // pred_check_branch
          %332 = sbr.rel (%p330) target = $region28
        $region27: #{tpu_custom_call.1} parent=23 // pred_region
          %p333 = scmp.lt.s32.totalorder %s24, 1
          %s334 = scalar_select %p333, %s24, 1
          %s335 = smul.addr %s334, 4
          %s336 = smul.addr %s335, 4
          %s337 = scalar_lea.vmem %s2, %s336
        $region28: #{tpu_custom_call.1} parent=23 // pred_fallthru
          _
        // Predicated region
        $region29: #{tpu_custom_call.1} parent=23 // pred_check
          %p338 = pneg %p112
        $region30: #{tpu_custom_call.1} parent=23 // pred_check_branch
          %340 = sbr.rel (%p338) target = $region32
        $region31: #{tpu_custom_call.1} parent=23 // pred_region
          %p341 = scmp.lt.s32.totalorder %s24, 1
          %s342 = scalar_select %p341, %s24, 1
          %s343 = smul.addr %s342, 4
          %s344 = smul.addr %s343, 4
          %s345 = scalar_lea.vmem %s3, %s344
        $region32: #{tpu_custom_call.1} parent=23 // pred_fallthru
          _
        // Predicated region
        $region33: #{tpu_custom_call.1} parent=23 // pred_check
          %p346 = pneg %p138
        $region34: #{tpu_custom_call.1} parent=23 // pred_check_branch
          %348 = sbr.rel (%p346) target = $region36
        $region35: #{tpu_custom_call.1} parent=23 // pred_region
          %s349 = sand.u32 %s24, 1
          %s350 = scalar_lea.sflag [#allocation7], %s349
          %s351 = sand.u32 %s128, 1
          %s352 = smul.addr %s351, 16
          %s353 = scalar_lea.vmem [#allocation6], %s352
          %s355 = ssub.s32 256, 256
          %356 = vsyncadd %s350, %s355
          %s357 = smul.addr %s24, 4
          %s358 = smul.addr %s357, 64
          %s359 = scalar_lea.hbm %s4, %s358
          %s360 = sshll.u32 %s353, 4
          %s361 = int_to_ptr.vmem [resolvable:$true] %s360
          %366 = dma.hbm_to_vmem [thread:$0]  %s359, 256, %s361, %s350, 64, 64, 4
        $region36: #{tpu_custom_call.1} parent=23 // pred_fallthru
          _
        // Predicated region
        $region37: #{tpu_custom_call.1} parent=23 // pred_check
          %p367 = pneg %p164
        $region38: #{tpu_custom_call.1} parent=23 // pred_check_branch
          %369 = sbr.rel (%p367) target = $region40
        $region39: #{tpu_custom_call.1} parent=23 // pred_region
          %s370 = sand.u32 %s24, 1
          %s371 = scalar_lea.sflag [#allocation7], %s370
          %s372 = sand.u32 %s154, 1
          %s373 = smul.addr %s372, 16
          %s374 = scalar_lea.vmem [#allocation8], %s373
          %s376 = ssub.s32 256, 256
          %377 = vsyncadd %s371, %s376
          %s378 = smul.addr %s24, 4
          %s379 = smul.addr %s378, 64
          %s380 = scalar_lea.hbm %s5, %s379
          %s381 = sshll.u32 %s374, 4
          %s382 = int_to_ptr.vmem [resolvable:$true] %s381
          %387 = dma.hbm_to_vmem [thread:$0]  %s380, 256, %s382, %s371, 64, 64, 4
        $region40: #{tpu_custom_call.1} parent=23 // pred_fallthru
          _
        // Predicated region
        $region41: #{tpu_custom_call.1} parent=23 // pred_check
          %p388 = pneg %p190
        $region42: #{tpu_custom_call.1} parent=23 // pred_check_branch
          %390 = sbr.rel (%p388) target = $region44
        $region43: #{tpu_custom_call.1} parent=23 // pred_region
          %s391 = sand.u32 %s24, 1
          %s392 = scalar_lea.sflag [#allocation10], %s391
          %s393 = sand.u32 %s180, 1
          %s394 = smul.addr %s393, 16
          %s395 = scalar_lea.vmem [#allocation9], %s394
          %s397 = ssub.s32 256, 256
          %398 = vsyncadd %s392, %s397
          %s399 = smul.addr %s24, 4
          %s400 = smul.addr %s399, 64
          %s401 = scalar_lea.hbm %s6, %s400
          %s402 = sshll.u32 %s395, 4
          %s403 = int_to_ptr.vmem [resolvable:$true] %s402
          %408 = dma.hbm_to_vmem [thread:$0]  %s401, 256, %s403, %s392, 64, 64, 4
        $region44: #{tpu_custom_call.1} parent=23 // pred_fallthru
          _
        // Predicated region
        $region45: #{tpu_custom_call.1} parent=23 // pred_check
          %p409 = pneg %p216
        $region46: #{tpu_custom_call.1} parent=23 // pred_check_branch
          %411 = sbr.rel (%p409) target = $region48
        $region47: #{tpu_custom_call.1} parent=23 // pred_region
          %s412 = sand.u32 %s24, 1
          %s413 = scalar_lea.sflag [#allocation10], %s412
          %s414 = sand.u32 %s206, 1
          %s415 = smul.addr %s414, 16
          %s416 = scalar_lea.vmem [#allocation11], %s415
          %s418 = ssub.s32 256, 256
          %419 = vsyncadd %s413, %s418
          %s420 = smul.addr %s24, 4
          %s421 = smul.addr %s420, 64
          %s422 = scalar_lea.hbm %s7, %s421
          %s423 = sshll.u32 %s416, 4
          %s424 = int_to_ptr.vmem [resolvable:$true] %s423
          %429 = dma.hbm_to_vmem [thread:$0]  %s422, 256, %s424, %s413, 64, 64, 4
        $region48: #{tpu_custom_call.1} parent=23 // pred_fallthru
          _
        // Predicated region
        $region49: #{tpu_custom_call.1} parent=23 // pred_check
          %p430 = pneg %p242
        $region50: #{tpu_custom_call.1} parent=23 // pred_check_branch
          %432 = sbr.rel (%p430) target = $region52
        $region51: #{tpu_custom_call.1} parent=23 // pred_region
          %p433 = scmp.lt.s32.totalorder %s24, 1
          %s434 = scalar_select %p433, %s24, 1
          %s435 = smul.addr %s434, 8
          %s436 = smul.addr %s435, 4
          %s437 = scalar_lea.vmem %s8, %s436
        $region52: #{tpu_custom_call.1} parent=23 // pred_fallthru
          _
        // Predicated region
        $region53: #{tpu_custom_call.1} parent=23 // pred_check
          %p438 = pneg %p268
        $region54: #{tpu_custom_call.1} parent=23 // pred_check_branch
          %440 = sbr.rel (%p438) target = $region56
        $region55: #{tpu_custom_call.1} parent=23 // pred_region
          %p441 = scmp.lt.s32.totalorder %s24, 1
          %s442 = scalar_select %p441, %s24, 1
          %s443 = smul.addr %s442, 2
          %s444 = smul.addr %s443, 8
          %s445 = scalar_lea.vmem %s9, %s444
        $region56: #{tpu_custom_call.1} parent=23 // pred_fallthru
          _
      $region24: #{tpu_custom_call.1} parent=5 // pred_fallthru
        _
      %p446 = scmp.le.s32.totalorder 1, %s24
      %p447 = scmp.lt.s32.totalorder %s24, 3
      %p448 = pnand %p446, %p447
      %p449 = pneg %p448
      // Predicated region
      $region57: #{tpu_custom_call.1} parent=5 // pred_check
        _
      $region58: #{tpu_custom_call.1} parent=5 // pred_check_branch
        %451 = sbr.rel (%p448) target = $region60
      $region59: #{tpu_custom_call.1} parent=5 // pred_region
        %s452 = ssub.s32 %s24, 1
        // Predicated region
        $region61: #{tpu_custom_call.1} parent=59 // pred_check
          %p453 = pneg %p45
        $region62: #{tpu_custom_call.1} parent=59 // pred_check_branch
          %455 = sbr.rel (%p453) target = $region64
        $region63: #{tpu_custom_call.1} parent=59 // pred_region
          %456 = dma.done [#allocation4], 256
        $region64: #{tpu_custom_call.1} parent=59 // pred_fallthru
          _
        %s457 = sand.u32 %s29, 1
        %s458 = scalar_lea.sflag [#allocation7], %s457
        %s459 = sand.u32 %s131, 1
        %s460 = smul.addr %s459, 16
        %s461 = scalar_lea.vmem [#allocation6], %s460
        // Predicated region
        $region65: #{tpu_custom_call.1} parent=59 // pred_check
          %p462 = pneg %p144
        $region66: #{tpu_custom_call.1} parent=59 // pred_check_branch
          %464 = sbr.rel (%p462) target = $region68
        $region67: #{tpu_custom_call.1} parent=59 // pred_region
          %465 = dma.done %s458, 256
        $region68: #{tpu_custom_call.1} parent=59 // pred_fallthru
          _
        %s466 = sand.u32 %s29, 1
        %s467 = scalar_lea.sflag [#allocation7], %s466
        %s468 = sand.u32 %s157, 1
        %s469 = smul.addr %s468, 16
        %s470 = scalar_lea.vmem [#allocation8], %s469
        // Predicated region
        $region69: #{tpu_custom_call.1} parent=59 // pred_check
          %p471 = pneg %p170
        $region70: #{tpu_custom_call.1} parent=59 // pred_check_branch
          %473 = sbr.rel (%p471) target = $region72
        $region71: #{tpu_custom_call.1} parent=59 // pred_region
          %474 = dma.done %s467, 256
        $region72: #{tpu_custom_call.1} parent=59 // pred_fallthru
          _
        %s475 = sand.u32 %s29, 1
        %s476 = scalar_lea.sflag [#allocation10], %s475
        %s477 = sand.u32 %s183, 1
        %s478 = smul.addr %s477, 16
        %s479 = scalar_lea.vmem [#allocation9], %s478
        // Predicated region
        $region73: #{tpu_custom_call.1} parent=59 // pred_check
          %p480 = pneg %p196
        $region74: #{tpu_custom_call.1} parent=59 // pred_check_branch
          %482 = sbr.rel (%p480) target = $region76
        $region75: #{tpu_custom_call.1} parent=59 // pred_region
          %483 = dma.done %s476, 256
        $region76: #{tpu_custom_call.1} parent=59 // pred_fallthru
          _
        %s484 = sand.u32 %s29, 1
        %s485 = scalar_lea.sflag [#allocation10], %s484
        %s486 = sand.u32 %s209, 1
        %s487 = smul.addr %s486, 16
        %s488 = scalar_lea.vmem [#allocation11], %s487
        // Predicated region
        $region77: #{tpu_custom_call.1} parent=59 // pred_check
          %p489 = pneg %p222
        $region78: #{tpu_custom_call.1} parent=59 // pred_check_branch
          %491 = sbr.rel (%p489) target = $region80
        $region79: #{tpu_custom_call.1} parent=59 // pred_region
          %492 = dma.done %s485, 256
        $region80: #{tpu_custom_call.1} parent=59 // pred_fallthru
          _
        %p493 = pneg %p45
        %p494 = pneg %p42
        %p495 = pneg %p66
        %p496 = pneg %p63
        %p497 = scmp.lt.s32.totalorder %s29, 1
        %s498 = scalar_select %p497, %s29, 1
        %s499 = smul.addr %s498, 4
        %s500 = smul.addr %s499, 4
        %s501 = scalar_lea.vmem %s2, %s500
        %p502 = pneg %p92
        %p503 = pneg %p89
        %p504 = scmp.lt.s32.totalorder %s29, 1
        %s505 = scalar_select %p504, %s29, 1
        %s506 = smul.addr %s505, 4
        %s507 = smul.addr %s506, 4
        %s508 = scalar_lea.vmem %s3, %s507
        %p509 = pneg %p118
        %p510 = pneg %p115
        %s511 = sand.u32 %s29, 1
        %s512 = scalar_lea.sflag [#allocation7], %s511
        %s513 = sand.u32 %s131, 1
        %s514 = smul.addr %s513, 16
        %s515 = scalar_lea.vmem [#allocation6], %s514
        %p516 = pneg %p144
        %p517 = pneg %p141
        %s518 = sand.u32 %s29, 1
        %s519 = scalar_lea.sflag [#allocation7], %s518
        %s520 = sand.u32 %s157, 1
        %s521 = smul.addr %s520, 16
        %s522 = scalar_lea.vmem [#allocation8], %s521
        %p523 = pneg %p170
        %p524 = pneg %p167
        %s525 = sand.u32 %s29, 1
        %s526 = scalar_lea.sflag [#allocation10], %s525
        %s527 = sand.u32 %s183, 1
        %s528 = smul.addr %s527, 16
        %s529 = scalar_lea.vmem [#allocation9], %s528
        %p530 = pneg %p196
        %p531 = pneg %p193
        %s532 = sand.u32 %s29, 1
        %s533 = scalar_lea.sflag [#allocation10], %s532
        %s534 = sand.u32 %s209, 1
        %s535 = smul.addr %s534, 16
        %s536 = scalar_lea.vmem [#allocation11], %s535
        %p537 = pneg %p222
        %p538 = pneg %p219
        %p539 = scmp.lt.s32.totalorder %s29, 1
        %s540 = scalar_select %p539, %s29, 1
        %s541 = smul.addr %s540, 8
        %s542 = smul.addr %s541, 4
        %s543 = scalar_lea.vmem %s8, %s542
        %p544 = pneg %p248
        %p545 = pneg %p245
        %p546 = scmp.lt.s32.totalorder %s29, 1
        %s547 = scalar_select %p546, %s29, 1
        %s548 = smul.addr %s547, 2
        %s549 = smul.addr %s548, 8
        %s550 = scalar_lea.vmem %s9, %s549
        %p551 = pneg %p274
        %p552 = pneg %p271
        %p553 = pneg %p295
        %p554 = pneg %p292
        %p555 = scmp.lt.s32.totalorder %s29, 1
        %s556 = scalar_select %p555, %s29, 1
        %s557 = smul.addr %s556, 4
        %s558 = smul.addr %s557, 4
        %s559 = scalar_lea.vmem %s2, %s558
        %p560 = scmp.lt.s32.totalorder %s29, 1
        %s561 = scalar_select %p560, %s29, 1
        %s562 = smul.addr %s561, 4
        %s563 = smul.addr %s562, 4
        %s564 = scalar_lea.vmem %s3, %s563
        %p565 = scmp.lt.s32.totalorder %s29, 1
        %s566 = scalar_select %p565, %s29, 1
        %s567 = smul.addr %s566, 8
        %s568 = smul.addr %s567, 4
        %s569 = scalar_lea.vmem %s8, %s568
        %p570 = scmp.lt.s32.totalorder %s29, 1
        %s571 = scalar_select %p570, %s29, 1
        %s572 = smul.addr %s571, 2
        %s573 = smul.addr %s572, 8
        %s574 = scalar_lea.vmem %s9, %s573
        %p576 = scmp.eq.s32.totalorder %s29, 0
        // Predicated region
        $region81: #{tpu_custom_call.1} parent=59 // pred_check
          %p577 = pneg %p576
        $region82: #{tpu_custom_call.1} parent=59 // pred_check_branch
          %579 = sbr.rel (%p577) target = $region84
        $region83: #{tpu_custom_call.1} parent=59 // pred_region
          %v580 = vlaneseq
          %v581 = vshrl.u32 %v580, 7
          %v582 = vadd.s32 %v581, 8
          %vm583 = vcmp.lt.s32.totalorder %v581, 0
          %v584 = vsub.s32 0, %v581
          %v585 = vsel %vm583, %v584, %v581
          %v586 = vshrl.u32 %v585, 3
          %v587 = vand.u32 %v585, 7
          %v588 = vsub.s32 0, %v587
          %v589 = vsel %vm583, %v588, %v587
          %vm590 = vcmp.lt.s32.totalorder %v582, 0
          %v591 = vsub.s32 0, %v582
          %v592 = vsel %vm590, %v591, %v582
          %v593 = vshrl.u32 %v592, 3
          %v594 = vand.u32 %v592, 7
          %v595 = vsub.s32 0, %v594
          %v596 = vsel %vm590, %v595, %v594
          %vm597 = vcmp.ne.s32.totalorder %v589, 0
          %vm598 = vcmp.ne.s32.totalorder %v596, 0
          %vm599 = vcmp.lt.s32.totalorder %v589, 0
          %vm600 = vcmp.lt.s32.totalorder %v596, 0
          %vm601 = vmand %vm599, %vm597
          %vm602 = vmand %vm600, %vm598
          %v603 = vadd.s32 %v589, 8
          %v604 = vadd.s32 %v596, 8
          %v605 = vsel %vm601, %v603, %v589
          %v606 = vsel %vm602, %v604, %v596
          %v607 = vcvt.s32.f32 %v605
          %v608 = vcvt.s32.f32 %v606
          %v609 = vld [vmem:[#allocation3] sm:$0xff]
          %v610 = vld [vmem:[#allocation3 + $0x8] sm:$0xff]
          %v611 = vmul.f32 %v609, 5.656854
          %v612 = vmul.f32 %v610, 5.656854
          %v613 = vadd.f32 %v611, %v607
          %v614 = vadd.f32 %v612, %v608
          %vm615 = vcmask 261120
          %616 = vst.msk [vmem:[#allocation12] sm:$0xff] %vm615, %v613
          %617 = vst.msk [vmem:[#allocation12 + $0x8] sm:$0xff] %vm615, %v614
        $region84: #{tpu_custom_call.1} parent=59 // pred_fallthru
          _
        %v618 = vld [vmem:[#allocation12] sm:$0xff]
        %v619 = vld [vmem:[#allocation12 + $0x8] sm:$0xff]
        %v620 = vld [vmem:[%s1] sm:$0xff]
        %v621 = vld [vmem:[%s1 + $0x8] sm:$0xff]
        %v622 = vld [vmem:[%s1 + $0x10] sm:$0xff]
        %v623 = vld [vmem:[%s1 + $0x18] sm:$0xff]
        %v624 = vld [vmem:[%s574] sm:$0xff]
        %v625 = vld [vmem:[%s574 + $0x8] sm:$0xff]
        %v626 = vpack.c.bf16 %v619, %v618
        %v627 = vld [vmem:[%s559] sm:$0xf]
        %v628 = vld [vmem:[%s559 + $0x4] sm:$0xf]
        %v629 = vld [vmem:[%s559 + $0x8] sm:$0xf]
        %v630 = vld [vmem:[%s559 + $0xc] sm:$0xf]
        %v631 = vlaneseq
        %v632 = vshrl.u32 %v631, 7
        %v633 = vsub.s32 0, %v632
        %v634 = vrot.slane %v624, %v633
        %v639 = vunpack.c.l.b16 %v627
        %v640 = vunpack.c.l.b16 %v628
        %v641 = vunpack.c.l.b16 %v629
        %v642 = vunpack.c.l.b16 %v630
        %v643 = vpack.c.b16 %v640, %v639
        %v644 = vpack.c.b16 %v642, %v641
        %vm647 = vcmask 261120
        %v649 = vsel %vm647, %v626, 0
        %651 = vmatprep.subr.bf16.mxu0 0
        %652 = vmatpush1.bf16.msra.mxu0 %v643
        %653 = vmatprep.subr.bf16.mxu0 0
        %654 = vmatpush1.bf16.msra.mxu0 %v644
        %655 = vmatprep.subr.bf16.mxu0 0
        %656 = vmatpush1.bf16.msra.mxu0 0
        %657 = vmatprep.subr.bf16.mxu0 0
        %658 = vmatpush1.bf16.msra.mxu0 0
        %659 = vmatprep.subr.bf16.mxu0 0
        %660 = vmatpush1.bf16.msra.mxu0 0
        %661 = vmatprep.subr.bf16.mxu0 0
        %662 = vmatpush1.bf16.msra.mxu0 0
        %663 = vmatprep.subr.bf16.mxu0 0
        %664 = vmatpush1.bf16.msra.mxu0 0
        %665 = vmatprep.subr.bf16.mxu0 0
        %666 = vmatpush1.bf16.msra.mxu0 0
        %667 = vmatprep.subr.bf16.mxu0 0
        %668 = vmatpush1.bf16.msra.mxu0 0
        %669 = vmatprep.subr.bf16.mxu0 0
        %670 = vmatpush1.bf16.msra.mxu0 0
        %671 = vmatprep.subr.bf16.mxu0 0
        %672 = vmatpush1.bf16.msra.mxu0 0
        %673 = vmatprep.subr.bf16.mxu0 0
        %674 = vmatpush1.bf16.msra.mxu0 0
        %675 = vmatprep.subr.bf16.mxu0 0
        %676 = vmatpush1.bf16.msra.mxu0 0
        %677 = vmatprep.subr.bf16.mxu0 0
        %678 = vmatpush1.bf16.msra.mxu0 0
        %679 = vmatprep.subr.bf16.mxu0 0
        %680 = vmatpush1.bf16.msra.mxu0 0
        %681 = vmatprep.subr.bf16.mxu0 0
        %682 = vmatpush1.bf16.msra.mxu0 0
        %683 = vmatprep.mubr.bf16.mxu0 0
        %684 = vmatmul.mubr.bf16.gmra.mrb[0].mxu0 %v649
        %v685 = vpop.f32.mrb[0].mxu0
        %v686 = vadd.f32 %v634, %v685
        %v687 = vpop.f32.mrb[0].mxu0
        %v688 = vpop.f32.mrb[0].mxu0
        %v689 = vadd.f32 %v634, %v688
        %v690 = vpop.f32.mrb[0].mxu0
        %691 = vdwg.mxu0
        %v692 = vpack.c.bf16 %v686, %v686
        %694 = vrot.lane.b32.xlu0 %v692, 96
        %v695 = vpop.permute.xlu0 %694
        %vm696 = vcmask 64512
        %v698 = vsel %vm696, %v692, 0
        %v701 = vsel %vm696, %v695, 0
        %703 = vmatprep.subr.bf16.mxu0 0
        %704 = vmatpush1.bf16.xpose.msra.mxu0 %v701
        %705 = vmatprep.subr.bf16.mxu0 0
        %706 = vmatpush1.bf16.xpose.msra.mxu0 0
        %707 = vmatprep.subr.bf16.mxu0 0
        %708 = vmatpush1.bf16.xpose.msra.mxu0 0
        %709 = vmatprep.subr.bf16.mxu0 0
        %710 = vmatpush1.bf16.xpose.msra.mxu0 0
        %711 = vmatprep.subr.bf16.mxu0 0
        %712 = vmatpush1.bf16.xpose.msra.mxu0 0
        %713 = vmatprep.subr.bf16.mxu0 0
        %714 = vmatpush1.bf16.xpose.msra.mxu0 0
        %715 = vmatprep.subr.bf16.mxu0 0
        %716 = vmatpush1.bf16.xpose.msra.mxu0 0
        %717 = vmatprep.subr.bf16.mxu0 0
        %718 = vmatpush1.bf16.xpose.msra.mxu0 0
        %719 = vmatprep.subr.bf16.mxu0 0
        %720 = vmatpush1.bf16.xpose.msra.mxu0 0
        %721 = vmatprep.subr.bf16.mxu0 0
        %722 = vmatpush1.bf16.xpose.msra.mxu0 0
        %723 = vmatprep.subr.bf16.mxu0 0
        %724 = vmatpush1.bf16.xpose.msra.mxu0 0
        %725 = vmatprep.subr.bf16.mxu0 0
        %726 = vmatpush1.bf16.xpose.msra.mxu0 0
        %727 = vmatprep.subr.bf16.mxu0 0
        %728 = vmatpush1.bf16.xpose.msra.mxu0 0
        %729 = vmatprep.subr.bf16.mxu0 0
        %730 = vmatpush1.bf16.xpose.msra.mxu0 0
        %731 = vmatprep.subr.bf16.mxu0 0
        %732 = vmatpush1.bf16.xpose.msra.mxu0 0
        %733 = vmatprep.subr.bf16.mxu0 0
        %734 = vmatpush1.bf16.xpose.msra.mxu0 0
        %735 = vmatprep.mubr.bf16.mxu0 0
        %736 = vmatmul.mubr.bf16.gmra.mrb[0].mxu0 %v698
        %v737 = vpop.f32.mrb[0].mxu0
        %v738 = vadd.f32 0.0, %v737
        %v739 = vpop.f32.mrb[0].mxu0
        %v740 = vpop.f32.mrb[0].mxu0
        %v741 = vpop.f32.mrb[0].mxu0
        %742 = vdwg.mxu0
        %v743 = vsel %vm696, %v738, -inf
        %744 = vmax.xlane.f32.xlu0 %v743
        %v745 = vpop.xlane.xlu0 %744
        %v746 = vsub.f32 %v738, %v745
        %v747 = vmul.f32 %v746, 1.442695
        %v748 = vpow.pop %v747
        %v749 = vsel %vm696, %v748, 0.0
        %750 = vadd.xlane.f32.xlu0 %v749
        %v751 = vpop.xlane.xlu0 %750
        %v752 = vrcp.pop %v751
        %v753 = vmul.f32 %v748, %v752
        %v754 = vpack.c.bf16 %v753, %v753
        %755 = vrot.lane.b32.xlu0 %v692, 64
        %v756 = vpop.permute.xlu0 %755
        %v758 = vsel %vm696, %v754, 0
        %vm760 = vcmask 1043456
        %v762 = vsel %vm760, %v756, 0
        %764 = vmatprep.subr.bf16.mxu0 0
        %765 = vmatpush1.bf16.msra.mxu0 %v762
        %766 = vmatprep.subr.bf16.mxu0 0
        %767 = vmatpush1.bf16.msra.mxu0 0
        %768 = vmatprep.subr.bf16.mxu0 0
        %769 = vmatpush1.bf16.msra.mxu0 0
        %770 = vmatprep.subr.bf16.mxu0 0
        %771 = vmatpush1.bf16.msra.mxu0 0
        %772 = vmatprep.subr.bf16.mxu0 0
        %773 = vmatpush1.bf16.msra.mxu0 0
        %774 = vmatprep.subr.bf16.mxu0 0
        %775 = vmatpush1.bf16.msra.mxu0 0
        %776 = vmatprep.subr.bf16.mxu0 0
        %777 = vmatpush1.bf16.msra.mxu0 0
        %778 = vmatprep.subr.bf16.mxu0 0
        %779 = vmatpush1.bf16.msra.mxu0 0
        %780 = vmatprep.subr.bf16.mxu0 0
        %781 = vmatpush1.bf16.msra.mxu0 0
        %782 = vmatprep.subr.bf16.mxu0 0
        %783 = vmatpush1.bf16.msra.mxu0 0
        %784 = vmatprep.subr.bf16.mxu0 0
        %785 = vmatpush1.bf16.msra.mxu0 0
        %786 = vmatprep.subr.bf16.mxu0 0
        %787 = vmatpush1.bf16.msra.mxu0 0
        %788 = vmatprep.subr.bf16.mxu0 0
        %789 = vmatpush1.bf16.msra.mxu0 0
        %790 = vmatprep.subr.bf16.mxu0 0
        %791 = vmatpush1.bf16.msra.mxu0 0
        %792 = vmatprep.subr.bf16.mxu0 0
        %793 = vmatpush1.bf16.msra.mxu0 0
        %794 = vmatprep.subr.bf16.mxu0 0
        %795 = vmatpush1.bf16.msra.mxu0 0
        %796 = vmatprep.mubr.bf16.mxu0 0
        %797 = vmatmul.mubr.bf16.gmra.mrb[0].mxu0 %v758
        %v798 = vpop.f32.mrb[0].mxu0
        %v799 = vadd.f32 0.0, %v798
        %v800 = vpop.f32.mrb[0].mxu0
        %v801 = vpop.f32.mrb[0].mxu0
        %v802 = vpop.f32.mrb[0].mxu0
        %803 = vdwg.mxu0
        %804 = vst.msk [vmem:[#allocation2] sm:$0xff] %vm696, %v799
        %805 = vrot.lane.b32.xlu0 %v692, 120
        %v806 = vpop.permute.xlu0 %805
        %807 = vrot.lane.b32.xlu0 %v692, 88
        %v808 = vpop.permute.xlu0 %807
        %v810 = vsel %vm696, %v806, 0
        %v813 = vsel %vm696, %v808, 0
        %815 = vmatprep.subr.bf16.mxu0 0
        %816 = vmatpush1.bf16.xpose.msra.mxu0 %v813
        %817 = vmatprep.subr.bf16.mxu0 0
        %818 = vmatpush1.bf16.xpose.msra.mxu0 0
        %819 = vmatprep.subr.bf16.mxu0 0
        %820 = vmatpush1.bf16.xpose.msra.mxu0 0
        %821 = vmatprep.subr.bf16.mxu0 0
        %822 = vmatpush1.bf16.xpose.msra.mxu0 0
        %823 = vmatprep.subr.bf16.mxu0 0
        %824 = vmatpush1.bf16.xpose.msra.mxu0 0
        %825 = vmatprep.subr.bf16.mxu0 0
        %826 = vmatpush1.bf16.xpose.msra.mxu0 0
        %827 = vmatprep.subr.bf16.mxu0 0
        %828 = vmatpush1.bf16.xpose.msra.mxu0 0
        %829 = vmatprep.subr.bf16.mxu0 0
        %830 = vmatpush1.bf16.xpose.msra.mxu0 0
        %831 = vmatprep.subr.bf16.mxu0 0
        %832 = vmatpush1.bf16.xpose.msra.mxu0 0
        %833 = vmatprep.subr.bf16.mxu0 0
        %834 = vmatpush1.bf16.xpose.msra.mxu0 0
        %835 = vmatprep.subr.bf16.mxu0 0
        %836 = vmatpush1.bf16.xpose.msra.mxu0 0
        %837 = vmatprep.subr.bf16.mxu0 0
        %838 = vmatpush1.bf16.xpose.msra.mxu0 0
        %839 = vmatprep.subr.bf16.mxu0 0
        %840 = vmatpush1.bf16.xpose.msra.mxu0 0
        %841 = vmatprep.subr.bf16.mxu0 0
        %842 = vmatpush1.bf16.xpose.msra.mxu0 0
        %843 = vmatprep.subr.bf16.mxu0 0
        %844 = vmatpush1.bf16.xpose.msra.mxu0 0
        %845 = vmatprep.subr.bf16.mxu0 0
        %846 = vmatpush1.bf16.xpose.msra.mxu0 0
        %847 = vmatprep.mubr.bf16.mxu0 0
        %848 = vmatmul.mubr.bf16.gmra.mrb[0].mxu0 %v810
        %v849 = vpop.f32.mrb[0].mxu0
        %v850 = vadd.f32 0.0, %v849
        %v851 = vpop.f32.mrb[0].mxu0
        %v852 = vpop.f32.mrb[0].mxu0
        %v853 = vpop.f32.mrb[0].mxu0
        %854 = vdwg.mxu0
        %v855 = vsel %vm696, %v850, -inf
        %856 = vmax.xlane.f32.xlu0 %v855
        %v857 = vpop.xlane.xlu0 %856
        %v858 = vsub.f32 %v850, %v857
        %v859 = vmul.f32 %v858, 1.442695
        %v860 = vpow.pop %v859
        %v861 = vsel %vm696, %v860, 0.0
        %862 = vadd.xlane.f32.xlu0 %v861
        %v863 = vpop.xlane.xlu0 %862
        %v864 = vrcp.pop %v863
        %v865 = vmul.f32 %v860, %v864
        %v866 = vpack.c.bf16 %v865, %v865
        %867 = vrot.lane.b32.xlu0 %v692, 56
        %v868 = vpop.permute.xlu0 %867
        %v870 = vsel %vm696, %v866, 0
        %v873 = vsel %vm760, %v868, 0
        %875 = vmatprep.subr.bf16.mxu0 0
        %876 = vmatpush1.bf16.msra.mxu0 %v873
        %877 = vmatprep.subr.bf16.mxu0 0
        %878 = vmatpush1.bf16.msra.mxu0 0
        %879 = vmatprep.subr.bf16.mxu0 0
        %880 = vmatpush1.bf16.msra.mxu0 0
        %881 = vmatprep.subr.bf16.mxu0 0
        %882 = vmatpush1.bf16.msra.mxu0 0
        %883 = vmatprep.subr.bf16.mxu0 0
        %884 = vmatpush1.bf16.msra.mxu0 0
        %885 = vmatprep.subr.bf16.mxu0 0
        %886 = vmatpush1.bf16.msra.mxu0 0
        %887 = vmatprep.subr.bf16.mxu0 0
        %888 = vmatpush1.bf16.msra.mxu0 0
        %889 = vmatprep.subr.bf16.mxu0 0
        %890 = vmatpush1.bf16.msra.mxu0 0
        %891 = vmatprep.subr.bf16.mxu0 0
        %892 = vmatpush1.bf16.msra.mxu0 0
        %893 = vmatprep.subr.bf16.mxu0 0
        %894 = vmatpush1.bf16.msra.mxu0 0
        %895 = vmatprep.subr.bf16.mxu0 0
        %896 = vmatpush1.bf16.msra.mxu0 0
        %897 = vmatprep.subr.bf16.mxu0 0
        %898 = vmatpush1.bf16.msra.mxu0 0
        %899 = vmatprep.subr.bf16.mxu0 0
        %900 = vmatpush1.bf16.msra.mxu0 0
        %901 = vmatprep.subr.bf16.mxu0 0
        %902 = vmatpush1.bf16.msra.mxu0 0
        %903 = vmatprep.subr.bf16.mxu0 0
        %904 = vmatpush1.bf16.msra.mxu0 0
        %905 = vmatprep.subr.bf16.mxu0 0
        %906 = vmatpush1.bf16.msra.mxu0 0
        %907 = vmatprep.mubr.bf16.mxu0 0
        %908 = vmatmul.mubr.bf16.gmra.mrb[0].mxu0 %v870
        %v909 = vpop.f32.mrb[0].mxu0
        %v910 = vadd.f32 0.0, %v909
        %v911 = vpop.f32.mrb[0].mxu0
        %v912 = vpop.f32.mrb[0].mxu0
        %v913 = vpop.f32.mrb[0].mxu0
        %914 = vdwg.mxu0
        %916 = vrot.lane.b32.xlu0 %v910, 8
        %v917 = vpop.permute.xlu0 %916
        %vm919 = vcmask 130112
        %920 = vst.msk [vmem:[#allocation2] sm:$0xff] %vm919, %v917
        %921 = vrot.lane.b32.xlu0 %v692, 112
        %v922 = vpop.permute.xlu0 %921
        %923 = vrot.lane.b32.xlu0 %v692, 80
        %v924 = vpop.permute.xlu0 %923
        %v926 = vsel %vm696, %v922, 0
        %v929 = vsel %vm696, %v924, 0
        %931 = vmatprep.subr.bf16.mxu0 0
        %932 = vmatpush1.bf16.xpose.msra.mxu0 %v929
        %933 = vmatprep.subr.bf16.mxu0 0
        %934 = vmatpush1.bf16.xpose.msra.mxu0 0
        %935 = vmatprep.subr.bf16.mxu0 0
        %936 = vmatpush1.bf16.xpose.msra.mxu0 0
        %937 = vmatprep.subr.bf16.mxu0 0
        %938 = vmatpush1.bf16.xpose.msra.mxu0 0
        %939 = vmatprep.subr.bf16.mxu0 0
        %940 = vmatpush1.bf16.xpose.msra.mxu0 0
        %941 = vmatprep.subr.bf16.mxu0 0
        %942 = vmatpush1.bf16.xpose.msra.mxu0 0
        %943 = vmatprep.subr.bf16.mxu0 0
        %944 = vmatpush1.bf16.xpose.msra.mxu0 0
        %945 = vmatprep.subr.bf16.mxu0 0
        %946 = vmatpush1.bf16.xpose.msra.mxu0 0
        %947 = vmatprep.subr.bf16.mxu0 0
        %948 = vmatpush1.bf16.xpose.msra.mxu0 0
        %949 = vmatprep.subr.bf16.mxu0 0
        %950 = vmatpush1.bf16.xpose.msra.mxu0 0
        %951 = vmatprep.subr.bf16.mxu0 0
        %952 = vmatpush1.bf16.xpose.msra.mxu0 0
        %953 = vmatprep.subr.bf16.mxu0 0
        %954 = vmatpush1.bf16.xpose.msra.mxu0 0
        %955 = vmatprep.subr.bf16.mxu0 0
        %956 = vmatpush1.bf16.xpose.msra.mxu0 0
        %957 = vmatprep.subr.bf16.mxu0 0
        %958 = vmatpush1.bf16.xpose.msra.mxu0 0
        %959 = vmatprep.subr.bf16.mxu0 0
        %960 = vmatpush1.bf16.xpose.msra.mxu0 0
        %961 = vmatprep.subr.bf16.mxu0 0
        %962 = vmatpush1.bf16.xpose.msra.mxu0 0
        %963 = vmatprep.mubr.bf16.mxu0 0
        %964 = vmatmul.mubr.bf16.gmra.mrb[0].mxu0 %v926
        %v965 = vpop.f32.mrb[0].mxu0
        %v966 = vadd.f32 0.0, %v965
        %v967 = vpop.f32.mrb[0].mxu0
        %v968 = vpop.f32.mrb[0].mxu0
        %v969 = vpop.f32.mrb[0].mxu0
        %970 = vdwg.mxu0
        %v971 = vsel %vm696, %v966, -inf
        %972 = vmax.xlane.f32.xlu0 %v971
        %v973 = vpop.xlane.xlu0 %972
        %v974 = vsub.f32 %v966, %v973
        %v975 = vmul.f32 %v974, 1.442695
        %v976 = vpow.pop %v975
        %v977 = vsel %vm696, %v976, 0.0
        %978 = vadd.xlane.f32.xlu0 %v977
        %v979 = vpop.xlane.xlu0 %978
        %v980 = vrcp.pop %v979
        %v981 = vmul.f32 %v976, %v980
        %v982 = vpack.c.bf16 %v981, %v981
        %983 = vrot.lane.b32.xlu0 %v692, 48
        %v984 = vpop.permute.xlu0 %983
        %v986 = vsel %vm696, %v982, 0
        %v989 = vsel %vm760, %v984, 0
        %991 = vmatprep.subr.bf16.mxu0 0
        %992 = vmatpush1.bf16.msra.mxu0 %v989
        %993 = vmatprep.subr.bf16.mxu0 0
        %994 = vmatpush1.bf16.msra.mxu0 0
        %995 = vmatprep.subr.bf16.mxu0 0
        %996 = vmatpush1.bf16.msra.mxu0 0
        %997 = vmatprep.subr.bf16.mxu0 0
        %998 = vmatpush1.bf16.msra.mxu0 0
        %999 = vmatprep.subr.bf16.mxu0 0
        %1000 = vmatpush1.bf16.msra.mxu0 0
        %1001 = vmatprep.subr.bf16.mxu0 0
        %1002 = vmatpush1.bf16.msra.mxu0 0
        %1003 = vmatprep.subr.bf16.mxu0 0
        %1004 = vmatpush1.bf16.msra.mxu0 0
        %1005 = vmatprep.subr.bf16.mxu0 0
        %1006 = vmatpush1.bf16.msra.mxu0 0
        %1007 = vmatprep.subr.bf16.mxu0 0
        %1008 = vmatpush1.bf16.msra.mxu0 0
        %1009 = vmatprep.subr.bf16.mxu0 0
        %1010 = vmatpush1.bf16.msra.mxu0 0
        %1011 = vmatprep.subr.bf16.mxu0 0
        %1012 = vmatpush1.bf16.msra.mxu0 0
        %1013 = vmatprep.subr.bf16.mxu0 0
        %1014 = vmatpush1.bf16.msra.mxu0 0
        %1015 = vmatprep.subr.bf16.mxu0 0
        %1016 = vmatpush1.bf16.msra.mxu0 0
        %1017 = vmatprep.subr.bf16.mxu0 0
        %1018 = vmatpush1.bf16.msra.mxu0 0
        %1019 = vmatprep.subr.bf16.mxu0 0
        %1020 = vmatpush1.bf16.msra.mxu0 0
        %1021 = vmatprep.subr.bf16.mxu0 0
        %1022 = vmatpush1.bf16.msra.mxu0 0
        %1023 = vmatprep.mubr.bf16.mxu0 0
        %1024 = vmatmul.mubr.bf16.gmra.mrb[0].mxu0 %v986
        %v1025 = vpop.f32.mrb[0].mxu0
        %v1026 = vadd.f32 0.0, %v1025
        %v1027 = vpop.f32.mrb[0].mxu0
        %v1028 = vpop.f32.mrb[0].mxu0
        %v1029 = vpop.f32.mrb[0].mxu0
        %1030 = vdwg.mxu0
        %1032 = vrot.lane.b32.xlu0 %v1026, 16
        %v1033 = vpop.permute.xlu0 %1032
        %vm1035 = vcmask 195712
        %1036 = vst.msk [vmem:[#allocation2] sm:$0xff] %vm1035, %v1033
        %1037 = vrot.lane.b32.xlu0 %v692, 104
        %v1038 = vpop.permute.xlu0 %1037
        %1039 = vrot.lane.b32.xlu0 %v692, 72
        %v1040 = vpop.permute.xlu0 %1039
        %v1042 = vsel %vm696, %v1038, 0
        %v1045 = vsel %vm696, %v1040, 0
        %1047 = vmatprep.subr.bf16.mxu0 0
        %1048 = vmatpush1.bf16.xpose.msra.mxu0 %v1045
        %1049 = vmatprep.subr.bf16.mxu0 0
        %1050 = vmatpush1.bf16.xpose.msra.mxu0 0
        %1051 = vmatprep.subr.bf16.mxu0 0
        %1052 = vmatpush1.bf16.xpose.msra.mxu0 0
        %1053 = vmatprep.subr.bf16.mxu0 0
        %1054 = vmatpush1.bf16.xpose.msra.mxu0 0
        %1055 = vmatprep.subr.bf16.mxu0 0
        %1056 = vmatpush1.bf16.xpose.msra.mxu0 0
        %1057 = vmatprep.subr.bf16.mxu0 0
        %1058 = vmatpush1.bf16.xpose.msra.mxu0 0
        %1059 = vmatprep.subr.bf16.mxu0 0
        %1060 = vmatpush1.bf16.xpose.msra.mxu0 0
        %1061 = vmatprep.subr.bf16.mxu0 0
        %1062 = vmatpush1.bf16.xpose.msra.mxu0 0
        %1063 = vmatprep.subr.bf16.mxu0 0
        %1064 = vmatpush1.bf16.xpose.msra.mxu0 0
        %1065 = vmatprep.subr.bf16.mxu0 0
        %1066 = vmatpush1.bf16.xpose.msra.mxu0 0
        %1067 = vmatprep.subr.bf16.mxu0 0
        %1068 = vmatpush1.bf16.xpose.msra.mxu0 0
        %1069 = vmatprep.subr.bf16.mxu0 0
        %1070 = vmatpush1.bf16.xpose.msra.mxu0 0
        %1071 = vmatprep.subr.bf16.mxu0 0
        %1072 = vmatpush1.bf16.xpose.msra.mxu0 0
        %1073 = vmatprep.subr.bf16.mxu0 0
        %1074 = vmatpush1.bf16.xpose.msra.mxu0 0
        %1075 = vmatprep.subr.bf16.mxu0 0
        %1076 = vmatpush1.bf16.xpose.msra.mxu0 0
        %1077 = vmatprep.subr.bf16.mxu0 0
        %1078 = vmatpush1.bf16.xpose.msra.mxu0 0
        %1079 = vmatprep.mubr.bf16.mxu0 0
        %1080 = vmatmul.mubr.bf16.gmra.mrb[0].mxu0 %v1042
        %v1081 = vpop.f32.mrb[0].mxu0
        %v1082 = vadd.f32 0.0, %v1081
        %v1083 = vpop.f32.mrb[0].mxu0
        %v1084 = vpop.f32.mrb[0].mxu0
        %v1085 = vpop.f32.mrb[0].mxu0
        %1086 = vdwg.mxu0
        %v1087 = vsel %vm696, %v1082, -inf
        %1088 = vmax.xlane.f32.xlu0 %v1087
        %v1089 = vpop.xlane.xlu0 %1088
        %v1090 = vsub.f32 %v1082, %v1089
        %v1091 = vmul.f32 %v1090, 1.442695
        %v1092 = vpow.pop %v1091
        %v1093 = vsel %vm696, %v1092, 0.0
        %1094 = vadd.xlane.f32.xlu0 %v1093
        %v1095 = vpop.xlane.xlu0 %1094
        %v1096 = vrcp.pop %v1095
        %v1097 = vmul.f32 %v1092, %v1096
        %v1098 = vpack.c.bf16 %v1097, %v1097
        %1099 = vrot.lane.b32.xlu0 %v692, 40
        %v1100 = vpop.permute.xlu0 %1099
        %v1102 = vsel %vm696, %v1098, 0
        %v1105 = vsel %vm760, %v1100, 0
        %1107 = vmatprep.subr.bf16.mxu0 0
        %1108 = vmatpush1.bf16.msra.mxu0 %v1105
        %1109 = vmatprep.subr.bf16.mxu0 0
        %1110 = vmatpush1.bf16.msra.mxu0 0
        %1111 = vmatprep.subr.bf16.mxu0 0
        %1112 = vmatpush1.bf16.msra.mxu0 0
        %1113 = vmatprep.subr.bf16.mxu0 0
        %1114 = vmatpush1.bf16.msra.mxu0 0
        %1115 = vmatprep.subr.bf16.mxu0 0
        %1116 = vmatpush1.bf16.msra.mxu0 0
        %1117 = vmatprep.subr.bf16.mxu0 0
        %1118 = vmatpush1.bf16.msra.mxu0 0
        %1119 = vmatprep.subr.bf16.mxu0 0
        %1120 = vmatpush1.bf16.msra.mxu0 0
        %1121 = vmatprep.subr.bf16.mxu0 0
        %1122 = vmatpush1.bf16.msra.mxu0 0
        %1123 = vmatprep.subr.bf16.mxu0 0
        %1124 = vmatpush1.bf16.msra.mxu0 0
        %1125 = vmatprep.subr.bf16.mxu0 0
        %1126 = vmatpush1.bf16.msra.mxu0 0
        %1127 = vmatprep.subr.bf16.mxu0 0
        %1128 = vmatpush1.bf16.msra.mxu0 0
        %1129 = vmatprep.subr.bf16.mxu0 0
        %1130 = vmatpush1.bf16.msra.mxu0 0
        %1131 = vmatprep.subr.bf16.mxu0 0
        %1132 = vmatpush1.bf16.msra.mxu0 0
        %1133 = vmatprep.subr.bf16.mxu0 0
        %1134 = vmatpush1.bf16.msra.mxu0 0
        %1135 = vmatprep.subr.bf16.mxu0 0
        %1136 = vmatpush1.bf16.msra.mxu0 0
        %1137 = vmatprep.subr.bf16.mxu0 0
        %1138 = vmatpush1.bf16.msra.mxu0 0
        %1139 = vmatprep.mubr.bf16.mxu0 0
        %1140 = vmatmul.mubr.bf16.gmra.mrb[0].mxu0 %v1102
        %v1141 = vpop.f32.mrb[0].mxu0
        %v1142 = vadd.f32 0.0, %v1141
        %v1143 = vpop.f32.mrb[0].mxu0
        %v1144 = vpop.f32.mrb[0].mxu0
        %v1145 = vpop.f32.mrb[0].mxu0
        %1146 = vdwg.mxu0
        %1148 = vrot.lane.b32.xlu0 %v1142, 24
        %v1149 = vpop.permute.xlu0 %1148
        %vm1151 = vcmask 261312
        %1152 = vst.msk [vmem:[#allocation2] sm:$0xff] %vm1151, %v1149
        %v1153 = vpack.c.bf16 %v689, %v689
        %1155 = vrot.lane.b32.xlu0 %v1153, 96
        %v1156 = vpop.permute.xlu0 %1155
        %v1158 = vsel %vm696, %v1153, 0
        %v1161 = vsel %vm696, %v1156, 0
        %1163 = vmatprep.subr.bf16.mxu0 0
        %1164 = vmatpush1.bf16.xpose.msra.mxu0 %v1161
        %1165 = vmatprep.subr.bf16.mxu0 0
        %1166 = vmatpush1.bf16.xpose.msra.mxu0 0
        %1167 = vmatprep.subr.bf16.mxu0 0
        %1168 = vmatpush1.bf16.xpose.msra.mxu0 0
        %1169 = vmatprep.subr.bf16.mxu0 0
        %1170 = vmatpush1.bf16.xpose.msra.mxu0 0
        %1171 = vmatprep.subr.bf16.mxu0 0
        %1172 = vmatpush1.bf16.xpose.msra.mxu0 0
        %1173 = vmatprep.subr.bf16.mxu0 0
        %1174 = vmatpush1.bf16.xpose.msra.mxu0 0
        %1175 = vmatprep.subr.bf16.mxu0 0
        %1176 = vmatpush1.bf16.xpose.msra.mxu0 0
        %1177 = vmatprep.subr.bf16.mxu0 0
        %1178 = vmatpush1.bf16.xpose.msra.mxu0 0
        %1179 = vmatprep.subr.bf16.mxu0 0
        %1180 = vmatpush1.bf16.xpose.msra.mxu0 0
        %1181 = vmatprep.subr.bf16.mxu0 0
        %1182 = vmatpush1.bf16.xpose.msra.mxu0 0
        %1183 = vmatprep.subr.bf16.mxu0 0
        %1184 = vmatpush1.bf16.xpose.msra.mxu0 0
        %1185 = vmatprep.subr.bf16.mxu0 0
        %1186 = vmatpush1.bf16.xpose.msra.mxu0 0
        %1187 = vmatprep.subr.bf16.mxu0 0
        %1188 = vmatpush1.bf16.xpose.msra.mxu0 0
        %1189 = vmatprep.subr.bf16.mxu0 0
        %1190 = vmatpush1.bf16.xpose.msra.mxu0 0
        %1191 = vmatprep.subr.bf16.mxu0 0
        %1192 = vmatpush1.bf16.xpose.msra.mxu0 0
        %1193 = vmatprep.subr.bf16.mxu0 0
        %1194 = vmatpush1.bf16.xpose.msra.mxu0 0
        %1195 = vmatprep.mubr.bf16.mxu0 0
        %1196 = vmatmul.mubr.bf16.gmra.mrb[0].mxu0 %v1158
        %v1197 = vpop.f32.mrb[0].mxu0
        %v1198 = vadd.f32 0.0, %v1197
        %v1199 = vpop.f32.mrb[0].mxu0
        %v1200 = vpop.f32.mrb[0].mxu0
        %v1201 = vpop.f32.mrb[0].mxu0
        %1202 = vdwg.mxu0
        %v1203 = vsel %vm696, %v1198, -inf
        %1204 = vmax.xlane.f32.xlu0 %v1203
        %v1205 = vpop.xlane.xlu0 %1204
        %v1206 = vsub.f32 %v1198, %v1205
        %v1207 = vmul.f32 %v1206, 1.442695
        %v1208 = vpow.pop %v1207
        %v1209 = vsel %vm696, %v1208, 0.0
        %1210 = vadd.xlane.f32.xlu0 %v1209
        %v1211 = vpop.xlane.xlu0 %1210
        %v1212 = vrcp.pop %v1211
        %v1213 = vmul.f32 %v1208, %v1212
        %v1214 = vpack.c.bf16 %v1213, %v1213
        %1215 = vrot.lane.b32.xlu0 %v1153, 64
        %v1216 = vpop.permute.xlu0 %1215
        %v1218 = vsel %vm696, %v1214, 0
        %v1221 = vsel %vm760, %v1216, 0
        %1223 = vmatprep.subr.bf16.mxu0 0
        %1224 = vmatpush1.bf16.msra.mxu0 %v1221
        %1225 = vmatprep.subr.bf16.mxu0 0
        %1226 = vmatpush1.bf16.msra.mxu0 0
        %1227 = vmatprep.subr.bf16.mxu0 0
        %1228 = vmatpush1.bf16.msra.mxu0 0
        %1229 = vmatprep.subr.bf16.mxu0 0
        %1230 = vmatpush1.bf16.msra.mxu0 0
        %1231 = vmatprep.subr.bf16.mxu0 0
        %1232 = vmatpush1.bf16.msra.mxu0 0
        %1233 = vmatprep.subr.bf16.mxu0 0
        %1234 = vmatpush1.bf16.msra.mxu0 0
        %1235 = vmatprep.subr.bf16.mxu0 0
        %1236 = vmatpush1.bf16.msra.mxu0 0
        %1237 = vmatprep.subr.bf16.mxu0 0
        %1238 = vmatpush1.bf16.msra.mxu0 0
        %1239 = vmatprep.subr.bf16.mxu0 0
        %1240 = vmatpush1.bf16.msra.mxu0 0
        %1241 = vmatprep.subr.bf16.mxu0 0
        %1242 = vmatpush1.bf16.msra.mxu0 0
        %1243 = vmatprep.subr.bf16.mxu0 0
        %1244 = vmatpush1.bf16.msra.mxu0 0
        %1245 = vmatprep.subr.bf16.mxu0 0
        %1246 = vmatpush1.bf16.msra.mxu0 0
        %1247 = vmatprep.subr.bf16.mxu0 0
        %1248 = vmatpush1.bf16.msra.mxu0 0
        %1249 = vmatprep.subr.bf16.mxu0 0
        %1250 = vmatpush1.bf16.msra.mxu0 0
        %1251 = vmatprep.subr.bf16.mxu0 0
        %1252 = vmatpush1.bf16.msra.mxu0 0
        %1253 = vmatprep.subr.bf16.mxu0 0
        %1254 = vmatpush1.bf16.msra.mxu0 0
        %1255 = vmatprep.mubr.bf16.mxu0 0
        %1256 = vmatmul.mubr.bf16.gmra.mrb[0].mxu0 %v1218
        %v1257 = vpop.f32.mrb[0].mxu0
        %v1258 = vadd.f32 0.0, %v1257
        %v1259 = vpop.f32.mrb[0].mxu0
        %v1260 = vpop.f32.mrb[0].mxu0
        %v1261 = vpop.f32.mrb[0].mxu0
        %1262 = vdwg.mxu0
        %1263 = vst.msk [vmem:[#allocation2 + $0x8] sm:$0xff] %vm696, %v1258
        %1264 = vrot.lane.b32.xlu0 %v1153, 120
        %v1265 = vpop.permute.xlu0 %1264
        %1266 = vrot.lane.b32.xlu0 %v1153, 88
        %v1267 = vpop.permute.xlu0 %1266
        %v1269 = vsel %vm696, %v1265, 0
        %v1272 = vsel %vm696, %v1267, 0
        %1274 = vmatprep.subr.bf16.mxu0 0
        %1275 = vmatpush1.bf16.xpose.msra.mxu0 %v1272
        %1276 = vmatprep.subr.bf16.mxu0 0
        %1277 = vmatpush1.bf16.xpose.msra.mxu0 0
        %1278 = vmatprep.subr.bf16.mxu0 0
        %1279 = vmatpush1.bf16.xpose.msra.mxu0 0
        %1280 = vmatprep.subr.bf16.mxu0 0
        %1281 = vmatpush1.bf16.xpose.msra.mxu0 0
        %1282 = vmatprep.subr.bf16.mxu0 0
        %1283 = vmatpush1.bf16.xpose.msra.mxu0 0
        %1284 = vmatprep.subr.bf16.mxu0 0
        %1285 = vmatpush1.bf16.xpose.msra.mxu0 0
        %1286 = vmatprep.subr.bf16.mxu0 0
        %1287 = vmatpush1.bf16.xpose.msra.mxu0 0
        %1288 = vmatprep.subr.bf16.mxu0 0
        %1289 = vmatpush1.bf16.xpose.msra.mxu0 0
        %1290 = vmatprep.subr.bf16.mxu0 0
        %1291 = vmatpush1.bf16.xpose.msra.mxu0 0
        %1292 = vmatprep.subr.bf16.mxu0 0
        %1293 = vmatpush1.bf16.xpose.msra.mxu0 0
        %1294 = vmatprep.subr.bf16.mxu0 0
        %1295 = vmatpush1.bf16.xpose.msra.mxu0 0
        %1296 = vmatprep.subr.bf16.mxu0 0
        %1297 = vmatpush1.bf16.xpose.msra.mxu0 0
        %1298 = vmatprep.subr.bf16.mxu0 0
        %1299 = vmatpush1.bf16.xpose.msra.mxu0 0
        %1300 = vmatprep.subr.bf16.mxu0 0
        %1301 = vmatpush1.bf16.xpose.msra.mxu0 0
        %1302 = vmatprep.subr.bf16.mxu0 0
        %1303 = vmatpush1.bf16.xpose.msra.mxu0 0
        %1304 = vmatprep.subr.bf16.mxu0 0
        %1305 = vmatpush1.bf16.xpose.msra.mxu0 0
        %1306 = vmatprep.mubr.bf16.mxu0 0
        %1307 = vmatmul.mubr.bf16.gmra.mrb[0].mxu0 %v1269
        %v1308 = vpop.f32.mrb[0].mxu0
        %v1309 = vadd.f32 0.0, %v1308
        %v1310 = vpop.f32.mrb[0].mxu0
        %v1311 = vpop.f32.mrb[0].mxu0
        %v1312 = vpop.f32.mrb[0].mxu0
        %1313 = vdwg.mxu0
        %v1314 = vsel %vm696, %v1309, -inf
        %1315 = vmax.xlane.f32.xlu0 %v1314
        %v1316 = vpop.xlane.xlu0 %1315
        %v1317 = vsub.f32 %v1309, %v1316
        %v1318 = vmul.f32 %v1317, 1.442695
        %v1319 = vpow.pop %v1318
        %v1320 = vsel %vm696, %v1319, 0.0
        %1321 = vadd.xlane.f32.xlu0 %v1320
        %v1322 = vpop.xlane.xlu0 %1321
        %v1323 = vrcp.pop %v1322
        %v1324 = vmul.f32 %v1319, %v1323
        %v1325 = vpack.c.bf16 %v1324, %v1324
        %1326 = vrot.lane.b32.xlu0 %v1153, 56
        %v1327 = vpop.permute.xlu0 %1326
        %v1329 = vsel %vm696, %v1325, 0
        %v1332 = vsel %vm760, %v1327, 0
        %1334 = vmatprep.subr.bf16.mxu0 0
        %1335 = vmatpush1.bf16.msra.mxu0 %v1332
        %1336 = vmatprep.subr.bf16.mxu0 0
        %1337 = vmatpush1.bf16.msra.mxu0 0
        %1338 = vmatprep.subr.bf16.mxu0 0
        %1339 = vmatpush1.bf16.msra.mxu0 0
        %1340 = vmatprep.subr.bf16.mxu0 0
        %1341 = vmatpush1.bf16.msra.mxu0 0
        %1342 = vmatprep.subr.bf16.mxu0 0
        %1343 = vmatpush1.bf16.msra.mxu0 0
        %1344 = vmatprep.subr.bf16.mxu0 0
        %1345 = vmatpush1.bf16.msra.mxu0 0
        %1346 = vmatprep.subr.bf16.mxu0 0
        %1347 = vmatpush1.bf16.msra.mxu0 0
        %1348 = vmatprep.subr.bf16.mxu0 0
        %1349 = vmatpush1.bf16.msra.mxu0 0
        %1350 = vmatprep.subr.bf16.mxu0 0
        %1351 = vmatpush1.bf16.msra.mxu0 0
        %1352 = vmatprep.subr.bf16.mxu0 0
        %1353 = vmatpush1.bf16.msra.mxu0 0
        %1354 = vmatprep.subr.bf16.mxu0 0
        %1355 = vmatpush1.bf16.msra.mxu0 0
        %1356 = vmatprep.subr.bf16.mxu0 0
        %1357 = vmatpush1.bf16.msra.mxu0 0
        %1358 = vmatprep.subr.bf16.mxu0 0
        %1359 = vmatpush1.bf16.msra.mxu0 0
        %1360 = vmatprep.subr.bf16.mxu0 0
        %1361 = vmatpush1.bf16.msra.mxu0 0
        %1362 = vmatprep.subr.bf16.mxu0 0
        %1363 = vmatpush1.bf16.msra.mxu0 0
        %1364 = vmatprep.subr.bf16.mxu0 0
        %1365 = vmatpush1.bf16.msra.mxu0 0
        %1366 = vmatprep.mubr.bf16.mxu0 0
        %1367 = vmatmul.mubr.bf16.gmra.mrb[0].mxu0 %v1329
        %v1368 = vpop.f32.mrb[0].mxu0
        %v1369 = vadd.f32 0.0, %v1368
        %v1370 = vpop.f32.mrb[0].mxu0
        %v1371 = vpop.f32.mrb[0].mxu0
        %v1372 = vpop.f32.mrb[0].mxu0
        %1373 = vdwg.mxu0
        %1375 = vrot.lane.b32.xlu0 %v1369, 8
        %v1376 = vpop.permute.xlu0 %1375
        %1378 = vst.msk [vmem:[#allocation2 + $0x8] sm:$0xff] %vm919, %v1376
        %1379 = vrot.lane.b32.xlu0 %v1153, 112
        %v1380 = vpop.permute.xlu0 %1379
        %1381 = vrot.lane.b32.xlu0 %v1153, 80
        %v1382 = vpop.permute.xlu0 %1381
        %v1384 = vsel %vm696, %v1380, 0
        %v1387 = vsel %vm696, %v1382, 0
        %1389 = vmatprep.subr.bf16.mxu0 0
        %1390 = vmatpush1.bf16.xpose.msra.mxu0 %v1387
        %1391 = vmatprep.subr.bf16.mxu0 0
        %1392 = vmatpush1.bf16.xpose.msra.mxu0 0
        %1393 = vmatprep.subr.bf16.mxu0 0
        %1394 = vmatpush1.bf16.xpose.msra.mxu0 0
        %1395 = vmatprep.subr.bf16.mxu0 0
        %1396 = vmatpush1.bf16.xpose.msra.mxu0 0
        %1397 = vmatprep.subr.bf16.mxu0 0
        %1398 = vmatpush1.bf16.xpose.msra.mxu0 0
        %1399 = vmatprep.subr.bf16.mxu0 0
        %1400 = vmatpush1.bf16.xpose.msra.mxu0 0
        %1401 = vmatprep.subr.bf16.mxu0 0
        %1402 = vmatpush1.bf16.xpose.msra.mxu0 0
        %1403 = vmatprep.subr.bf16.mxu0 0
        %1404 = vmatpush1.bf16.xpose.msra.mxu0 0
        %1405 = vmatprep.subr.bf16.mxu0 0
        %1406 = vmatpush1.bf16.xpose.msra.mxu0 0
        %1407 = vmatprep.subr.bf16.mxu0 0
        %1408 = vmatpush1.bf16.xpose.msra.mxu0 0
        %1409 = vmatprep.subr.bf16.mxu0 0
        %1410 = vmatpush1.bf16.xpose.msra.mxu0 0
        %1411 = vmatprep.subr.bf16.mxu0 0
        %1412 = vmatpush1.bf16.xpose.msra.mxu0 0
        %1413 = vmatprep.subr.bf16.mxu0 0
        %1414 = vmatpush1.bf16.xpose.msra.mxu0 0
        %1415 = vmatprep.subr.bf16.mxu0 0
        %1416 = vmatpush1.bf16.xpose.msra.mxu0 0
        %1417 = vmatprep.subr.bf16.mxu0 0
        %1418 = vmatpush1.bf16.xpose.msra.mxu0 0
        %1419 = vmatprep.subr.bf16.mxu0 0
        %1420 = vmatpush1.bf16.xpose.msra.mxu0 0
        %1421 = vmatprep.mubr.bf16.mxu0 0
        %1422 = vmatmul.mubr.bf16.gmra.mrb[0].mxu0 %v1384
        %v1423 = vpop.f32.mrb[0].mxu0
        %v1424 = vadd.f32 0.0, %v1423
        %v1425 = vpop.f32.mrb[0].mxu0
        %v1426 = vpop.f32.mrb[0].mxu0
        %v1427 = vpop.f32.mrb[0].mxu0
        %1428 = vdwg.mxu0
        %v1429 = vsel %vm696, %v1424, -inf
        %1430 = vmax.xlane.f32.xlu0 %v1429
        %v1431 = vpop.xlane.xlu0 %1430
        %v1432 = vsub.f32 %v1424, %v1431
        %v1433 = vmul.f32 %v1432, 1.442695
        %v1434 = vpow.pop %v1433
        %v1435 = vsel %vm696, %v1434, 0.0
        %1436 = vadd.xlane.f32.xlu0 %v1435
        %v1437 = vpop.xlane.xlu0 %1436
        %v1438 = vrcp.pop %v1437
        %v1439 = vmul.f32 %v1434, %v1438
        %v1440 = vpack.c.bf16 %v1439, %v1439
        %1441 = vrot.lane.b32.xlu0 %v1153, 48
        %v1442 = vpop.permute.xlu0 %1441
        %v1444 = vsel %vm696, %v1440, 0
        %v1447 = vsel %vm760, %v1442, 0
        %1449 = vmatprep.subr.bf16.mxu0 0
        %1450 = vmatpush1.bf16.msra.mxu0 %v1447
        %1451 = vmatprep.subr.bf16.mxu0 0
        %1452 = vmatpush1.bf16.msra.mxu0 0
        %1453 = vmatprep.subr.bf16.mxu0 0
        %1454 = vmatpush1.bf16.msra.mxu0 0
        %1455 = vmatprep.subr.bf16.mxu0 0
        %1456 = vmatpush1.bf16.msra.mxu0 0
        %1457 = vmatprep.subr.bf16.mxu0 0
        %1458 = vmatpush1.bf16.msra.mxu0 0
        %1459 = vmatprep.subr.bf16.mxu0 0
        %1460 = vmatpush1.bf16.msra.mxu0 0
        %1461 = vmatprep.subr.bf16.mxu0 0
        %1462 = vmatpush1.bf16.msra.mxu0 0
        %1463 = vmatprep.subr.bf16.mxu0 0
        %1464 = vmatpush1.bf16.msra.mxu0 0
        %1465 = vmatprep.subr.bf16.mxu0 0
        %1466 = vmatpush1.bf16.msra.mxu0 0
        %1467 = vmatprep.subr.bf16.mxu0 0
        %1468 = vmatpush1.bf16.msra.mxu0 0
        %1469 = vmatprep.subr.bf16.mxu0 0
        %1470 = vmatpush1.bf16.msra.mxu0 0
        %1471 = vmatprep.subr.bf16.mxu0 0
        %1472 = vmatpush1.bf16.msra.mxu0 0
        %1473 = vmatprep.subr.bf16.mxu0 0
        %1474 = vmatpush1.bf16.msra.mxu0 0
        %1475 = vmatprep.subr.bf16.mxu0 0
        %1476 = vmatpush1.bf16.msra.mxu0 0
        %1477 = vmatprep.subr.bf16.mxu0 0
        %1478 = vmatpush1.bf16.msra.mxu0 0
        %1479 = vmatprep.subr.bf16.mxu0 0
        %1480 = vmatpush1.bf16.msra.mxu0 0
        %1481 = vmatprep.mubr.bf16.mxu0 0
        %1482 = vmatmul.mubr.bf16.gmra.mrb[0].mxu0 %v1444
        %v1483 = vpop.f32.mrb[0].mxu0
        %v1484 = vadd.f32 0.0, %v1483
        %v1485 = vpop.f32.mrb[0].mxu0
        %v1486 = vpop.f32.mrb[0].mxu0
        %v1487 = vpop.f32.mrb[0].mxu0
        %1488 = vdwg.mxu0
        %1490 = vrot.lane.b32.xlu0 %v1484, 16
        %v1491 = vpop.permute.xlu0 %1490
        %1493 = vst.msk [vmem:[#allocation2 + $0x8] sm:$0xff] %vm1035, %v1491
        %1494 = vrot.lane.b32.xlu0 %v1153, 104
        %v1495 = vpop.permute.xlu0 %1494
        %1496 = vrot.lane.b32.xlu0 %v1153, 72
        %v1497 = vpop.permute.xlu0 %1496
        %v1499 = vsel %vm696, %v1495, 0
        %v1502 = vsel %vm696, %v1497, 0
        %1504 = vmatprep.subr.bf16.mxu0 0
        %1505 = vmatpush1.bf16.xpose.msra.mxu0 %v1502
        %1506 = vmatprep.subr.bf16.mxu0 0
        %1507 = vmatpush1.bf16.xpose.msra.mxu0 0
        %1508 = vmatprep.subr.bf16.mxu0 0
        %1509 = vmatpush1.bf16.xpose.msra.mxu0 0
        %1510 = vmatprep.subr.bf16.mxu0 0
        %1511 = vmatpush1.bf16.xpose.msra.mxu0 0
        %1512 = vmatprep.subr.bf16.mxu0 0
        %1513 = vmatpush1.bf16.xpose.msra.mxu0 0
        %1514 = vmatprep.subr.bf16.mxu0 0
        %1515 = vmatpush1.bf16.xpose.msra.mxu0 0
        %1516 = vmatprep.subr.bf16.mxu0 0
        %1517 = vmatpush1.bf16.xpose.msra.mxu0 0
        %1518 = vmatprep.subr.bf16.mxu0 0
        %1519 = vmatpush1.bf16.xpose.msra.mxu0 0
        %1520 = vmatprep.subr.bf16.mxu0 0
        %1521 = vmatpush1.bf16.xpose.msra.mxu0 0
        %1522 = vmatprep.subr.bf16.mxu0 0
        %1523 = vmatpush1.bf16.xpose.msra.mxu0 0
        %1524 = vmatprep.subr.bf16.mxu0 0
        %1525 = vmatpush1.bf16.xpose.msra.mxu0 0
        %1526 = vmatprep.subr.bf16.mxu0 0
        %1527 = vmatpush1.bf16.xpose.msra.mxu0 0
        %1528 = vmatprep.subr.bf16.mxu0 0
        %1529 = vmatpush1.bf16.xpose.msra.mxu0 0
        %1530 = vmatprep.subr.bf16.mxu0 0
        %1531 = vmatpush1.bf16.xpose.msra.mxu0 0
        %1532 = vmatprep.subr.bf16.mxu0 0
        %1533 = vmatpush1.bf16.xpose.msra.mxu0 0
        %1534 = vmatprep.subr.bf16.mxu0 0
        %1535 = vmatpush1.bf16.xpose.msra.mxu0 0
        %1536 = vmatprep.mubr.bf16.mxu0 0
        %1537 = vmatmul.mubr.bf16.gmra.mrb[0].mxu0 %v1499
        %v1538 = vpop.f32.mrb[0].mxu0
        %v1539 = vadd.f32 0.0, %v1538
        %v1540 = vpop.f32.mrb[0].mxu0
        %v1541 = vpop.f32.mrb[0].mxu0
        %v1542 = vpop.f32.mrb[0].mxu0
        %1543 = vdwg.mxu0
        %v1544 = vsel %vm696, %v1539, -inf
        %1545 = vmax.xlane.f32.xlu0 %v1544
        %v1546 = vpop.xlane.xlu0 %1545
        %v1547 = vsub.f32 %v1539, %v1546
        %v1548 = vmul.f32 %v1547, 1.442695
        %v1549 = vpow.pop %v1548
        %v1550 = vsel %vm696, %v1549, 0.0
        %1551 = vadd.xlane.f32.xlu0 %v1550
        %v1552 = vpop.xlane.xlu0 %1551
        %v1553 = vrcp.pop %v1552
        %v1554 = vmul.f32 %v1549, %v1553
        %v1555 = vpack.c.bf16 %v1554, %v1554
        %1556 = vrot.lane.b32.xlu0 %v1153, 40
        %v1557 = vpop.permute.xlu0 %1556
        %v1559 = vsel %vm696, %v1555, 0
        %v1562 = vsel %vm760, %v1557, 0
        %1564 = vmatprep.subr.bf16.mxu0 0
        %1565 = vmatpush1.bf16.msra.mxu0 %v1562
        %1566 = vmatprep.subr.bf16.mxu0 0
        %1567 = vmatpush1.bf16.msra.mxu0 0
        %1568 = vmatprep.subr.bf16.mxu0 0
        %1569 = vmatpush1.bf16.msra.mxu0 0
        %1570 = vmatprep.subr.bf16.mxu0 0
        %1571 = vmatpush1.bf16.msra.mxu0 0
        %1572 = vmatprep.subr.bf16.mxu0 0
        %1573 = vmatpush1.bf16.msra.mxu0 0
        %1574 = vmatprep.subr.bf16.mxu0 0
        %1575 = vmatpush1.bf16.msra.mxu0 0
        %1576 = vmatprep.subr.bf16.mxu0 0
        %1577 = vmatpush1.bf16.msra.mxu0 0
        %1578 = vmatprep.subr.bf16.mxu0 0
        %1579 = vmatpush1.bf16.msra.mxu0 0
        %1580 = vmatprep.subr.bf16.mxu0 0
        %1581 = vmatpush1.bf16.msra.mxu0 0
        %1582 = vmatprep.subr.bf16.mxu0 0
        %1583 = vmatpush1.bf16.msra.mxu0 0
        %1584 = vmatprep.subr.bf16.mxu0 0
        %1585 = vmatpush1.bf16.msra.mxu0 0
        %1586 = vmatprep.subr.bf16.mxu0 0
        %1587 = vmatpush1.bf16.msra.mxu0 0
        %1588 = vmatprep.subr.bf16.mxu0 0
        %1589 = vmatpush1.bf16.msra.mxu0 0
        %1590 = vmatprep.subr.bf16.mxu0 0
        %1591 = vmatpush1.bf16.msra.mxu0 0
        %1592 = vmatprep.subr.bf16.mxu0 0
        %1593 = vmatpush1.bf16.msra.mxu0 0
        %1594 = vmatprep.subr.bf16.mxu0 0
        %1595 = vmatpush1.bf16.msra.mxu0 0
        %1596 = vmatprep.mubr.bf16.mxu0 0
        %1597 = vmatmul.mubr.bf16.gmra.mrb[0].mxu0 %v1559
        %v1598 = vpop.f32.mrb[0].mxu0
        %v1599 = vadd.f32 0.0, %v1598
        %v1600 = vpop.f32.mrb[0].mxu0
        %v1601 = vpop.f32.mrb[0].mxu0
        %v1602 = vpop.f32.mrb[0].mxu0
        %1603 = vdwg.mxu0
        %1605 = vrot.lane.b32.xlu0 %v1599, 24
        %v1606 = vpop.permute.xlu0 %1605
        %1608 = vst.msk [vmem:[#allocation2 + $0x8] sm:$0xff] %vm1151, %v1606
        %v1609 = vld [vmem:[#allocation2] sm:$0xff]
        %v1610 = vld [vmem:[#allocation2 + $0x8] sm:$0xff]
        %v1611 = vpack.c.bf16 %v1610, %v1609
        %v1612 = vld [vmem:[%s564] sm:$0xf]
        %v1613 = vld [vmem:[%s564 + $0x4] sm:$0xf]
        %v1614 = vld [vmem:[%s564 + $0x8] sm:$0xf]
        %v1615 = vld [vmem:[%s564 + $0xc] sm:$0xf]
        %v1616 = vlaneseq
        %v1617 = vshrl.u32 %v1616, 7
        %v1618 = vsub.s32 1, %v1617
        %v1619 = vrot.slane %v624, %v1618
        %v1624 = vunpack.c.l.b16 %v1612
        %v1625 = vunpack.c.l.b16 %v1613
        %v1626 = vunpack.c.l.b16 %v1614
        %v1627 = vunpack.c.l.b16 %v1615
        %v1628 = vpack.c.b16 %v1625, %v1624
        %v1629 = vpack.c.b16 %v1627, %v1626
        %v1633 = vsel %vm647, %v1611, 0
        %1635 = vmatprep.subr.bf16.mxu0 0
        %1636 = vmatpush1.bf16.msra.mxu0 %v1628
        %1637 = vmatprep.subr.bf16.mxu0 0
        %1638 = vmatpush1.bf16.msra.mxu0 %v1629
        %1639 = vmatprep.subr.bf16.mxu0 0
        %1640 = vmatpush1.bf16.msra.mxu0 0
        %1641 = vmatprep.subr.bf16.mxu0 0
        %1642 = vmatpush1.bf16.msra.mxu0 0
        %1643 = vmatprep.subr.bf16.mxu0 0
        %1644 = vmatpush1.bf16.msra.mxu0 0
        %1645 = vmatprep.subr.bf16.mxu0 0
        %1646 = vmatpush1.bf16.msra.mxu0 0
        %1647 = vmatprep.subr.bf16.mxu0 0
        %1648 = vmatpush1.bf16.msra.mxu0 0
        %1649 = vmatprep.subr.bf16.mxu0 0
        %1650 = vmatpush1.bf16.msra.mxu0 0
        %1651 = vmatprep.subr.bf16.mxu0 0
        %1652 = vmatpush1.bf16.msra.mxu0 0
        %1653 = vmatprep.subr.bf16.mxu0 0
        %1654 = vmatpush1.bf16.msra.mxu0 0
        %1655 = vmatprep.subr.bf16.mxu0 0
        %1656 = vmatpush1.bf16.msra.mxu0 0
        %1657 = vmatprep.subr.bf16.mxu0 0
        %1658 = vmatpush1.bf16.msra.mxu0 0
        %1659 = vmatprep.subr.bf16.mxu0 0
        %1660 = vmatpush1.bf16.msra.mxu0 0
        %1661 = vmatprep.subr.bf16.mxu0 0
        %1662 = vmatpush1.bf16.msra.mxu0 0
        %1663 = vmatprep.subr.bf16.mxu0 0
        %1664 = vmatpush1.bf16.msra.mxu0 0
        %1665 = vmatprep.subr.bf16.mxu0 0
        %1666 = vmatpush1.bf16.msra.mxu0 0
        %1667 = vmatprep.mubr.bf16.mxu0 0
        %1668 = vmatmul.mubr.bf16.gmra.mrb[0].mxu0 %v1633
        %v1669 = vpop.f32.mrb[0].mxu0
        %v1670 = vadd.f32 %v1619, %v1669
        %v1671 = vpop.f32.mrb[0].mxu0
        %v1672 = vpop.f32.mrb[0].mxu0
        %v1673 = vadd.f32 %v1619, %v1672
        %v1674 = vpop.f32.mrb[0].mxu0
        %1675 = vdwg.mxu0
        %v1676 = vadd.f32 %v618, %v1670
        %v1677 = vadd.f32 %v619, %v1673
        %v1678 = vsel %vm647, %v1676, 0.0
        %1679 = vadd.xlane.f32.xlu0 %v1678
        %v1680 = vpop.xlane.xlu0 %1679
        %v1681 = vsel %vm647, %v1677, 0.0
        %1682 = vadd.xlane.f32.xlu0 %v1681
        %v1683 = vpop.xlane.xlu0 %1682
        %v1684 = vrcp.pop 32.0
        %v1685 = vmul.f32 %v1680, %v1684
        %v1686 = vmul.f32 %v1683, %v1684
        %v1687 = vsub.f32 %v1676, %v1685
        %v1688 = vsub.f32 %v1677, %v1686
        %v1689 = vmul.f32 %v1687, %v1687
        %v1690 = vmul.f32 %v1688, %v1688
        %v1691 = vsel %vm647, %v1689, 0.0
        %1692 = vadd.xlane.f32.xlu0 %v1691
        %v1693 = vpop.xlane.xlu0 %1692
        %v1694 = vsel %vm647, %v1690, 0.0
        %1695 = vadd.xlane.f32.xlu0 %v1694
        %v1696 = vpop.xlane.xlu0 %1695
        %v1697 = vmul.f32 %v1693, %v1684
        %v1698 = vmul.f32 %v1696, %v1684
        %v1699 = vadd.f32 %v1697, 1e-05
        %v1700 = vadd.f32 %v1698, 1e-05
        %v1701 = vrsqrt.pop %v1699
        %v1702 = vrsqrt.pop %v1700
        %v1703 = vmul.f32 %v1687, %v1701
        %v1704 = vmul.f32 %v1688, %v1702
        %v1705 = vlaneseq
        %v1706 = vshrl.u32 %v1705, 7
        %v1707 = vsub.s32 7, %v1706
        %v1708 = vrot.slane %v624, %v1707
        %v1709 = vmul.f32 %v1703, %v1708
        %v1710 = vmul.f32 %v1704, %v1708
        %v1711 = vlaneseq
        %v1712 = vshrl.u32 %v1711, 7
        %v1713 = vsub.s32 0, %v1712
        %v1714 = vrot.slane %v625, %v1713
        %v1715 = vadd.f32 %v1709, %v1714
        %v1716 = vadd.f32 %v1710, %v1714
        %v1717 = vpack.c.bf16 %v1716, %v1715
        %v1718 = vld [vmem:[%s461] sm:$0xf]
        %v1719 = vld [vmem:[%s461 + $0x4] sm:$0xf]
        %v1720 = vld [vmem:[%s461 + $0x8] sm:$0xf]
        %v1721 = vld [vmem:[%s461 + $0xc] sm:$0xf]
        %v1722 = vlaneseq
        %v1723 = vshrl.u32 %v1722, 7
        %v1724 = vsub.s32 2, %v1723
        %v1725 = vrot.slane %v624, %v1724
        %v1730 = vunpack.c.l.b16 %v1718
        %v1731 = vunpack.c.l.b16 %v1719
        %v1732 = vunpack.c.l.b16 %v1720
        %v1733 = vunpack.c.l.b16 %v1721
        %v1734 = vpack.c.b16 %v1731, %v1730
        %v1735 = vpack.c.b16 %v1733, %v1732
        %v1739 = vsel %vm647, %v1717, 0
        %1741 = vmatprep.subr.bf16.mxu0 0
        %1742 = vmatpush1.bf16.msra.mxu0 %v1734
        %1743 = vmatprep.subr.bf16.mxu0 0
        %1744 = vmatpush1.bf16.msra.mxu0 %v1735
        %1745 = vmatprep.subr.bf16.mxu0 0
        %1746 = vmatpush1.bf16.msra.mxu0 0
        %1747 = vmatprep.subr.bf16.mxu0 0
        %1748 = vmatpush1.bf16.msra.mxu0 0
        %1749 = vmatprep.subr.bf16.mxu0 0
        %1750 = vmatpush1.bf16.msra.mxu0 0
        %1751 = vmatprep.subr.bf16.mxu0 0
        %1752 = vmatpush1.bf16.msra.mxu0 0
        %1753 = vmatprep.subr.bf16.mxu0 0
        %1754 = vmatpush1.bf16.msra.mxu0 0
        %1755 = vmatprep.subr.bf16.mxu0 0
        %1756 = vmatpush1.bf16.msra.mxu0 0
        %1757 = vmatprep.subr.bf16.mxu0 0
        %1758 = vmatpush1.bf16.msra.mxu0 0
        %1759 = vmatprep.subr.bf16.mxu0 0
        %1760 = vmatpush1.bf16.msra.mxu0 0
        %1761 = vmatprep.subr.bf16.mxu0 0
        %1762 = vmatpush1.bf16.msra.mxu0 0
        %1763 = vmatprep.subr.bf16.mxu0 0
        %1764 = vmatpush1.bf16.msra.mxu0 0
        %1765 = vmatprep.subr.bf16.mxu0 0
        %1766 = vmatpush1.bf16.msra.mxu0 0
        %1767 = vmatprep.subr.bf16.mxu0 0
        %1768 = vmatpush1.bf16.msra.mxu0 0
        %1769 = vmatprep.subr.bf16.mxu0 0
        %1770 = vmatpush1.bf16.msra.mxu0 0
        %1771 = vmatprep.subr.bf16.mxu0 0
        %1772 = vmatpush1.bf16.msra.mxu0 0
        %1773 = vmatprep.mubr.bf16.mxu0 0
        %1774 = vmatmul.mubr.bf16.gmra.mrb[0].mxu0 %v1739
        %v1775 = vpop.f32.mrb[0].mxu0
        %v1776 = vadd.f32 %v1725, %v1775
        %v1777 = vpop.f32.mrb[0].mxu0
        %v1778 = vpop.f32.mrb[0].mxu0
        %v1779 = vadd.f32 %v1725, %v1778
        %v1780 = vpop.f32.mrb[0].mxu0
        %1781 = vdwg.mxu0
        %v1782 = vpack.c.bf16 %v621, %v620
        %v1783 = vpack.c.bf16 %v623, %v622
        %v1784 = vld [vmem:[%s470] sm:$0xf]
        %v1785 = vld [vmem:[%s470 + $0x4] sm:$0xf]
        %v1786 = vld [vmem:[%s470 + $0x8] sm:$0xf]
        %v1787 = vld [vmem:[%s470 + $0xc] sm:$0xf]
        %v1788 = vlaneseq
        %v1789 = vshrl.u32 %v1788, 7
        %v1790 = vsub.s32 3, %v1789
        %v1791 = vrot.slane %v624, %v1790
        %v1796 = vunpack.c.l.b16 %v1784
        %v1797 = vunpack.c.l.b16 %v1785
        %v1798 = vunpack.c.l.b16 %v1786
        %v1799 = vunpack.c.l.b16 %v1787
        %v1800 = vpack.c.b16 %v1797, %v1796
        %v1801 = vpack.c.b16 %v1799, %v1798
        %v1805 = vsel %vm647, %v1782, 0
        %v1808 = vsel %vm647, %v1783, 0
        %1810 = vmatprep.subr.bf16.mxu0 0
        %1811 = vmatpush1.bf16.msra.mxu0 %v1800
        %1812 = vmatprep.subr.bf16.mxu0 0
        %1813 = vmatpush1.bf16.msra.mxu0 %v1801
        %1814 = vmatprep.subr.bf16.mxu0 0
        %1815 = vmatpush1.bf16.msra.mxu0 0
        %1816 = vmatprep.subr.bf16.mxu0 0
        %1817 = vmatpush1.bf16.msra.mxu0 0
        %1818 = vmatprep.subr.bf16.mxu0 0
        %1819 = vmatpush1.bf16.msra.mxu0 0
        %1820 = vmatprep.subr.bf16.mxu0 0
        %1821 = vmatpush1.bf16.msra.mxu0 0
        %1822 = vmatprep.subr.bf16.mxu0 0
        %1823 = vmatpush1.bf16.msra.mxu0 0
        %1824 = vmatprep.subr.bf16.mxu0 0
        %1825 = vmatpush1.bf16.msra.mxu0 0
        %1826 = vmatprep.subr.bf16.mxu0 0
        %1827 = vmatpush1.bf16.msra.mxu0 0
        %1828 = vmatprep.subr.bf16.mxu0 0
        %1829 = vmatpush1.bf16.msra.mxu0 0
        %1830 = vmatprep.subr.bf16.mxu0 0
        %1831 = vmatpush1.bf16.msra.mxu0 0
        %1832 = vmatprep.subr.bf16.mxu0 0
        %1833 = vmatpush1.bf16.msra.mxu0 0
        %1834 = vmatprep.subr.bf16.mxu0 0
        %1835 = vmatpush1.bf16.msra.mxu0 0
        %1836 = vmatprep.subr.bf16.mxu0 0
        %1837 = vmatpush1.bf16.msra.mxu0 0
        %1838 = vmatprep.subr.bf16.mxu0 0
        %1839 = vmatpush1.bf16.msra.mxu0 0
        %1840 = vmatprep.subr.bf16.mxu0 0
        %1841 = vmatpush1.bf16.msra.mxu0 0
        %1842 = vmatprep.mubr.bf16.mxu0 0
        %1843 = vmatmul.mubr.bf16.gmra.mrb[0].mxu0 %v1805
        %v1844 = vpop.f32.mrb[0].mxu0
        %v1845 = vadd.f32 %v1791, %v1844
        %v1846 = vpop.f32.mrb[0].mxu0
        %v1847 = vpop.f32.mrb[0].mxu0
        %v1848 = vadd.f32 %v1791, %v1847
        %v1849 = vpop.f32.mrb[0].mxu0
        %1850 = vmatprep.mubr.bf16.mxu0 0
        %1851 = vmatmul.mubr.bf16.gmra.mrb[0].mxu0 %v1808
        %v1852 = vpop.f32.mrb[0].mxu0
        %v1853 = vadd.f32 %v1791, %v1852
        %v1854 = vpop.f32.mrb[0].mxu0
        %v1855 = vpop.f32.mrb[0].mxu0
        %v1856 = vadd.f32 %v1791, %v1855
        %v1857 = vpop.f32.mrb[0].mxu0
        %1858 = vdwg.mxu0
        %v1859 = vpack.c.bf16 %v1776, %v1776
        %v1860 = vpack.c.bf16 %v1848, %v1845
        %v1862 = vsel %vm696, %v1859, 0
        %v1865 = vsel %vm696, %v1860, 0
        %1867 = vmatprep.subr.bf16.mxu0 0
        %1868 = vmatpush1.bf16.xpose.msra.mxu0 %v1865
        %1869 = vmatprep.subr.bf16.mxu0 0
        %1870 = vmatpush1.bf16.xpose.msra.mxu0 0
        %1871 = vmatprep.subr.bf16.mxu0 0
        %1872 = vmatpush1.bf16.xpose.msra.mxu0 0
        %1873 = vmatprep.subr.bf16.mxu0 0
        %1874 = vmatpush1.bf16.xpose.msra.mxu0 0
        %1875 = vmatprep.subr.bf16.mxu0 0
        %1876 = vmatpush1.bf16.xpose.msra.mxu0 0
        %1877 = vmatprep.subr.bf16.mxu0 0
        %1878 = vmatpush1.bf16.xpose.msra.mxu0 0
        %1879 = vmatprep.subr.bf16.mxu0 0
        %1880 = vmatpush1.bf16.xpose.msra.mxu0 0
        %1881 = vmatprep.subr.bf16.mxu0 0
        %1882 = vmatpush1.bf16.xpose.msra.mxu0 0
        %1883 = vmatprep.subr.bf16.mxu0 0
        %1884 = vmatpush1.bf16.xpose.msra.mxu0 0
        %1885 = vmatprep.subr.bf16.mxu0 0
        %1886 = vmatpush1.bf16.xpose.msra.mxu0 0
        %1887 = vmatprep.subr.bf16.mxu0 0
        %1888 = vmatpush1.bf16.xpose.msra.mxu0 0
        %1889 = vmatprep.subr.bf16.mxu0 0
        %1890 = vmatpush1.bf16.xpose.msra.mxu0 0
        %1891 = vmatprep.subr.bf16.mxu0 0
        %1892 = vmatpush1.bf16.xpose.msra.mxu0 0
        %1893 = vmatprep.subr.bf16.mxu0 0
        %1894 = vmatpush1.bf16.xpose.msra.mxu0 0
        %1895 = vmatprep.subr.bf16.mxu0 0
        %1896 = vmatpush1.bf16.xpose.msra.mxu0 0
        %1897 = vmatprep.subr.bf16.mxu0 0
        %1898 = vmatpush1.bf16.xpose.msra.mxu0 0
        %1899 = vmatprep.mubr.bf16.mxu0 0
        %1900 = vmatmul.mubr.bf16.gmra.mrb[0].mxu0 %v1862
        %v1901 = vpop.f32.mrb[0].mxu0
        %v1902 = vadd.f32 0.0, %v1901
        %v1903 = vpop.f32.mrb[0].mxu0
        %v1904 = vpop.f32.mrb[0].mxu0
        %v1905 = vpop.f32.mrb[0].mxu0
        %1906 = vdwg.mxu0
        %vm1907 = vcmask 130048
        %v1908 = vsel %vm1907, %v1902, -inf
        %1909 = vmax.xlane.f32.xlu0 %v1908
        %v1910 = vpop.xlane.xlu0 %1909
        %v1911 = vsub.f32 %v1902, %v1910
        %v1912 = vmul.f32 %v1911, 1.442695
        %v1913 = vpow.pop %v1912
        %v1914 = vsel %vm1907, %v1913, 0.0
        %1915 = vadd.xlane.f32.xlu0 %v1914
        %v1916 = vpop.xlane.xlu0 %1915
        %v1917 = vrcp.pop %v1916
        %v1918 = vmul.f32 %v1913, %v1917
        %v1919 = vpack.c.bf16 %v1918, %v1918
        %1921 = vrot.lane.b32.xlu0 %v1860, 96
        %v1922 = vpop.permute.xlu0 %1921
        %v1925 = vsel %vm1907, %v1919, 0
        %1927 = vmatprep.subr.bf16.mxu0 0
        %1928 = vmatpush1.bf16.msra.mxu0 %v1922
        %1929 = vmatprep.subr.bf16.mxu0 0
        %1930 = vmatpush1.bf16.msra.mxu0 0
        %1931 = vmatprep.subr.bf16.mxu0 0
        %1932 = vmatpush1.bf16.msra.mxu0 0
        %1933 = vmatprep.subr.bf16.mxu0 0
        %1934 = vmatpush1.bf16.msra.mxu0 0
        %1935 = vmatprep.subr.bf16.mxu0 0
        %1936 = vmatpush1.bf16.msra.mxu0 0
        %1937 = vmatprep.subr.bf16.mxu0 0
        %1938 = vmatpush1.bf16.msra.mxu0 0
        %1939 = vmatprep.subr.bf16.mxu0 0
        %1940 = vmatpush1.bf16.msra.mxu0 0
        %1941 = vmatprep.subr.bf16.mxu0 0
        %1942 = vmatpush1.bf16.msra.mxu0 0
        %1943 = vmatprep.subr.bf16.mxu0 0
        %1944 = vmatpush1.bf16.msra.mxu0 0
        %1945 = vmatprep.subr.bf16.mxu0 0
        %1946 = vmatpush1.bf16.msra.mxu0 0
        %1947 = vmatprep.subr.bf16.mxu0 0
        %1948 = vmatpush1.bf16.msra.mxu0 0
        %1949 = vmatprep.subr.bf16.mxu0 0
        %1950 = vmatpush1.bf16.msra.mxu0 0
        %1951 = vmatprep.subr.bf16.mxu0 0
        %1952 = vmatpush1.bf16.msra.mxu0 0
        %1953 = vmatprep.subr.bf16.mxu0 0
        %1954 = vmatpush1.bf16.msra.mxu0 0
        %1955 = vmatprep.subr.bf16.mxu0 0
        %1956 = vmatpush1.bf16.msra.mxu0 0
        %1957 = vmatprep.subr.bf16.mxu0 0
        %1958 = vmatpush1.bf16.msra.mxu0 0
        %1959 = vmatprep.mubr.bf16.mxu0 0
        %1960 = vmatmul.mubr.bf16.gmra.mrb[0].mxu0 %v1925
        %v1961 = vpop.f32.mrb[0].mxu0
        %v1962 = vadd.f32 0.0, %v1961
        %v1963 = vpop.f32.mrb[0].mxu0
        %v1964 = vpop.f32.mrb[0].mxu0
        %v1965 = vpop.f32.mrb[0].mxu0
        %1966 = vdwg.mxu0
        %1967 = vst.msk [vmem:[#allocation2] sm:$0xff] %vm696, %v1962
        %1969 = vrot.lane.b32.xlu0 %v1859, 120
        %v1970 = vpop.permute.xlu0 %1969
        %1971 = vrot.lane.b32.xlu0 %v1860, 120
        %v1972 = vpop.permute.xlu0 %1971
        %v1974 = vsel %vm696, %v1970, 0
        %v1977 = vsel %vm696, %v1972, 0
        %1979 = vmatprep.subr.bf16.mxu0 0
        %1980 = vmatpush1.bf16.xpose.msra.mxu0 %v1977
        %1981 = vmatprep.subr.bf16.mxu0 0
        %1982 = vmatpush1.bf16.xpose.msra.mxu0 0
        %1983 = vmatprep.subr.bf16.mxu0 0
        %1984 = vmatpush1.bf16.xpose.msra.mxu0 0
        %1985 = vmatprep.subr.bf16.mxu0 0
        %1986 = vmatpush1.bf16.xpose.msra.mxu0 0
        %1987 = vmatprep.subr.bf16.mxu0 0
        %1988 = vmatpush1.bf16.xpose.msra.mxu0 0
        %1989 = vmatprep.subr.bf16.mxu0 0
        %1990 = vmatpush1.bf16.xpose.msra.mxu0 0
        %1991 = vmatprep.subr.bf16.mxu0 0
        %1992 = vmatpush1.bf16.xpose.msra.mxu0 0
        %1993 = vmatprep.subr.bf16.mxu0 0
        %1994 = vmatpush1.bf16.xpose.msra.mxu0 0
        %1995 = vmatprep.subr.bf16.mxu0 0
        %1996 = vmatpush1.bf16.xpose.msra.mxu0 0
        %1997 = vmatprep.subr.bf16.mxu0 0
        %1998 = vmatpush1.bf16.xpose.msra.mxu0 0
        %1999 = vmatprep.subr.bf16.mxu0 0
        %2000 = vmatpush1.bf16.xpose.msra.mxu0 0
        %2001 = vmatprep.subr.bf16.mxu0 0
        %2002 = vmatpush1.bf16.xpose.msra.mxu0 0
        %2003 = vmatprep.subr.bf16.mxu0 0
        %2004 = vmatpush1.bf16.xpose.msra.mxu0 0
        %2005 = vmatprep.subr.bf16.mxu0 0
        %2006 = vmatpush1.bf16.xpose.msra.mxu0 0
        %2007 = vmatprep.subr.bf16.mxu0 0
        %2008 = vmatpush1.bf16.xpose.msra.mxu0 0
        %2009 = vmatprep.subr.bf16.mxu0 0
        %2010 = vmatpush1.bf16.xpose.msra.mxu0 0
        %2011 = vmatprep.mubr.bf16.mxu0 0
        %2012 = vmatmul.mubr.bf16.gmra.mrb[0].mxu0 %v1974
        %v2013 = vpop.f32.mrb[0].mxu0
        %v2014 = vadd.f32 0.0, %v2013
        %v2015 = vpop.f32.mrb[0].mxu0
        %v2016 = vpop.f32.mrb[0].mxu0
        %v2017 = vpop.f32.mrb[0].mxu0
        %2018 = vdwg.mxu0
        %v2019 = vsel %vm1907, %v2014, -inf
        %2020 = vmax.xlane.f32.xlu0 %v2019
        %v2021 = vpop.xlane.xlu0 %2020
        %v2022 = vsub.f32 %v2014, %v2021
        %v2023 = vmul.f32 %v2022, 1.442695
        %v2024 = vpow.pop %v2023
        %v2025 = vsel %vm1907, %v2024, 0.0
        %2026 = vadd.xlane.f32.xlu0 %v2025
        %v2027 = vpop.xlane.xlu0 %2026
        %v2028 = vrcp.pop %v2027
        %v2029 = vmul.f32 %v2024, %v2028
        %v2030 = vpack.c.bf16 %v2029, %v2029
        %2031 = vrot.lane.b32.xlu0 %v1860, 88
        %v2032 = vpop.permute.xlu0 %2031
        %v2035 = vsel %vm1907, %v2030, 0
        %2037 = vmatprep.subr.bf16.mxu0 0
        %2038 = vmatpush1.bf16.msra.mxu0 %v2032
        %2039 = vmatprep.subr.bf16.mxu0 0
        %2040 = vmatpush1.bf16.msra.mxu0 0
        %2041 = vmatprep.subr.bf16.mxu0 0
        %2042 = vmatpush1.bf16.msra.mxu0 0
        %2043 = vmatprep.subr.bf16.mxu0 0
        %2044 = vmatpush1.bf16.msra.mxu0 0
        %2045 = vmatprep.subr.bf16.mxu0 0
        %2046 = vmatpush1.bf16.msra.mxu0 0
        %2047 = vmatprep.subr.bf16.mxu0 0
        %2048 = vmatpush1.bf16.msra.mxu0 0
        %2049 = vmatprep.subr.bf16.mxu0 0
        %2050 = vmatpush1.bf16.msra.mxu0 0
        %2051 = vmatprep.subr.bf16.mxu0 0
        %2052 = vmatpush1.bf16.msra.mxu0 0
        %2053 = vmatprep.subr.bf16.mxu0 0
        %2054 = vmatpush1.bf16.msra.mxu0 0
        %2055 = vmatprep.subr.bf16.mxu0 0
        %2056 = vmatpush1.bf16.msra.mxu0 0
        %2057 = vmatprep.subr.bf16.mxu0 0
        %2058 = vmatpush1.bf16.msra.mxu0 0
        %2059 = vmatprep.subr.bf16.mxu0 0
        %2060 = vmatpush1.bf16.msra.mxu0 0
        %2061 = vmatprep.subr.bf16.mxu0 0
        %2062 = vmatpush1.bf16.msra.mxu0 0
        %2063 = vmatprep.subr.bf16.mxu0 0
        %2064 = vmatpush1.bf16.msra.mxu0 0
        %2065 = vmatprep.subr.bf16.mxu0 0
        %2066 = vmatpush1.bf16.msra.mxu0 0
        %2067 = vmatprep.subr.bf16.mxu0 0
        %2068 = vmatpush1.bf16.msra.mxu0 0
        %2069 = vmatprep.mubr.bf16.mxu0 0
        %2070 = vmatmul.mubr.bf16.gmra.mrb[0].mxu0 %v2035
        %v2071 = vpop.f32.mrb[0].mxu0
        %v2072 = vadd.f32 0.0, %v2071
        %v2073 = vpop.f32.mrb[0].mxu0
        %v2074 = vpop.f32.mrb[0].mxu0
        %v2075 = vpop.f32.mrb[0].mxu0
        %2076 = vdwg.mxu0
        %2078 = vrot.lane.b32.xlu0 %v2072, 8
        %v2079 = vpop.permute.xlu0 %2078
        %2081 = vst.msk [vmem:[#allocation2] sm:$0xff] %vm919, %v2079
        %2082 = vrot.lane.b32.xlu0 %v1859, 112
        %v2083 = vpop.permute.xlu0 %2082
        %2084 = vrot.lane.b32.xlu0 %v1860, 112
        %v2085 = vpop.permute.xlu0 %2084
        %v2087 = vsel %vm696, %v2083, 0
        %v2090 = vsel %vm696, %v2085, 0
        %2092 = vmatprep.subr.bf16.mxu0 0
        %2093 = vmatpush1.bf16.xpose.msra.mxu0 %v2090
        %2094 = vmatprep.subr.bf16.mxu0 0
        %2095 = vmatpush1.bf16.xpose.msra.mxu0 0
        %2096 = vmatprep.subr.bf16.mxu0 0
        %2097 = vmatpush1.bf16.xpose.msra.mxu0 0
        %2098 = vmatprep.subr.bf16.mxu0 0
        %2099 = vmatpush1.bf16.xpose.msra.mxu0 0
        %2100 = vmatprep.subr.bf16.mxu0 0
        %2101 = vmatpush1.bf16.xpose.msra.mxu0 0
        %2102 = vmatprep.subr.bf16.mxu0 0
        %2103 = vmatpush1.bf16.xpose.msra.mxu0 0
        %2104 = vmatprep.subr.bf16.mxu0 0
        %2105 = vmatpush1.bf16.xpose.msra.mxu0 0
        %2106 = vmatprep.subr.bf16.mxu0 0
        %2107 = vmatpush1.bf16.xpose.msra.mxu0 0
        %2108 = vmatprep.subr.bf16.mxu0 0
        %2109 = vmatpush1.bf16.xpose.msra.mxu0 0
        %2110 = vmatprep.subr.bf16.mxu0 0
        %2111 = vmatpush1.bf16.xpose.msra.mxu0 0
        %2112 = vmatprep.subr.bf16.mxu0 0
        %2113 = vmatpush1.bf16.xpose.msra.mxu0 0
        %2114 = vmatprep.subr.bf16.mxu0 0
        %2115 = vmatpush1.bf16.xpose.msra.mxu0 0
        %2116 = vmatprep.subr.bf16.mxu0 0
        %2117 = vmatpush1.bf16.xpose.msra.mxu0 0
        %2118 = vmatprep.subr.bf16.mxu0 0
        %2119 = vmatpush1.bf16.xpose.msra.mxu0 0
        %2120 = vmatprep.subr.bf16.mxu0 0
        %2121 = vmatpush1.bf16.xpose.msra.mxu0 0
        %2122 = vmatprep.subr.bf16.mxu0 0
        %2123 = vmatpush1.bf16.xpose.msra.mxu0 0
        %2124 = vmatprep.mubr.bf16.mxu0 0
        %2125 = vmatmul.mubr.bf16.gmra.mrb[0].mxu0 %v2087
        %v2126 = vpop.f32.mrb[0].mxu0
        %v2127 = vadd.f32 0.0, %v2126
        %v2128 = vpop.f32.mrb[0].mxu0
        %v2129 = vpop.f32.mrb[0].mxu0
        %v2130 = vpop.f32.mrb[0].mxu0
        %2131 = vdwg.mxu0
        %v2132 = vsel %vm1907, %v2127, -inf
        %2133 = vmax.xlane.f32.xlu0 %v2132
        %v2134 = vpop.xlane.xlu0 %2133
        %v2135 = vsub.f32 %v2127, %v2134
        %v2136 = vmul.f32 %v2135, 1.442695
        %v2137 = vpow.pop %v2136
        %v2138 = vsel %vm1907, %v2137, 0.0
        %2139 = vadd.xlane.f32.xlu0 %v2138
        %v2140 = vpop.xlane.xlu0 %2139
        %v2141 = vrcp.pop %v2140
        %v2142 = vmul.f32 %v2137, %v2141
        %v2143 = vpack.c.bf16 %v2142, %v2142
        %2144 = vrot.lane.b32.xlu0 %v1860, 80
        %v2145 = vpop.permute.xlu0 %2144
        %v2148 = vsel %vm1907, %v2143, 0
        %2150 = vmatprep.subr.bf16.mxu0 0
        %2151 = vmatpush1.bf16.msra.mxu0 %v2145
        %2152 = vmatprep.subr.bf16.mxu0 0
        %2153 = vmatpush1.bf16.msra.mxu0 0
        %2154 = vmatprep.subr.bf16.mxu0 0
        %2155 = vmatpush1.bf16.msra.mxu0 0
        %2156 = vmatprep.subr.bf16.mxu0 0
        %2157 = vmatpush1.bf16.msra.mxu0 0
        %2158 = vmatprep.subr.bf16.mxu0 0
        %2159 = vmatpush1.bf16.msra.mxu0 0
        %2160 = vmatprep.subr.bf16.mxu0 0
        %2161 = vmatpush1.bf16.msra.mxu0 0
        %2162 = vmatprep.subr.bf16.mxu0 0
        %2163 = vmatpush1.bf16.msra.mxu0 0
        %2164 = vmatprep.subr.bf16.mxu0 0
        %2165 = vmatpush1.bf16.msra.mxu0 0
        %2166 = vmatprep.subr.bf16.mxu0 0
        %2167 = vmatpush1.bf16.msra.mxu0 0
        %2168 = vmatprep.subr.bf16.mxu0 0
        %2169 = vmatpush1.bf16.msra.mxu0 0
        %2170 = vmatprep.subr.bf16.mxu0 0
        %2171 = vmatpush1.bf16.msra.mxu0 0
        %2172 = vmatprep.subr.bf16.mxu0 0
        %2173 = vmatpush1.bf16.msra.mxu0 0
        %2174 = vmatprep.subr.bf16.mxu0 0
        %2175 = vmatpush1.bf16.msra.mxu0 0
        %2176 = vmatprep.subr.bf16.mxu0 0
        %2177 = vmatpush1.bf16.msra.mxu0 0
        %2178 = vmatprep.subr.bf16.mxu0 0
        %2179 = vmatpush1.bf16.msra.mxu0 0
        %2180 = vmatprep.subr.bf16.mxu0 0
        %2181 = vmatpush1.bf16.msra.mxu0 0
        %2182 = vmatprep.mubr.bf16.mxu0 0
        %2183 = vmatmul.mubr.bf16.gmra.mrb[0].mxu0 %v2148
        %v2184 = vpop.f32.mrb[0].mxu0
        %v2185 = vadd.f32 0.0, %v2184
        %v2186 = vpop.f32.mrb[0].mxu0
        %v2187 = vpop.f32.mrb[0].mxu0
        %v2188 = vpop.f32.mrb[0].mxu0
        %2189 = vdwg.mxu0
        %2191 = vrot.lane.b32.xlu0 %v2185, 16
        %v2192 = vpop.permute.xlu0 %2191
        %2194 = vst.msk [vmem:[#allocation2] sm:$0xff] %vm1035, %v2192
        %2195 = vrot.lane.b32.xlu0 %v1859, 104
        %v2196 = vpop.permute.xlu0 %2195
        %2197 = vrot.lane.b32.xlu0 %v1860, 104
        %v2198 = vpop.permute.xlu0 %2197
        %v2200 = vsel %vm696, %v2196, 0
        %v2203 = vsel %vm696, %v2198, 0
        %2205 = vmatprep.subr.bf16.mxu0 0
        %2206 = vmatpush1.bf16.xpose.msra.mxu0 %v2203
        %2207 = vmatprep.subr.bf16.mxu0 0
        %2208 = vmatpush1.bf16.xpose.msra.mxu0 0
        %2209 = vmatprep.subr.bf16.mxu0 0
        %2210 = vmatpush1.bf16.xpose.msra.mxu0 0
        %2211 = vmatprep.subr.bf16.mxu0 0
        %2212 = vmatpush1.bf16.xpose.msra.mxu0 0
        %2213 = vmatprep.subr.bf16.mxu0 0
        %2214 = vmatpush1.bf16.xpose.msra.mxu0 0
        %2215 = vmatprep.subr.bf16.mxu0 0
        %2216 = vmatpush1.bf16.xpose.msra.mxu0 0
        %2217 = vmatprep.subr.bf16.mxu0 0
        %2218 = vmatpush1.bf16.xpose.msra.mxu0 0
        %2219 = vmatprep.subr.bf16.mxu0 0
        %2220 = vmatpush1.bf16.xpose.msra.mxu0 0
        %2221 = vmatprep.subr.bf16.mxu0 0
        %2222 = vmatpush1.bf16.xpose.msra.mxu0 0
        %2223 = vmatprep.subr.bf16.mxu0 0
        %2224 = vmatpush1.bf16.xpose.msra.mxu0 0
        %2225 = vmatprep.subr.bf16.mxu0 0
        %2226 = vmatpush1.bf16.xpose.msra.mxu0 0
        %2227 = vmatprep.subr.bf16.mxu0 0
        %2228 = vmatpush1.bf16.xpose.msra.mxu0 0
        %2229 = vmatprep.subr.bf16.mxu0 0
        %2230 = vmatpush1.bf16.xpose.msra.mxu0 0
        %2231 = vmatprep.subr.bf16.mxu0 0
        %2232 = vmatpush1.bf16.xpose.msra.mxu0 0
        %2233 = vmatprep.subr.bf16.mxu0 0
        %2234 = vmatpush1.bf16.xpose.msra.mxu0 0
        %2235 = vmatprep.subr.bf16.mxu0 0
        %2236 = vmatpush1.bf16.xpose.msra.mxu0 0
        %2237 = vmatprep.mubr.bf16.mxu0 0
        %2238 = vmatmul.mubr.bf16.gmra.mrb[0].mxu0 %v2200
        %v2239 = vpop.f32.mrb[0].mxu0
        %v2240 = vadd.f32 0.0, %v2239
        %v2241 = vpop.f32.mrb[0].mxu0
        %v2242 = vpop.f32.mrb[0].mxu0
        %v2243 = vpop.f32.mrb[0].mxu0
        %2244 = vdwg.mxu0
        %v2245 = vsel %vm1907, %v2240, -inf
        %2246 = vmax.xlane.f32.xlu0 %v2245
        %v2247 = vpop.xlane.xlu0 %2246
        %v2248 = vsub.f32 %v2240, %v2247
        %v2249 = vmul.f32 %v2248, 1.442695
        %v2250 = vpow.pop %v2249
        %v2251 = vsel %vm1907, %v2250, 0.0
        %2252 = vadd.xlane.f32.xlu0 %v2251
        %v2253 = vpop.xlane.xlu0 %2252
        %v2254 = vrcp.pop %v2253
        %v2255 = vmul.f32 %v2250, %v2254
        %v2256 = vpack.c.bf16 %v2255, %v2255
        %2257 = vrot.lane.b32.xlu0 %v1860, 72
        %v2258 = vpop.permute.xlu0 %2257
        %v2261 = vsel %vm1907, %v2256, 0
        %2263 = vmatprep.subr.bf16.mxu0 0
        %2264 = vmatpush1.bf16.msra.mxu0 %v2258
        %2265 = vmatprep.subr.bf16.mxu0 0
        %2266 = vmatpush1.bf16.msra.mxu0 0
        %2267 = vmatprep.subr.bf16.mxu0 0
        %2268 = vmatpush1.bf16.msra.mxu0 0
        %2269 = vmatprep.subr.bf16.mxu0 0
        %2270 = vmatpush1.bf16.msra.mxu0 0
        %2271 = vmatprep.subr.bf16.mxu0 0
        %2272 = vmatpush1.bf16.msra.mxu0 0
        %2273 = vmatprep.subr.bf16.mxu0 0
        %2274 = vmatpush1.bf16.msra.mxu0 0
        %2275 = vmatprep.subr.bf16.mxu0 0
        %2276 = vmatpush1.bf16.msra.mxu0 0
        %2277 = vmatprep.subr.bf16.mxu0 0
        %2278 = vmatpush1.bf16.msra.mxu0 0
        %2279 = vmatprep.subr.bf16.mxu0 0
        %2280 = vmatpush1.bf16.msra.mxu0 0
        %2281 = vmatprep.subr.bf16.mxu0 0
        %2282 = vmatpush1.bf16.msra.mxu0 0
        %2283 = vmatprep.subr.bf16.mxu0 0
        %2284 = vmatpush1.bf16.msra.mxu0 0
        %2285 = vmatprep.subr.bf16.mxu0 0
        %2286 = vmatpush1.bf16.msra.mxu0 0
        %2287 = vmatprep.subr.bf16.mxu0 0
        %2288 = vmatpush1.bf16.msra.mxu0 0
        %2289 = vmatprep.subr.bf16.mxu0 0
        %2290 = vmatpush1.bf16.msra.mxu0 0
        %2291 = vmatprep.subr.bf16.mxu0 0
        %2292 = vmatpush1.bf16.msra.mxu0 0
        %2293 = vmatprep.subr.bf16.mxu0 0
        %2294 = vmatpush1.bf16.msra.mxu0 0
        %2295 = vmatprep.mubr.bf16.mxu0 0
        %2296 = vmatmul.mubr.bf16.gmra.mrb[0].mxu0 %v2261
        %v2297 = vpop.f32.mrb[0].mxu0
        %v2298 = vadd.f32 0.0, %v2297
        %v2299 = vpop.f32.mrb[0].mxu0
        %v2300 = vpop.f32.mrb[0].mxu0
        %v2301 = vpop.f32.mrb[0].mxu0
        %2302 = vdwg.mxu0
        %2304 = vrot.lane.b32.xlu0 %v2298, 24
        %v2305 = vpop.permute.xlu0 %2304
        %2307 = vst.msk [vmem:[#allocation2] sm:$0xff] %vm1151, %v2305
        %v2308 = vpack.c.bf16 %v1779, %v1779
        %v2309 = vpack.c.bf16 %v1856, %v1853
        %v2311 = vsel %vm696, %v2308, 0
        %v2314 = vsel %vm696, %v2309, 0
        %2316 = vmatprep.subr.bf16.mxu0 0
        %2317 = vmatpush1.bf16.xpose.msra.mxu0 %v2314
        %2318 = vmatprep.subr.bf16.mxu0 0
        %2319 = vmatpush1.bf16.xpose.msra.mxu0 0
        %2320 = vmatprep.subr.bf16.mxu0 0
        %2321 = vmatpush1.bf16.xpose.msra.mxu0 0
        %2322 = vmatprep.subr.bf16.mxu0 0
        %2323 = vmatpush1.bf16.xpose.msra.mxu0 0
        %2324 = vmatprep.subr.bf16.mxu0 0
        %2325 = vmatpush1.bf16.xpose.msra.mxu0 0
        %2326 = vmatprep.subr.bf16.mxu0 0
        %2327 = vmatpush1.bf16.xpose.msra.mxu0 0
        %2328 = vmatprep.subr.bf16.mxu0 0
        %2329 = vmatpush1.bf16.xpose.msra.mxu0 0
        %2330 = vmatprep.subr.bf16.mxu0 0
        %2331 = vmatpush1.bf16.xpose.msra.mxu0 0
        %2332 = vmatprep.subr.bf16.mxu0 0
        %2333 = vmatpush1.bf16.xpose.msra.mxu0 0
        %2334 = vmatprep.subr.bf16.mxu0 0
        %2335 = vmatpush1.bf16.xpose.msra.mxu0 0
        %2336 = vmatprep.subr.bf16.mxu0 0
        %2337 = vmatpush1.bf16.xpose.msra.mxu0 0
        %2338 = vmatprep.subr.bf16.mxu0 0
        %2339 = vmatpush1.bf16.xpose.msra.mxu0 0
        %2340 = vmatprep.subr.bf16.mxu0 0
        %2341 = vmatpush1.bf16.xpose.msra.mxu0 0
        %2342 = vmatprep.subr.bf16.mxu0 0
        %2343 = vmatpush1.bf16.xpose.msra.mxu0 0
        %2344 = vmatprep.subr.bf16.mxu0 0
        %2345 = vmatpush1.bf16.xpose.msra.mxu0 0
        %2346 = vmatprep.subr.bf16.mxu0 0
        %2347 = vmatpush1.bf16.xpose.msra.mxu0 0
        %2348 = vmatprep.mubr.bf16.mxu0 0
        %2349 = vmatmul.mubr.bf16.gmra.mrb[0].mxu0 %v2311
        %v2350 = vpop.f32.mrb[0].mxu0
        %v2351 = vadd.f32 0.0, %v2350
        %v2352 = vpop.f32.mrb[0].mxu0
        %v2353 = vpop.f32.mrb[0].mxu0
        %v2354 = vpop.f32.mrb[0].mxu0
        %2355 = vdwg.mxu0
        %v2356 = vsel %vm1907, %v2351, -inf
        %2357 = vmax.xlane.f32.xlu0 %v2356
        %v2358 = vpop.xlane.xlu0 %2357
        %v2359 = vsub.f32 %v2351, %v2358
        %v2360 = vmul.f32 %v2359, 1.442695
        %v2361 = vpow.pop %v2360
        %v2362 = vsel %vm1907, %v2361, 0.0
        %2363 = vadd.xlane.f32.xlu0 %v2362
        %v2364 = vpop.xlane.xlu0 %2363
        %v2365 = vrcp.pop %v2364
        %v2366 = vmul.f32 %v2361, %v2365
        %v2367 = vpack.c.bf16 %v2366, %v2366
        %2369 = vrot.lane.b32.xlu0 %v2309, 96
        %v2370 = vpop.permute.xlu0 %2369
        %v2373 = vsel %vm1907, %v2367, 0
        %2375 = vmatprep.subr.bf16.mxu0 0
        %2376 = vmatpush1.bf16.msra.mxu0 %v2370
        %2377 = vmatprep.subr.bf16.mxu0 0
        %2378 = vmatpush1.bf16.msra.mxu0 0
        %2379 = vmatprep.subr.bf16.mxu0 0
        %2380 = vmatpush1.bf16.msra.mxu0 0
        %2381 = vmatprep.subr.bf16.mxu0 0
        %2382 = vmatpush1.bf16.msra.mxu0 0
        %2383 = vmatprep.subr.bf16.mxu0 0
        %2384 = vmatpush1.bf16.msra.mxu0 0
        %2385 = vmatprep.subr.bf16.mxu0 0
        %2386 = vmatpush1.bf16.msra.mxu0 0
        %2387 = vmatprep.subr.bf16.mxu0 0
        %2388 = vmatpush1.bf16.msra.mxu0 0
        %2389 = vmatprep.subr.bf16.mxu0 0
        %2390 = vmatpush1.bf16.msra.mxu0 0
        %2391 = vmatprep.subr.bf16.mxu0 0
        %2392 = vmatpush1.bf16.msra.mxu0 0
        %2393 = vmatprep.subr.bf16.mxu0 0
        %2394 = vmatpush1.bf16.msra.mxu0 0
        %2395 = vmatprep.subr.bf16.mxu0 0
        %2396 = vmatpush1.bf16.msra.mxu0 0
        %2397 = vmatprep.subr.bf16.mxu0 0
        %2398 = vmatpush1.bf16.msra.mxu0 0
        %2399 = vmatprep.subr.bf16.mxu0 0
        %2400 = vmatpush1.bf16.msra.mxu0 0
        %2401 = vmatprep.subr.bf16.mxu0 0
        %2402 = vmatpush1.bf16.msra.mxu0 0
        %2403 = vmatprep.subr.bf16.mxu0 0
        %2404 = vmatpush1.bf16.msra.mxu0 0
        %2405 = vmatprep.subr.bf16.mxu0 0
        %2406 = vmatpush1.bf16.msra.mxu0 0
        %2407 = vmatprep.mubr.bf16.mxu0 0
        %2408 = vmatmul.mubr.bf16.gmra.mrb[0].mxu0 %v2373
        %v2409 = vpop.f32.mrb[0].mxu0
        %v2410 = vadd.f32 0.0, %v2409
        %v2411 = vpop.f32.mrb[0].mxu0
        %v2412 = vpop.f32.mrb[0].mxu0
        %v2413 = vpop.f32.mrb[0].mxu0
        %2414 = vdwg.mxu0
        %2415 = vst.msk [vmem:[#allocation2 + $0x8] sm:$0xff] %vm696, %v2410
        %2417 = vrot.lane.b32.xlu0 %v2308, 120
        %v2418 = vpop.permute.xlu0 %2417
        %2419 = vrot.lane.b32.xlu0 %v2309, 120
        %v2420 = vpop.permute.xlu0 %2419
        %v2422 = vsel %vm696, %v2418, 0
        %v2425 = vsel %vm696, %v2420, 0
        %2427 = vmatprep.subr.bf16.mxu0 0
        %2428 = vmatpush1.bf16.xpose.msra.mxu0 %v2425
        %2429 = vmatprep.subr.bf16.mxu0 0
        %2430 = vmatpush1.bf16.xpose.msra.mxu0 0
        %2431 = vmatprep.subr.bf16.mxu0 0
        %2432 = vmatpush1.bf16.xpose.msra.mxu0 0
        %2433 = vmatprep.subr.bf16.mxu0 0
        %2434 = vmatpush1.bf16.xpose.msra.mxu0 0
        %2435 = vmatprep.subr.bf16.mxu0 0
        %2436 = vmatpush1.bf16.xpose.msra.mxu0 0
        %2437 = vmatprep.subr.bf16.mxu0 0
        %2438 = vmatpush1.bf16.xpose.msra.mxu0 0
        %2439 = vmatprep.subr.bf16.mxu0 0
        %2440 = vmatpush1.bf16.xpose.msra.mxu0 0
        %2441 = vmatprep.subr.bf16.mxu0 0
        %2442 = vmatpush1.bf16.xpose.msra.mxu0 0
        %2443 = vmatprep.subr.bf16.mxu0 0
        %2444 = vmatpush1.bf16.xpose.msra.mxu0 0
        %2445 = vmatprep.subr.bf16.mxu0 0
        %2446 = vmatpush1.bf16.xpose.msra.mxu0 0
        %2447 = vmatprep.subr.bf16.mxu0 0
        %2448 = vmatpush1.bf16.xpose.msra.mxu0 0
        %2449 = vmatprep.subr.bf16.mxu0 0
        %2450 = vmatpush1.bf16.xpose.msra.mxu0 0
        %2451 = vmatprep.subr.bf16.mxu0 0
        %2452 = vmatpush1.bf16.xpose.msra.mxu0 0
        %2453 = vmatprep.subr.bf16.mxu0 0
        %2454 = vmatpush1.bf16.xpose.msra.mxu0 0
        %2455 = vmatprep.subr.bf16.mxu0 0
        %2456 = vmatpush1.bf16.xpose.msra.mxu0 0
        %2457 = vmatprep.subr.bf16.mxu0 0
        %2458 = vmatpush1.bf16.xpose.msra.mxu0 0
        %2459 = vmatprep.mubr.bf16.mxu0 0
        %2460 = vmatmul.mubr.bf16.gmra.mrb[0].mxu0 %v2422
        %v2461 = vpop.f32.mrb[0].mxu0
        %v2462 = vadd.f32 0.0, %v2461
        %v2463 = vpop.f32.mrb[0].mxu0
        %v2464 = vpop.f32.mrb[0].mxu0
        %v2465 = vpop.f32.mrb[0].mxu0
        %2466 = vdwg.mxu0
        %v2467 = vsel %vm1907, %v2462, -inf
        %2468 = vmax.xlane.f32.xlu0 %v2467
        %v2469 = vpop.xlane.xlu0 %2468
        %v2470 = vsub.f32 %v2462, %v2469
        %v2471 = vmul.f32 %v2470, 1.442695
        %v2472 = vpow.pop %v2471
        %v2473 = vsel %vm1907, %v2472, 0.0
        %2474 = vadd.xlane.f32.xlu0 %v2473
        %v2475 = vpop.xlane.xlu0 %2474
        %v2476 = vrcp.pop %v2475
        %v2477 = vmul.f32 %v2472, %v2476
        %v2478 = vpack.c.bf16 %v2477, %v2477
        %2479 = vrot.lane.b32.xlu0 %v2309, 88
        %v2480 = vpop.permute.xlu0 %2479
        %v2483 = vsel %vm1907, %v2478, 0
        %2485 = vmatprep.subr.bf16.mxu0 0
        %2486 = vmatpush1.bf16.msra.mxu0 %v2480
        %2487 = vmatprep.subr.bf16.mxu0 0
        %2488 = vmatpush1.bf16.msra.mxu0 0
        %2489 = vmatprep.subr.bf16.mxu0 0
        %2490 = vmatpush1.bf16.msra.mxu0 0
        %2491 = vmatprep.subr.bf16.mxu0 0
        %2492 = vmatpush1.bf16.msra.mxu0 0
        %2493 = vmatprep.subr.bf16.mxu0 0
        %2494 = vmatpush1.bf16.msra.mxu0 0
        %2495 = vmatprep.subr.bf16.mxu0 0
        %2496 = vmatpush1.bf16.msra.mxu0 0
        %2497 = vmatprep.subr.bf16.mxu0 0
        %2498 = vmatpush1.bf16.msra.mxu0 0
        %2499 = vmatprep.subr.bf16.mxu0 0
        %2500 = vmatpush1.bf16.msra.mxu0 0
        %2501 = vmatprep.subr.bf16.mxu0 0
        %2502 = vmatpush1.bf16.msra.mxu0 0
        %2503 = vmatprep.subr.bf16.mxu0 0
        %2504 = vmatpush1.bf16.msra.mxu0 0
        %2505 = vmatprep.subr.bf16.mxu0 0
        %2506 = vmatpush1.bf16.msra.mxu0 0
        %2507 = vmatprep.subr.bf16.mxu0 0
        %2508 = vmatpush1.bf16.msra.mxu0 0
        %2509 = vmatprep.subr.bf16.mxu0 0
        %2510 = vmatpush1.bf16.msra.mxu0 0
        %2511 = vmatprep.subr.bf16.mxu0 0
        %2512 = vmatpush1.bf16.msra.mxu0 0
        %2513 = vmatprep.subr.bf16.mxu0 0
        %2514 = vmatpush1.bf16.msra.mxu0 0
        %2515 = vmatprep.subr.bf16.mxu0 0
        %2516 = vmatpush1.bf16.msra.mxu0 0
        %2517 = vmatprep.mubr.bf16.mxu0 0
        %2518 = vmatmul.mubr.bf16.gmra.mrb[0].mxu0 %v2483
        %v2519 = vpop.f32.mrb[0].mxu0
        %v2520 = vadd.f32 0.0, %v2519
        %v2521 = vpop.f32.mrb[0].mxu0
        %v2522 = vpop.f32.mrb[0].mxu0
        %v2523 = vpop.f32.mrb[0].mxu0
        %2524 = vdwg.mxu0
        %2526 = vrot.lane.b32.xlu0 %v2520, 8
        %v2527 = vpop.permute.xlu0 %2526
        %2529 = vst.msk [vmem:[#allocation2 + $0x8] sm:$0xff] %vm919, %v2527
        %2530 = vrot.lane.b32.xlu0 %v2308, 112
        %v2531 = vpop.permute.xlu0 %2530
        %2532 = vrot.lane.b32.xlu0 %v2309, 112
        %v2533 = vpop.permute.xlu0 %2532
        %v2535 = vsel %vm696, %v2531, 0
        %v2538 = vsel %vm696, %v2533, 0
        %2540 = vmatprep.subr.bf16.mxu0 0
        %2541 = vmatpush1.bf16.xpose.msra.mxu0 %v2538
        %2542 = vmatprep.subr.bf16.mxu0 0
        %2543 = vmatpush1.bf16.xpose.msra.mxu0 0
        %2544 = vmatprep.subr.bf16.mxu0 0
        %2545 = vmatpush1.bf16.xpose.msra.mxu0 0
        %2546 = vmatprep.subr.bf16.mxu0 0
        %2547 = vmatpush1.bf16.xpose.msra.mxu0 0
        %2548 = vmatprep.subr.bf16.mxu0 0
        %2549 = vmatpush1.bf16.xpose.msra.mxu0 0
        %2550 = vmatprep.subr.bf16.mxu0 0
        %2551 = vmatpush1.bf16.xpose.msra.mxu0 0
        %2552 = vmatprep.subr.bf16.mxu0 0
        %2553 = vmatpush1.bf16.xpose.msra.mxu0 0
        %2554 = vmatprep.subr.bf16.mxu0 0
        %2555 = vmatpush1.bf16.xpose.msra.mxu0 0
        %2556 = vmatprep.subr.bf16.mxu0 0
        %2557 = vmatpush1.bf16.xpose.msra.mxu0 0
        %2558 = vmatprep.subr.bf16.mxu0 0
        %2559 = vmatpush1.bf16.xpose.msra.mxu0 0
        %2560 = vmatprep.subr.bf16.mxu0 0
        %2561 = vmatpush1.bf16.xpose.msra.mxu0 0
        %2562 = vmatprep.subr.bf16.mxu0 0
        %2563 = vmatpush1.bf16.xpose.msra.mxu0 0
        %2564 = vmatprep.subr.bf16.mxu0 0
        %2565 = vmatpush1.bf16.xpose.msra.mxu0 0
        %2566 = vmatprep.subr.bf16.mxu0 0
        %2567 = vmatpush1.bf16.xpose.msra.mxu0 0
        %2568 = vmatprep.subr.bf16.mxu0 0
        %2569 = vmatpush1.bf16.xpose.msra.mxu0 0
        %2570 = vmatprep.subr.bf16.mxu0 0
        %2571 = vmatpush1.bf16.xpose.msra.mxu0 0
        %2572 = vmatprep.mubr.bf16.mxu0 0
        %2573 = vmatmul.mubr.bf16.gmra.mrb[0].mxu0 %v2535
        %v2574 = vpop.f32.mrb[0].mxu0
        %v2575 = vadd.f32 0.0, %v2574
        %v2576 = vpop.f32.mrb[0].mxu0
        %v2577 = vpop.f32.mrb[0].mxu0
        %v2578 = vpop.f32.mrb[0].mxu0
        %2579 = vdwg.mxu0
        %v2580 = vsel %vm1907, %v2575, -inf
        %2581 = vmax.xlane.f32.xlu0 %v2580
        %v2582 = vpop.xlane.xlu0 %2581
        %v2583 = vsub.f32 %v2575, %v2582
        %v2584 = vmul.f32 %v2583, 1.442695
        %v2585 = vpow.pop %v2584
        %v2586 = vsel %vm1907, %v2585, 0.0
        %2587 = vadd.xlane.f32.xlu0 %v2586
        %v2588 = vpop.xlane.xlu0 %2587
        %v2589 = vrcp.pop %v2588
        %v2590 = vmul.f32 %v2585, %v2589
        %v2591 = vpack.c.bf16 %v2590, %v2590
        %2592 = vrot.lane.b32.xlu0 %v2309, 80
        %v2593 = vpop.permute.xlu0 %2592
        %v2596 = vsel %vm1907, %v2591, 0
        %2598 = vmatprep.subr.bf16.mxu0 0
        %2599 = vmatpush1.bf16.msra.mxu0 %v2593
        %2600 = vmatprep.subr.bf16.mxu0 0
        %2601 = vmatpush1.bf16.msra.mxu0 0
        %2602 = vmatprep.subr.bf16.mxu0 0
        %2603 = vmatpush1.bf16.msra.mxu0 0
        %2604 = vmatprep.subr.bf16.mxu0 0
        %2605 = vmatpush1.bf16.msra.mxu0 0
        %2606 = vmatprep.subr.bf16.mxu0 0
        %2607 = vmatpush1.bf16.msra.mxu0 0
        %2608 = vmatprep.subr.bf16.mxu0 0
        %2609 = vmatpush1.bf16.msra.mxu0 0
        %2610 = vmatprep.subr.bf16.mxu0 0
        %2611 = vmatpush1.bf16.msra.mxu0 0
        %2612 = vmatprep.subr.bf16.mxu0 0
        %2613 = vmatpush1.bf16.msra.mxu0 0
        %2614 = vmatprep.subr.bf16.mxu0 0
        %2615 = vmatpush1.bf16.msra.mxu0 0
        %2616 = vmatprep.subr.bf16.mxu0 0
        %2617 = vmatpush1.bf16.msra.mxu0 0
        %2618 = vmatprep.subr.bf16.mxu0 0
        %2619 = vmatpush1.bf16.msra.mxu0 0
        %2620 = vmatprep.subr.bf16.mxu0 0
        %2621 = vmatpush1.bf16.msra.mxu0 0
        %2622 = vmatprep.subr.bf16.mxu0 0
        %2623 = vmatpush1.bf16.msra.mxu0 0
        %2624 = vmatprep.subr.bf16.mxu0 0
        %2625 = vmatpush1.bf16.msra.mxu0 0
        %2626 = vmatprep.subr.bf16.mxu0 0
        %2627 = vmatpush1.bf16.msra.mxu0 0
        %2628 = vmatprep.subr.bf16.mxu0 0
        %2629 = vmatpush1.bf16.msra.mxu0 0
        %2630 = vmatprep.mubr.bf16.mxu0 0
        %2631 = vmatmul.mubr.bf16.gmra.mrb[0].mxu0 %v2596
        %v2632 = vpop.f32.mrb[0].mxu0
        %v2633 = vadd.f32 0.0, %v2632
        %v2634 = vpop.f32.mrb[0].mxu0
        %v2635 = vpop.f32.mrb[0].mxu0
        %v2636 = vpop.f32.mrb[0].mxu0
        %2637 = vdwg.mxu0
        %2639 = vrot.lane.b32.xlu0 %v2633, 16
        %v2640 = vpop.permute.xlu0 %2639
        %2642 = vst.msk [vmem:[#allocation2 + $0x8] sm:$0xff] %vm1035, %v2640
        %2643 = vrot.lane.b32.xlu0 %v2308, 104
        %v2644 = vpop.permute.xlu0 %2643
        %2645 = vrot.lane.b32.xlu0 %v2309, 104
        %v2646 = vpop.permute.xlu0 %2645
        %v2648 = vsel %vm696, %v2644, 0
        %v2651 = vsel %vm696, %v2646, 0
        %2653 = vmatprep.subr.bf16.mxu0 0
        %2654 = vmatpush1.bf16.xpose.msra.mxu0 %v2651
        %2655 = vmatprep.subr.bf16.mxu0 0
        %2656 = vmatpush1.bf16.xpose.msra.mxu0 0
        %2657 = vmatprep.subr.bf16.mxu0 0
        %2658 = vmatpush1.bf16.xpose.msra.mxu0 0
        %2659 = vmatprep.subr.bf16.mxu0 0
        %2660 = vmatpush1.bf16.xpose.msra.mxu0 0
        %2661 = vmatprep.subr.bf16.mxu0 0
        %2662 = vmatpush1.bf16.xpose.msra.mxu0 0
        %2663 = vmatprep.subr.bf16.mxu0 0
        %2664 = vmatpush1.bf16.xpose.msra.mxu0 0
        %2665 = vmatprep.subr.bf16.mxu0 0
        %2666 = vmatpush1.bf16.xpose.msra.mxu0 0
        %2667 = vmatprep.subr.bf16.mxu0 0
        %2668 = vmatpush1.bf16.xpose.msra.mxu0 0
        %2669 = vmatprep.subr.bf16.mxu0 0
        %2670 = vmatpush1.bf16.xpose.msra.mxu0 0
        %2671 = vmatprep.subr.bf16.mxu0 0
        %2672 = vmatpush1.bf16.xpose.msra.mxu0 0
        %2673 = vmatprep.subr.bf16.mxu0 0
        %2674 = vmatpush1.bf16.xpose.msra.mxu0 0
        %2675 = vmatprep.subr.bf16.mxu0 0
        %2676 = vmatpush1.bf16.xpose.msra.mxu0 0
        %2677 = vmatprep.subr.bf16.mxu0 0
        %2678 = vmatpush1.bf16.xpose.msra.mxu0 0
        %2679 = vmatprep.subr.bf16.mxu0 0
        %2680 = vmatpush1.bf16.xpose.msra.mxu0 0
        %2681 = vmatprep.subr.bf16.mxu0 0
        %2682 = vmatpush1.bf16.xpose.msra.mxu0 0
        %2683 = vmatprep.subr.bf16.mxu0 0
        %2684 = vmatpush1.bf16.xpose.msra.mxu0 0
        %2685 = vmatprep.mubr.bf16.mxu0 0
        %2686 = vmatmul.mubr.bf16.gmra.mrb[0].mxu0 %v2648
        %v2687 = vpop.f32.mrb[0].mxu0
        %v2688 = vadd.f32 0.0, %v2687
        %v2689 = vpop.f32.mrb[0].mxu0
        %v2690 = vpop.f32.mrb[0].mxu0
        %v2691 = vpop.f32.mrb[0].mxu0
        %2692 = vdwg.mxu0
        %v2693 = vsel %vm1907, %v2688, -inf
        %2694 = vmax.xlane.f32.xlu0 %v2693
        %v2695 = vpop.xlane.xlu0 %2694
        %v2696 = vsub.f32 %v2688, %v2695
        %v2697 = vmul.f32 %v2696, 1.442695
        %v2698 = vpow.pop %v2697
        %v2699 = vsel %vm1907, %v2698, 0.0
        %2700 = vadd.xlane.f32.xlu0 %v2699
        %v2701 = vpop.xlane.xlu0 %2700
        %v2702 = vrcp.pop %v2701
        %v2703 = vmul.f32 %v2698, %v2702
        %v2704 = vpack.c.bf16 %v2703, %v2703
        %2705 = vrot.lane.b32.xlu0 %v2309, 72
        %v2706 = vpop.permute.xlu0 %2705
        %v2709 = vsel %vm1907, %v2704, 0
        %2711 = vmatprep.subr.bf16.mxu0 0
        %2712 = vmatpush1.bf16.msra.mxu0 %v2706
        %2713 = vmatprep.subr.bf16.mxu0 0
        %2714 = vmatpush1.bf16.msra.mxu0 0
        %2715 = vmatprep.subr.bf16.mxu0 0
        %2716 = vmatpush1.bf16.msra.mxu0 0
        %2717 = vmatprep.subr.bf16.mxu0 0
        %2718 = vmatpush1.bf16.msra.mxu0 0
        %2719 = vmatprep.subr.bf16.mxu0 0
        %2720 = vmatpush1.bf16.msra.mxu0 0
        %2721 = vmatprep.subr.bf16.mxu0 0
        %2722 = vmatpush1.bf16.msra.mxu0 0
        %2723 = vmatprep.subr.bf16.mxu0 0
        %2724 = vmatpush1.bf16.msra.mxu0 0
        %2725 = vmatprep.subr.bf16.mxu0 0
        %2726 = vmatpush1.bf16.msra.mxu0 0
        %2727 = vmatprep.subr.bf16.mxu0 0
        %2728 = vmatpush1.bf16.msra.mxu0 0
        %2729 = vmatprep.subr.bf16.mxu0 0
        %2730 = vmatpush1.bf16.msra.mxu0 0
        %2731 = vmatprep.subr.bf16.mxu0 0
        %2732 = vmatpush1.bf16.msra.mxu0 0
        %2733 = vmatprep.subr.bf16.mxu0 0
        %2734 = vmatpush1.bf16.msra.mxu0 0
        %2735 = vmatprep.subr.bf16.mxu0 0
        %2736 = vmatpush1.bf16.msra.mxu0 0
        %2737 = vmatprep.subr.bf16.mxu0 0
        %2738 = vmatpush1.bf16.msra.mxu0 0
        %2739 = vmatprep.subr.bf16.mxu0 0
        %2740 = vmatpush1.bf16.msra.mxu0 0
        %2741 = vmatprep.subr.bf16.mxu0 0
        %2742 = vmatpush1.bf16.msra.mxu0 0
        %2743 = vmatprep.mubr.bf16.mxu0 0
        %2744 = vmatmul.mubr.bf16.gmra.mrb[0].mxu0 %v2709
        %v2745 = vpop.f32.mrb[0].mxu0
        %v2746 = vadd.f32 0.0, %v2745
        %v2747 = vpop.f32.mrb[0].mxu0
        %v2748 = vpop.f32.mrb[0].mxu0
        %v2749 = vpop.f32.mrb[0].mxu0
        %2750 = vdwg.mxu0
        %2752 = vrot.lane.b32.xlu0 %v2746, 24
        %v2753 = vpop.permute.xlu0 %2752
        %2755 = vst.msk [vmem:[#allocation2 + $0x8] sm:$0xff] %vm1151, %v2753
        %v2756 = vld [vmem:[#allocation2] sm:$0xff]
        %v2757 = vld [vmem:[#allocation2 + $0x8] sm:$0xff]
        %v2758 = vpack.c.bf16 %v2757, %v2756
        %v2759 = vld [vmem:[%s479] sm:$0xf]
        %v2760 = vld [vmem:[%s479 + $0x4] sm:$0xf]
        %v2761 = vld [vmem:[%s479 + $0x8] sm:$0xf]
        %v2762 = vld [vmem:[%s479 + $0xc] sm:$0xf]
        %v2763 = vlaneseq
        %v2764 = vshrl.u32 %v2763, 7
        %v2765 = vsub.s32 4, %v2764
        %v2766 = vrot.slane %v624, %v2765
        %v2771 = vunpack.c.l.b16 %v2759
        %v2772 = vunpack.c.l.b16 %v2760
        %v2773 = vunpack.c.l.b16 %v2761
        %v2774 = vunpack.c.l.b16 %v2762
        %v2775 = vpack.c.b16 %v2772, %v2771
        %v2776 = vpack.c.b16 %v2774, %v2773
        %v2780 = vsel %vm647, %v2758, 0
        %2782 = vmatprep.subr.bf16.mxu0 0
        %2783 = vmatpush1.bf16.msra.mxu0 %v2775
        %2784 = vmatprep.subr.bf16.mxu0 0
        %2785 = vmatpush1.bf16.msra.mxu0 %v2776
        %2786 = vmatprep.subr.bf16.mxu0 0
        %2787 = vmatpush1.bf16.msra.mxu0 0
        %2788 = vmatprep.subr.bf16.mxu0 0
        %2789 = vmatpush1.bf16.msra.mxu0 0
        %2790 = vmatprep.subr.bf16.mxu0 0
        %2791 = vmatpush1.bf16.msra.mxu0 0
        %2792 = vmatprep.subr.bf16.mxu0 0
        %2793 = vmatpush1.bf16.msra.mxu0 0
        %2794 = vmatprep.subr.bf16.mxu0 0
        %2795 = vmatpush1.bf16.msra.mxu0 0
        %2796 = vmatprep.subr.bf16.mxu0 0
        %2797 = vmatpush1.bf16.msra.mxu0 0
        %2798 = vmatprep.subr.bf16.mxu0 0
        %2799 = vmatpush1.bf16.msra.mxu0 0
        %2800 = vmatprep.subr.bf16.mxu0 0
        %2801 = vmatpush1.bf16.msra.mxu0 0
        %2802 = vmatprep.subr.bf16.mxu0 0
        %2803 = vmatpush1.bf16.msra.mxu0 0
        %2804 = vmatprep.subr.bf16.mxu0 0
        %2805 = vmatpush1.bf16.msra.mxu0 0
        %2806 = vmatprep.subr.bf16.mxu0 0
        %2807 = vmatpush1.bf16.msra.mxu0 0
        %2808 = vmatprep.subr.bf16.mxu0 0
        %2809 = vmatpush1.bf16.msra.mxu0 0
        %2810 = vmatprep.subr.bf16.mxu0 0
        %2811 = vmatpush1.bf16.msra.mxu0 0
        %2812 = vmatprep.subr.bf16.mxu0 0
        %2813 = vmatpush1.bf16.msra.mxu0 0
        %2814 = vmatprep.mubr.bf16.mxu0 0
        %2815 = vmatmul.mubr.bf16.gmra.mrb[0].mxu0 %v2780
        %v2816 = vpop.f32.mrb[0].mxu0
        %v2817 = vadd.f32 %v2766, %v2816
        %v2818 = vpop.f32.mrb[0].mxu0
        %v2819 = vpop.f32.mrb[0].mxu0
        %v2820 = vadd.f32 %v2766, %v2819
        %v2821 = vpop.f32.mrb[0].mxu0
        %2822 = vdwg.mxu0
        %v2823 = vadd.f32 %v1715, %v2817
        %v2824 = vadd.f32 %v1716, %v2820
        %v2825 = vsel %vm647, %v2823, 0.0
        %2826 = vadd.xlane.f32.xlu0 %v2825
        %v2827 = vpop.xlane.xlu0 %2826
        %v2828 = vsel %vm647, %v2824, 0.0
        %2829 = vadd.xlane.f32.xlu0 %v2828
        %v2830 = vpop.xlane.xlu0 %2829
        %v2831 = vmul.f32 %v2827, %v1684
        %v2832 = vmul.f32 %v2830, %v1684
        %v2833 = vsub.f32 %v2823, %v2831
        %v2834 = vsub.f32 %v2824, %v2832
        %v2835 = vmul.f32 %v2833, %v2833
        %v2836 = vmul.f32 %v2834, %v2834
        %v2837 = vsel %vm647, %v2835, 0.0
        %2838 = vadd.xlane.f32.xlu0 %v2837
        %v2839 = vpop.xlane.xlu0 %2838
        %v2840 = vsel %vm647, %v2836, 0.0
        %2841 = vadd.xlane.f32.xlu0 %v2840
        %v2842 = vpop.xlane.xlu0 %2841
        %v2843 = vmul.f32 %v2839, %v1684
        %v2844 = vmul.f32 %v2842, %v1684
        %v2845 = vadd.f32 %v2843, 1e-05
        %v2846 = vadd.f32 %v2844, 1e-05
        %v2847 = vrsqrt.pop %v2845
        %v2848 = vrsqrt.pop %v2846
        %v2849 = vmul.f32 %v2833, %v2847
        %v2850 = vmul.f32 %v2834, %v2848
        %v2851 = vlaneseq
        %v2852 = vshrl.u32 %v2851, 7
        %v2853 = vsub.s32 1, %v2852
        %v2854 = vrot.slane %v625, %v2853
        %v2855 = vmul.f32 %v2849, %v2854
        %v2856 = vmul.f32 %v2850, %v2854
        %v2857 = vlaneseq
        %v2858 = vshrl.u32 %v2857, 7
        %v2859 = vsub.s32 2, %v2858
        %v2860 = vrot.slane %v625, %v2859
        %v2861 = vadd.f32 %v2855, %v2860
        %v2862 = vadd.f32 %v2856, %v2860
        %v2863 = vpack.c.bf16 %v2862, %v2861
        %v2864 = vld [vmem:[%s488] sm:$0xf]
        %v2865 = vld [vmem:[%s488 + $0x4] sm:$0xf]
        %v2866 = vld [vmem:[%s488 + $0x8] sm:$0xf]
        %v2867 = vld [vmem:[%s488 + $0xc] sm:$0xf]
        %v2868 = vlaneseq
        %v2869 = vshrl.u32 %v2868, 7
        %v2870 = vsub.s32 5, %v2869
        %v2871 = vrot.slane %v624, %v2870
        %v2876 = vunpack.c.l.b16 %v2864
        %v2877 = vunpack.c.l.b16 %v2865
        %v2878 = vunpack.c.l.b16 %v2866
        %v2879 = vunpack.c.l.b16 %v2867
        %v2880 = vpack.c.b16 %v2877, %v2876
        %v2881 = vpack.c.b16 %v2879, %v2878
        %v2885 = vsel %vm647, %v2863, 0
        %2887 = vmatprep.subr.bf16.mxu0 0
        %2888 = vmatpush1.bf16.msra.mxu0 %v2880
        %2889 = vmatprep.subr.bf16.mxu0 0
        %2890 = vmatpush1.bf16.msra.mxu0 %v2881
        %2891 = vmatprep.subr.bf16.mxu0 0
        %2892 = vmatpush1.bf16.msra.mxu0 0
        %2893 = vmatprep.subr.bf16.mxu0 0
        %2894 = vmatpush1.bf16.msra.mxu0 0
        %2895 = vmatprep.subr.bf16.mxu0 0
        %2896 = vmatpush1.bf16.msra.mxu0 0
        %2897 = vmatprep.subr.bf16.mxu0 0
        %2898 = vmatpush1.bf16.msra.mxu0 0
        %2899 = vmatprep.subr.bf16.mxu0 0
        %2900 = vmatpush1.bf16.msra.mxu0 0
        %2901 = vmatprep.subr.bf16.mxu0 0
        %2902 = vmatpush1.bf16.msra.mxu0 0
        %2903 = vmatprep.subr.bf16.mxu0 0
        %2904 = vmatpush1.bf16.msra.mxu0 0
        %2905 = vmatprep.subr.bf16.mxu0 0
        %2906 = vmatpush1.bf16.msra.mxu0 0
        %2907 = vmatprep.subr.bf16.mxu0 0
        %2908 = vmatpush1.bf16.msra.mxu0 0
        %2909 = vmatprep.subr.bf16.mxu0 0
        %2910 = vmatpush1.bf16.msra.mxu0 0
        %2911 = vmatprep.subr.bf16.mxu0 0
        %2912 = vmatpush1.bf16.msra.mxu0 0
        %2913 = vmatprep.subr.bf16.mxu0 0
        %2914 = vmatpush1.bf16.msra.mxu0 0
        %2915 = vmatprep.subr.bf16.mxu0 0
        %2916 = vmatpush1.bf16.msra.mxu0 0
        %2917 = vmatprep.subr.bf16.mxu0 0
        %2918 = vmatpush1.bf16.msra.mxu0 0
        %2919 = vmatprep.mubr.bf16.mxu0 0
        %2920 = vmatmul.mubr.bf16.gmra.mrb[0].mxu0 %v2885
        %v2921 = vpop.f32.mrb[0].mxu0
        %v2922 = vadd.f32 %v2871, %v2921
        %v2923 = vpop.f32.mrb[0].mxu0
        %v2924 = vpop.f32.mrb[0].mxu0
        %v2925 = vadd.f32 %v2871, %v2924
        %v2926 = vpop.f32.mrb[0].mxu0
        %2927 = vdwg.mxu0
        %v2928 = vmax.f32 %v2922, 0.0
        %v2929 = vmax.f32 %v2925, 0.0
        %v2930 = vpack.c.bf16 %v2929, %v2928
        %v2931 = vld [vmem:[%s569] sm:$0xf]
        %v2932 = vld [vmem:[%s569 + $0x4] sm:$0xf]
        %v2933 = vld [vmem:[%s569 + $0x8] sm:$0xf]
        %v2934 = vld [vmem:[%s569 + $0xc] sm:$0xf]
        %v2935 = vld [vmem:[%s569 + $0x10] sm:$0xf]
        %v2936 = vld [vmem:[%s569 + $0x14] sm:$0xf]
        %v2937 = vld [vmem:[%s569 + $0x18] sm:$0xf]
        %v2938 = vld [vmem:[%s569 + $0x1c] sm:$0xf]
        %v2939 = vlaneseq
        %v2940 = vshrl.u32 %v2939, 7
        %v2941 = vsub.s32 6, %v2940
        %v2942 = vrot.slane %v624, %v2941
        %v2951 = vunpack.c.l.b16 %v2931
        %v2952 = vunpack.c.l.b16 %v2932
        %v2953 = vunpack.c.l.b16 %v2933
        %v2954 = vunpack.c.l.b16 %v2934
        %v2955 = vunpack.c.l.b16 %v2935
        %v2956 = vunpack.c.l.b16 %v2936
        %v2957 = vunpack.c.l.b16 %v2937
        %v2958 = vunpack.c.l.b16 %v2938
        %v2959 = vpack.c.b16 %v2952, %v2951
        %v2960 = vpack.c.b16 %v2954, %v2953
        %v2961 = vpack.c.b16 %v2956, %v2955
        %v2962 = vpack.c.b16 %v2958, %v2957
        %vm2967 = vcmask 523264
        %v2969 = vsel %vm2967, %v2930, 0
        %2971 = vmatprep.subr.bf16.mxu0 0
        %2972 = vmatpush1.bf16.msra.mxu0 %v2959
        %2973 = vmatprep.subr.bf16.mxu0 0
        %2974 = vmatpush1.bf16.msra.mxu0 %v2960
        %2975 = vmatprep.subr.bf16.mxu0 0
        %2976 = vmatpush1.bf16.msra.mxu0 %v2961
        %2977 = vmatprep.subr.bf16.mxu0 0
        %2978 = vmatpush1.bf16.msra.mxu0 %v2962
        %2979 = vmatprep.subr.bf16.mxu0 0
        %2980 = vmatpush1.bf16.msra.mxu0 0
        %2981 = vmatprep.subr.bf16.mxu0 0
        %2982 = vmatpush1.bf16.msra.mxu0 0
        %2983 = vmatprep.subr.bf16.mxu0 0
        %2984 = vmatpush1.bf16.msra.mxu0 0
        %2985 = vmatprep.subr.bf16.mxu0 0
        %2986 = vmatpush1.bf16.msra.mxu0 0
        %2987 = vmatprep.subr.bf16.mxu0 0
        %2988 = vmatpush1.bf16.msra.mxu0 0
        %2989 = vmatprep.subr.bf16.mxu0 0
        %2990 = vmatpush1.bf16.msra.mxu0 0
        %2991 = vmatprep.subr.bf16.mxu0 0
        %2992 = vmatpush1.bf16.msra.mxu0 0
        %2993 = vmatprep.subr.bf16.mxu0 0
        %2994 = vmatpush1.bf16.msra.mxu0 0
        %2995 = vmatprep.subr.bf16.mxu0 0
        %2996 = vmatpush1.bf16.msra.mxu0 0
        %2997 = vmatprep.subr.bf16.mxu0 0
        %2998 = vmatpush1.bf16.msra.mxu0 0
        %2999 = vmatprep.subr.bf16.mxu0 0
        %3000 = vmatpush1.bf16.msra.mxu0 0
        %3001 = vmatprep.subr.bf16.mxu0 0
        %3002 = vmatpush1.bf16.msra.mxu0 0
        %3003 = vmatprep.mubr.bf16.mxu0 0
        %3004 = vmatmul.mubr.bf16.gmra.mrb[0].mxu0 %v2969
        %v3005 = vpop.f32.mrb[0].mxu0
        %v3006 = vadd.f32 %v2942, %v3005
        %v3007 = vpop.f32.mrb[0].mxu0
        %v3008 = vpop.f32.mrb[0].mxu0
        %v3009 = vadd.f32 %v2942, %v3008
        %v3010 = vpop.f32.mrb[0].mxu0
        %3011 = vdwg.mxu0
        %v3012 = vsel %vm647, %v3006, 0.0
        %3013 = vadd.xlane.f32.xlu0 %v3012
        %v3014 = vpop.xlane.xlu0 %3013
        %v3015 = vsel %vm647, %v3009, 0.0
        %3016 = vadd.xlane.f32.xlu0 %v3015
        %v3017 = vpop.xlane.xlu0 %3016
        %v3018 = vmul.f32 %v3014, %v1684
        %v3019 = vmul.f32 %v3017, %v1684
        %v3020 = vsub.f32 %v3006, %v3018
        %v3021 = vsub.f32 %v3009, %v3019
        %v3022 = vmul.f32 %v3020, %v3020
        %v3023 = vmul.f32 %v3021, %v3021
        %v3024 = vsel %vm647, %v3022, 0.0
        %3025 = vadd.xlane.f32.xlu0 %v3024
        %v3026 = vpop.xlane.xlu0 %3025
        %v3027 = vsel %vm647, %v3023, 0.0
        %3028 = vadd.xlane.f32.xlu0 %v3027
        %v3029 = vpop.xlane.xlu0 %3028
        %v3030 = vmul.f32 %v3026, %v1684
        %v3031 = vmul.f32 %v3029, %v1684
        %v3032 = vadd.f32 %v3030, 1e-05
        %v3033 = vadd.f32 %v3031, 1e-05
        %v3034 = vrsqrt.pop %v3032
        %v3035 = vrsqrt.pop %v3033
        %v3036 = vmul.f32 %v3020, %v3034
        %v3037 = vmul.f32 %v3021, %v3035
        %v3038 = vlaneseq
        %v3039 = vshrl.u32 %v3038, 7
        %v3040 = vsub.s32 3, %v3039
        %v3041 = vrot.slane %v625, %v3040
        %v3042 = vmul.f32 %v3036, %v3041
        %v3043 = vmul.f32 %v3037, %v3041
        %v3044 = vlaneseq
        %v3045 = vshrl.u32 %v3044, 7
        %v3046 = vsub.s32 4, %v3045
        %v3047 = vrot.slane %v625, %v3046
        %v3048 = vadd.f32 %v3042, %v3047
        %v3049 = vadd.f32 %v3043, %v3047
        %3050 = vst.msk [vmem:[#allocation12] sm:$0xff] %vm647, %v3048
        %3051 = vst.msk [vmem:[#allocation12 + $0x8] sm:$0xff] %vm647, %v3049
        // Predicated region
        $region85: #{tpu_custom_call.1} parent=59 // pred_check
          %p3052 = pneg %p292
        $region86: #{tpu_custom_call.1} parent=59 // pred_check_branch
          %3054 = sbr.rel (%p3052) target = $region88
        $region87: #{tpu_custom_call.1} parent=59 // pred_region
          %s3056 = ssub.s32 256, 256
          %3057 = vsyncadd [#allocation5], %s3056
          %s3058 = sshll.u32 [#allocation12], 4
          %s3059 = int_to_ptr.vmem [resolvable:$true] %s3058
          %3064 = dma.vmem_to_hbm [thread:$0]  %s3059, 256, %s10, [#allocation5], 128, 128, 8
        $region88: #{tpu_custom_call.1} parent=59 // pred_fallthru
          _
        // Predicated region
        $region89: #{tpu_custom_call.1} parent=59 // pred_check
          %p3065 = pneg %p292
        $region90: #{tpu_custom_call.1} parent=59 // pred_check_branch
          %3067 = sbr.rel (%p3065) target = $region92
        $region91: #{tpu_custom_call.1} parent=59 // pred_region
          %3068 = dma.done [#allocation5], 256
        $region92: #{tpu_custom_call.1} parent=59 // pred_fallthru
          _
      $region60: #{tpu_custom_call.1} parent=5 // pred_fallthru
        _
      %p3069 = scmp.le.s32.totalorder 2, %s24
      // Predicated region
      $region93: #{tpu_custom_call.1} parent=5 // pred_check
        %p3070 = pneg %p3069
      $region94: #{tpu_custom_call.1} parent=5 // pred_check_branch
        %3072 = sbr.rel (%p3070) target = $region96
      $region95: #{tpu_custom_call.1} parent=5 // pred_region
        %s3073 = ssub.s32 %s24, 2
      $region96: #{tpu_custom_call.1} parent=5 // pred_fallthru
        _
    $region6: #{tpu_custom_call.1} parent=1 // loop_footer
      %s28 = sadd.s32 1, %s24
    $region7: #{tpu_custom_call.1} parent=1 // loop_footer_branch
      %23 = sbr.rel target = $region3
    $region8: #{tpu_custom_call.1} parent=1 // loop_exit
      _
    %3074 = vsyncpa [#allocation4], 1
    %s3075 = scalar_lea.sflag [#allocation4], 1
    %3076 = vsyncpa %s3075, 1
    %3077 = vsyncpa [#allocation7], 1
    %s3078 = scalar_lea.sflag [#allocation7], 1
    %3079 = vsyncpa %s3078, 1
    %3080 = vsyncpa [#allocation10], 1
    %s3081 = scalar_lea.sflag [#allocation10], 1
    %3082 = vsyncpa %s3081, 1
    %3083 = vsyncpa [#allocation5], 1
    %s3084 = scalar_lea.sflag [#allocation5], 1
    %3085 = vsyncpa %s3084, 1

</llo_original>
